<compile_context>
chip_gen: v7x
topology: tpu7x:2x2x1
jax: 0.10.0
libtpu: 0.0.40
codegen_flags: <defaults>
</compile_context>

<pallas_src>
import jax
import jax.numpy as jnp
from jax.experimental import pallas as pl
from jax.experimental.pallas import tpu as pltpu


# ----------------------------------------------------------------------------
# Parameter packing: PyTorch-convention per-gate params -> kernel layout.
#   wih: (3, I, H) -> (I, 3H)      whh: (3, H, H) -> (H, 3H)
#   bx : (1, 3H) = [bih_r + bhh_r, bih_z + bhh_z, bih_n]   (folded r/z bias)
#   bn : (1, H)  = bhh_n           (must stay inside r * (...) for the n gate)
# ----------------------------------------------------------------------------
def _pack_gru(p):
    wih = jnp.concatenate([p["wih"][0], p["wih"][1], p["wih"][2]], axis=1)
    whh = jnp.concatenate([p["whh"][0], p["whh"][1], p["whh"][2]], axis=1)
    bx = jnp.concatenate([p["bih"][0] + p["bhh"][0],
                          p["bih"][1] + p["bhh"][1],
                          p["bih"][2]], axis=1)
    bn = p["bhh"][2]
    return dict(wih=wih, whh=whh, bx=bx, bn=bn)


# ----------------------------------------------------------------------------
# Fused kernel: 2 batched GRU encoders + FourWay head, single invocation.
# ----------------------------------------------------------------------------
def _make_phrase_sim_kernel(T, B, h_ch, h_w):
    B2 = 2 * B

    def kernel(xch_ref, xw_ref,
               wih_c_ref, whh_c_ref, bx_c_ref, bn_c_ref,
               wih_w_ref, whh_w_ref, bx_w_ref, bn_w_ref,
               w1_ref, b1_ref, w2_ref, b2_ref, out_ref):

        def run_gru(x_flat_ref, wih_ref, whh_ref, bx_ref, bn_ref, H):
            wih = wih_ref[...]          # (I, 3H)
            whh = whh_ref[...]          # (H, 3H)
            bx = bx_ref[...]            # (1, 3H)  (bih + bhh for r/z, bih for n)
            bn = bn_ref[...]            # (1, H)   (bhh for n)
            # Hoisted input projection: one (T*2B, I) @ (I, 3H) matmul.
            xproj = jnp.dot(x_flat_ref[...], wih,
                            preferred_element_type=jnp.float32) + bx
            h = jnp.zeros((B2, H), jnp.float32)
            # Static, fully-unrolled recurrence (T is small).
            for t in range(T):
                xp = xproj[t * B2:(t + 1) * B2, :]                    # (2B, 3H)
                hh = jnp.dot(h, whh, preferred_element_type=jnp.float32)
                r = jax.nn.sigmoid(xp[:, :H] + hh[:, :H])
                z = jax.nn.sigmoid(xp[:, H:2 * H] + hh[:, H:2 * H])
                n = jnp.tanh(xp[:, 2 * H:] + r * (hh[:, 2 * H:] + bn))
                h = (1.0 - z) * n + z * h
            return h                                                   # (2B, H)

        h_c = run_gru(xch_ref, wih_c_ref, whh_c_ref, bx_c_ref, bn_c_ref, h_ch)
        h_wd = run_gru(xw_ref, wih_w_ref, whh_w_ref, bx_w_ref, bn_w_ref, h_w)

        h1c, h2c = h_c[:B], h_c[B:]
        h1w, h2w = h_wd[:B], h_wd[B:]
        # FourWay(ch) ++ FourWay(w) along the feature dim, then ONE lane-dense
        # (B, 4*(H_ch+H_w)) @ (4*(H_ch+H_w), CLF) matmul.
        feats = jnp.concatenate(
            [h1c, h2c, jnp.abs(h1c - h2c), h1c * h2c,
             h1w, h2w, jnp.abs(h1w - h2w), h1w * h2w], axis=1)
        a1 = jnp.maximum(
            jnp.dot(feats, w1_ref[...], preferred_element_type=jnp.float32)
            + b1_ref[...], 0.0)                                        # ReLU
        # Dropout layers are identity at inference time.
        z2 = jnp.dot(a1, w2_ref[...], preferred_element_type=jnp.float32) \
            + b2_ref[...]
        out_ref[...] = jax.nn.sigmoid(z2)

    return kernel


def phrase_sim_forward(params, seq1ch, seq2ch, seq1w, seq2w):
    T, B, i_ch = seq1ch.shape
    i_w = seq1w.shape[-1]
    pc, pw, g = params["enc_ch"], params["enc_w"], params["gen"]
    h_ch = pc["whh"].shape[-1]
    h_w = pw["whh"].shape[-1]

    # Batch the two sequences of each encoder and flatten time into sublanes
    # (done in XLA-land so the kernel sees a plain 2-D operand).
    xch = jnp.concatenate([seq1ch, seq2ch], axis=1).reshape(T * 2 * B, i_ch)
    xw = jnp.concatenate([seq1w, seq2w], axis=1).reshape(T * 2 * B, i_w)

    pcp = _pack_gru(pc)
    pwp = _pack_gru(pw)

    kernel = _make_phrase_sim_kernel(T, B, h_ch, h_w)
    vmem = lambda: pl.BlockSpec(memory_space=pltpu.MemorySpace.VMEM)
    return pl.pallas_call(
        kernel,
        out_shape=jax.ShapeDtypeStruct((B, 1), jnp.float32),
        in_specs=[vmem() for _ in range(14)],
        out_specs=vmem(),
    )(xch, xw,
      pcp["wih"], pcp["whh"], pcp["bx"], pcp["bn"],
      pwp["wih"], pwp["whh"], pwp["bx"], pwp["bn"],
      g["w1"], g["b1"], g["w2"], g["b2"])


# ----------------------------------------------------------------------------
# Deterministic parameter init (PyTorch-style uniform bounds, per-gate layout).
# ----------------------------------------------------------------------------
def init_params(key, i_ch, h_ch, i_w, h_w, clf_dim):
    ks = jax.random.split(key, 6)

    def u(k, shape, scale):
        return jax.random.uniform(k, shape, jnp.float32, -scale, scale)

    def gru(k, i, h):
        k1, k2, k3, k4 = jax.random.split(k, 4)
        s = h ** -0.5
        return dict(wih=u(k1, (3, i, h), s), whh=u(k2, (3, h, h), s),
                    bih=u(k3, (3, 1, h), s), bhh=u(k4, (3, 1, h), s))

    cat_dim = h_ch + h_w
    s1 = (4 * cat_dim) ** -0.5
    s2 = clf_dim ** -0.5
    gen = dict(w1=u(ks[2], (4 * cat_dim, clf_dim), s1),
               b1=u(ks[3], (1, clf_dim), s1),
               w2=u(ks[4], (clf_dim, 1), s2),
               b2=u(ks[5], (1, 1), s2))
    return dict(enc_ch=gru(ks[0], i_ch, h_ch),
                enc_w=gru(ks[1], i_w, h_w),
                gen=gen)


# ----------------------------------------------------------------------------
# Pure-JAX reference (uses the original per-gate parameterization, so it also
# validates the bias folding / gate stacking done for the kernel).
# ----------------------------------------------------------------------------
def _gru_hidden_ref(x, p):
    B = x.shape[1]
    H = p["whh"].shape[-1]

    def step(h, x_t):
        r = jax.nn.sigmoid(x_t @ p["wih"][0] + p["bih"][0] + h @ p["whh"][0] + p["bhh"][0])
        z = jax.nn.sigmoid(x_t @ p["wih"][1] + p["bih"][1] + h @ p["whh"][1] + p["bhh"][1])
        n = jnp.tanh(x_t @ p["wih"][2] + p["bih"][2] + r * (h @ p["whh"][2] + p["bhh"][2]))
        return (1.0 - z) * n + z * h, None

    h, _ = jax.lax.scan(step, jnp.zeros((B, H), jnp.float32), x)
    return h


def _forward_ref(params, s1c, s2c, s1w, s2w):
    def fourway(u1, u2):
        return jnp.concatenate([u1, u2, jnp.abs(u1 - u2), u1 * u2], axis=1)

    h1c = _gru_hidden_ref(s1c, params["enc_ch"])
    h2c = _gru_hidden_ref(s2c, params["enc_ch"])
    h1w = _gru_hidden_ref(s1w, params["enc_w"])
    h2w = _gru_hidden_ref(s2w, params["enc_w"])
    cat = jnp.concatenate([fourway(h1c, h2c), fourway(h1w, h2w)], axis=-1)
    g = params["gen"]
    a1 = jnp.maximum(cat @ g["w1"] + g["b1"], 0.0)
    return jax.nn.sigmoid(a1 @ g["w2"] + g["b2"])


if __name__ == "__main__":
    B, T = 8, 8
    I_CH, H_CH = 16, 32   # encoder_ch.odim = 32
    I_W, H_W = 32, 32     # encoder_w.odim  = 32
    CLF = 64

    key = jax.random.PRNGKey(0)
    kp, k1, k2, k3, k4 = jax.random.split(key, 5)
    params = init_params(kp, I_CH, H_CH, I_W, H_W, CLF)

    seq1ch = jax.random.normal(k1, (T, B, I_CH), jnp.float32)
    seq2ch = jax.random.normal(k2, (T, B, I_CH), jnp.float32)
    seq1w = jax.random.normal(k3, (T, B, I_W), jnp.float32)
    seq2w = jax.random.normal(k4, (T, B, I_W), jnp.float32)

    probs = jax.block_until_ready(
        jax.jit(phrase_sim_forward)(params, seq1ch, seq2ch, seq1w, seq2w))

    ref = _forward_ref(params, seq1ch, seq2ch, seq1w, seq2w)

    assert probs.shape == (B, 1), probs.shape
    assert bool(jnp.all(jnp.isfinite(probs)))
    assert bool(jnp.allclose(probs, ref, rtol=1e-3, atol=1e-3)), (
        "mismatch vs pure-JAX reference")
    print("KERNEL_OK")
</pallas_src>

<mosaic_0001>
module attributes {stable_mosaic.version = 11 : i64} {
  func.func @kernel(%arg0: memref<128x16xf32, #tpu.memory_space<vmem>>, %arg1: memref<128x32xf32, #tpu.memory_space<vmem>>, %arg2: memref<16x96xf32, #tpu.memory_space<vmem>>, %arg3: memref<32x96xf32, #tpu.memory_space<vmem>>, %arg4: memref<1x96xf32, #tpu.memory_space<vmem>>, %arg5: memref<1x32xf32, #tpu.memory_space<vmem>>, %arg6: memref<32x96xf32, #tpu.memory_space<vmem>>, %arg7: memref<32x96xf32, #tpu.memory_space<vmem>>, %arg8: memref<1x96xf32, #tpu.memory_space<vmem>>, %arg9: memref<1x32xf32, #tpu.memory_space<vmem>>, %arg10: memref<256x64xf32, #tpu.memory_space<vmem>>, %arg11: memref<1x64xf32, #tpu.memory_space<vmem>>, %arg12: memref<64x1xf32, #tpu.memory_space<vmem>>, %arg13: memref<1x1xf32, #tpu.memory_space<vmem>>, %arg14: memref<8x1xf32, #tpu.memory_space<vmem>>) attributes {dimension_semantics = [], scalar_prefetch = 0 : i64, scratch_operands = 0 : i64, tpu.core_type = #tpu.core_type<tc>} {
    %c0 = arith.constant 0 : index
    %c0_0 = arith.constant 0 : index
    %0 = vector.load %arg2[%c0, %c0_0] : memref<16x96xf32, #tpu.memory_space<vmem>>, vector<16x96xf32>
    %c0_1 = arith.constant 0 : index
    %c0_2 = arith.constant 0 : index
    %1 = vector.load %arg3[%c0_1, %c0_2] : memref<32x96xf32, #tpu.memory_space<vmem>>, vector<32x96xf32>
    %c0_3 = arith.constant 0 : index
    %c0_4 = arith.constant 0 : index
    %2 = vector.load %arg4[%c0_3, %c0_4] : memref<1x96xf32, #tpu.memory_space<vmem>>, vector<1x96xf32>
    %c0_5 = arith.constant 0 : index
    %c0_6 = arith.constant 0 : index
    %3 = vector.load %arg5[%c0_5, %c0_6] : memref<1x32xf32, #tpu.memory_space<vmem>>, vector<1x32xf32>
    %c0_7 = arith.constant 0 : index
    %c0_8 = arith.constant 0 : index
    %4 = vector.load %arg0[%c0_7, %c0_8] : memref<128x16xf32, #tpu.memory_space<vmem>>, vector<128x16xf32>
    %cst = arith.constant dense<0.000000e+00> : vector<128x96xf32>
    %5 = tpu.matmul %4, %0, %cst {dimension_numbers = #tpu.dot_dimension_numbers<[1], [0], [0], [1], [0, 0, 1, 1], [], []>} : vector<128x16xf32>, vector<16x96xf32>, vector<128x96xf32> -> vector<128x96xf32>
    %6 = vector.broadcast %2 : vector<1x96xf32> to vector<128x96xf32>
    %7 = arith.addf %5, %6 : vector<128x96xf32>
    %cst_9 = arith.constant 0.000000e+00 : f32
    %8 = vector.broadcast %cst_9 : f32 to vector<16x32xf32>
    %9 = vector.extract_strided_slice %7 {offsets = [0, 0], sizes = [16, 96], strides = [1, 1]} : vector<128x96xf32> to vector<16x96xf32>
    %cst_10 = arith.constant dense<0.000000e+00> : vector<16x96xf32>
    %10 = tpu.matmul %8, %1, %cst_10 {dimension_numbers = #tpu.dot_dimension_numbers<[1], [0], [0], [1], [0, 0, 1, 1], [], []>} : vector<16x32xf32>, vector<32x96xf32>, vector<16x96xf32> -> vector<16x96xf32>
    %11 = vector.extract_strided_slice %9 {offsets = [0, 0], sizes = [16, 32], strides = [1, 1]} : vector<16x96xf32> to vector<16x32xf32>
    %12 = vector.extract_strided_slice %10 {offsets = [0, 0], sizes = [16, 32], strides = [1, 1]} : vector<16x96xf32> to vector<16x32xf32>
    %13 = arith.addf %11, %12 : vector<16x32xf32>
    %14 = arith.negf %13 : vector<16x32xf32>
    %15 = math.exp %14 : vector<16x32xf32>
    %cst_11 = arith.constant 1.000000e+00 : f32
    %16 = vector.broadcast %cst_11 : f32 to vector<16x32xf32>
    %17 = arith.addf %16, %15 : vector<16x32xf32>
    %18 = arith.divf %16, %17 : vector<16x32xf32>
    %19 = vector.extract_strided_slice %9 {offsets = [0, 32], sizes = [16, 32], strides = [1, 1]} : vector<16x96xf32> to vector<16x32xf32>
    %20 = vector.extract_strided_slice %10 {offsets = [0, 32], sizes = [16, 32], strides = [1, 1]} : vector<16x96xf32> to vector<16x32xf32>
    %21 = arith.addf %19, %20 : vector<16x32xf32>
    %22 = arith.negf %21 : vector<16x32xf32>
    %23 = math.exp %22 : vector<16x32xf32>
    %cst_12 = arith.constant 1.000000e+00 : f32
    %24 = vector.broadcast %cst_12 : f32 to vector<16x32xf32>
    %25 = arith.addf %24, %23 : vector<16x32xf32>
    %26 = arith.divf %24, %25 : vector<16x32xf32>
    %27 = vector.extract_strided_slice %9 {offsets = [0, 64], sizes = [16, 32], strides = [1, 1]} : vector<16x96xf32> to vector<16x32xf32>
    %28 = vector.extract_strided_slice %10 {offsets = [0, 64], sizes = [16, 32], strides = [1, 1]} : vector<16x96xf32> to vector<16x32xf32>
    %29 = vector.broadcast %3 : vector<1x32xf32> to vector<16x32xf32>
    %30 = arith.addf %28, %29 : vector<16x32xf32>
    %31 = arith.mulf %18, %30 : vector<16x32xf32>
    %32 = arith.addf %27, %31 : vector<16x32xf32>
    %33 = math.tanh %32 : vector<16x32xf32>
    %cst_13 = arith.constant 1.000000e+00 : f32
    %34 = vector.broadcast %cst_13 : f32 to vector<16x32xf32>
    %35 = arith.subf %34, %26 : vector<16x32xf32>
    %36 = arith.mulf %35, %33 : vector<16x32xf32>
    %37 = arith.mulf %26, %8 : vector<16x32xf32>
    %38 = arith.addf %36, %37 : vector<16x32xf32>
    %39 = vector.extract_strided_slice %7 {offsets = [16, 0], sizes = [16, 96], strides = [1, 1]} : vector<128x96xf32> to vector<16x96xf32>
    %cst_14 = arith.constant dense<0.000000e+00> : vector<16x96xf32>
    %40 = tpu.matmul %38, %1, %cst_14 {dimension_numbers = #tpu.dot_dimension_numbers<[1], [0], [0], [1], [0, 0, 1, 1], [], []>} : vector<16x32xf32>, vector<32x96xf32>, vector<16x96xf32> -> vector<16x96xf32>
    %41 = vector.extract_strided_slice %39 {offsets = [0, 0], sizes = [16, 32], strides = [1, 1]} : vector<16x96xf32> to vector<16x32xf32>
    %42 = vector.extract_strided_slice %40 {offsets = [0, 0], sizes = [16, 32], strides = [1, 1]} : vector<16x96xf32> to vector<16x32xf32>
    %43 = arith.addf %41, %42 : vector<16x32xf32>
    %44 = arith.negf %43 : vector<16x32xf32>
    %45 = math.exp %44 : vector<16x32xf32>
    %cst_15 = arith.constant 1.000000e+00 : f32
    %46 = vector.broadcast %cst_15 : f32 to vector<16x32xf32>
    %47 = arith.addf %46, %45 : vector<16x32xf32>
    %48 = arith.divf %46, %47 : vector<16x32xf32>
    %49 = vector.extract_strided_slice %39 {offsets = [0, 32], sizes = [16, 32], strides = [1, 1]} : vector<16x96xf32> to vector<16x32xf32>
    %50 = vector.extract_strided_slice %40 {offsets = [0, 32], sizes = [16, 32], strides = [1, 1]} : vector<16x96xf32> to vector<16x32xf32>
    %51 = arith.addf %49, %50 : vector<16x32xf32>
    %52 = arith.negf %51 : vector<16x32xf32>
    %53 = math.exp %52 : vector<16x32xf32>
    %cst_16 = arith.constant 1.000000e+00 : f32
    %54 = vector.broadcast %cst_16 : f32 to vector<16x32xf32>
    %55 = arith.addf %54, %53 : vector<16x32xf32>
    %56 = arith.divf %54, %55 : vector<16x32xf32>
    %57 = vector.extract_strided_slice %39 {offsets = [0, 64], sizes = [16, 32], strides = [1, 1]} : vector<16x96xf32> to vector<16x32xf32>
    %58 = vector.extract_strided_slice %40 {offsets = [0, 64], sizes = [16, 32], strides = [1, 1]} : vector<16x96xf32> to vector<16x32xf32>
    %59 = vector.broadcast %3 : vector<1x32xf32> to vector<16x32xf32>
    %60 = arith.addf %58, %59 : vector<16x32xf32>
    %61 = arith.mulf %48, %60 : vector<16x32xf32>
    %62 = arith.addf %57, %61 : vector<16x32xf32>
    %63 = math.tanh %62 : vector<16x32xf32>
    %cst_17 = arith.constant 1.000000e+00 : f32
    %64 = vector.broadcast %cst_17 : f32 to vector<16x32xf32>
    %65 = arith.subf %64, %56 : vector<16x32xf32>
    %66 = arith.mulf %65, %63 : vector<16x32xf32>
    %67 = arith.mulf %56, %38 : vector<16x32xf32>
    %68 = arith.addf %66, %67 : vector<16x32xf32>
    %69 = vector.extract_strided_slice %7 {offsets = [32, 0], sizes = [16, 96], strides = [1, 1]} : vector<128x96xf32> to vector<16x96xf32>
    %cst_18 = arith.constant dense<0.000000e+00> : vector<16x96xf32>
    %70 = tpu.matmul %68, %1, %cst_18 {dimension_numbers = #tpu.dot_dimension_numbers<[1], [0], [0], [1], [0, 0, 1, 1], [], []>} : vector<16x32xf32>, vector<32x96xf32>, vector<16x96xf32> -> vector<16x96xf32>
    %71 = vector.extract_strided_slice %69 {offsets = [0, 0], sizes = [16, 32], strides = [1, 1]} : vector<16x96xf32> to vector<16x32xf32>
    %72 = vector.extract_strided_slice %70 {offsets = [0, 0], sizes = [16, 32], strides = [1, 1]} : vector<16x96xf32> to vector<16x32xf32>
    %73 = arith.addf %71, %72 : vector<16x32xf32>
    %74 = arith.negf %73 : vector<16x32xf32>
    %75 = math.exp %74 : vector<16x32xf32>
    %cst_19 = arith.constant 1.000000e+00 : f32
    %76 = vector.broadcast %cst_19 : f32 to vector<16x32xf32>
    %77 = arith.addf %76, %75 : vector<16x32xf32>
    %78 = arith.divf %76, %77 : vector<16x32xf32>
    %79 = vector.extract_strided_slice %69 {offsets = [0, 32], sizes = [16, 32], strides = [1, 1]} : vector<16x96xf32> to vector<16x32xf32>
    %80 = vector.extract_strided_slice %70 {offsets = [0, 32], sizes = [16, 32], strides = [1, 1]} : vector<16x96xf32> to vector<16x32xf32>
    %81 = arith.addf %79, %80 : vector<16x32xf32>
    %82 = arith.negf %81 : vector<16x32xf32>
    %83 = math.exp %82 : vector<16x32xf32>
    %cst_20 = arith.constant 1.000000e+00 : f32
    %84 = vector.broadcast %cst_20 : f32 to vector<16x32xf32>
    %85 = arith.addf %84, %83 : vector<16x32xf32>
    %86 = arith.divf %84, %85 : vector<16x32xf32>
    %87 = vector.extract_strided_slice %69 {offsets = [0, 64], sizes = [16, 32], strides = [1, 1]} : vector<16x96xf32> to vector<16x32xf32>
    %88 = vector.extract_strided_slice %70 {offsets = [0, 64], sizes = [16, 32], strides = [1, 1]} : vector<16x96xf32> to vector<16x32xf32>
    %89 = vector.broadcast %3 : vector<1x32xf32> to vector<16x32xf32>
    %90 = arith.addf %88, %89 : vector<16x32xf32>
    %91 = arith.mulf %78, %90 : vector<16x32xf32>
    %92 = arith.addf %87, %91 : vector<16x32xf32>
    %93 = math.tanh %92 : vector<16x32xf32>
    %cst_21 = arith.constant 1.000000e+00 : f32
    %94 = vector.broadcast %cst_21 : f32 to vector<16x32xf32>
    %95 = arith.subf %94, %86 : vector<16x32xf32>
    %96 = arith.mulf %95, %93 : vector<16x32xf32>
    %97 = arith.mulf %86, %68 : vector<16x32xf32>
    %98 = arith.addf %96, %97 : vector<16x32xf32>
    %99 = vector.extract_strided_slice %7 {offsets = [48, 0], sizes = [16, 96], strides = [1, 1]} : vector<128x96xf32> to vector<16x96xf32>
    %cst_22 = arith.constant dense<0.000000e+00> : vector<16x96xf32>
    %100 = tpu.matmul %98, %1, %cst_22 {dimension_numbers = #tpu.dot_dimension_numbers<[1], [0], [0], [1], [0, 0, 1, 1], [], []>} : vector<16x32xf32>, vector<32x96xf32>, vector<16x96xf32> -> vector<16x96xf32>
    %101 = vector.extract_strided_slice %99 {offsets = [0, 0], sizes = [16, 32], strides = [1, 1]} : vector<16x96xf32> to vector<16x32xf32>
    %102 = vector.extract_strided_slice %100 {offsets = [0, 0], sizes = [16, 32], strides = [1, 1]} : vector<16x96xf32> to vector<16x32xf32>
    %103 = arith.addf %101, %102 : vector<16x32xf32>
    %104 = arith.negf %103 : vector<16x32xf32>
    %105 = math.exp %104 : vector<16x32xf32>
    %cst_23 = arith.constant 1.000000e+00 : f32
    %106 = vector.broadcast %cst_23 : f32 to vector<16x32xf32>
    %107 = arith.addf %106, %105 : vector<16x32xf32>
    %108 = arith.divf %106, %107 : vector<16x32xf32>
    %109 = vector.extract_strided_slice %99 {offsets = [0, 32], sizes = [16, 32], strides = [1, 1]} : vector<16x96xf32> to vector<16x32xf32>
    %110 = vector.extract_strided_slice %100 {offsets = [0, 32], sizes = [16, 32], strides = [1, 1]} : vector<16x96xf32> to vector<16x32xf32>
    %111 = arith.addf %109, %110 : vector<16x32xf32>
    %112 = arith.negf %111 : vector<16x32xf32>
    %113 = math.exp %112 : vector<16x32xf32>
    %cst_24 = arith.constant 1.000000e+00 : f32
    %114 = vector.broadcast %cst_24 : f32 to vector<16x32xf32>
    %115 = arith.addf %114, %113 : vector<16x32xf32>
    %116 = arith.divf %114, %115 : vector<16x32xf32>
    %117 = vector.extract_strided_slice %99 {offsets = [0, 64], sizes = [16, 32], strides = [1, 1]} : vector<16x96xf32> to vector<16x32xf32>
    %118 = vector.extract_strided_slice %100 {offsets = [0, 64], sizes = [16, 32], strides = [1, 1]} : vector<16x96xf32> to vector<16x32xf32>
    %119 = vector.broadcast %3 : vector<1x32xf32> to vector<16x32xf32>
    %120 = arith.addf %118, %119 : vector<16x32xf32>
    %121 = arith.mulf %108, %120 : vector<16x32xf32>
    %122 = arith.addf %117, %121 : vector<16x32xf32>
    %123 = math.tanh %122 : vector<16x32xf32>
    %cst_25 = arith.constant 1.000000e+00 : f32
    %124 = vector.broadcast %cst_25 : f32 to vector<16x32xf32>
    %125 = arith.subf %124, %116 : vector<16x32xf32>
    %126 = arith.mulf %125, %123 : vector<16x32xf32>
    %127 = arith.mulf %116, %98 : vector<16x32xf32>
    %128 = arith.addf %126, %127 : vector<16x32xf32>
    %129 = vector.extract_strided_slice %7 {offsets = [64, 0], sizes = [16, 96], strides = [1, 1]} : vector<128x96xf32> to vector<16x96xf32>
    %cst_26 = arith.constant dense<0.000000e+00> : vector<16x96xf32>
    %130 = tpu.matmul %128, %1, %cst_26 {dimension_numbers = #tpu.dot_dimension_numbers<[1], [0], [0], [1], [0, 0, 1, 1], [], []>} : vector<16x32xf32>, vector<32x96xf32>, vector<16x96xf32> -> vector<16x96xf32>
    %131 = vector.extract_strided_slice %129 {offsets = [0, 0], sizes = [16, 32], strides = [1, 1]} : vector<16x96xf32> to vector<16x32xf32>
    %132 = vector.extract_strided_slice %130 {offsets = [0, 0], sizes = [16, 32], strides = [1, 1]} : vector<16x96xf32> to vector<16x32xf32>
    %133 = arith.addf %131, %132 : vector<16x32xf32>
    %134 = arith.negf %133 : vector<16x32xf32>
    %135 = math.exp %134 : vector<16x32xf32>
    %cst_27 = arith.constant 1.000000e+00 : f32
    %136 = vector.broadcast %cst_27 : f32 to vector<16x32xf32>
    %137 = arith.addf %136, %135 : vector<16x32xf32>
    %138 = arith.divf %136, %137 : vector<16x32xf32>
    %139 = vector.extract_strided_slice %129 {offsets = [0, 32], sizes = [16, 32], strides = [1, 1]} : vector<16x96xf32> to vector<16x32xf32>
    %140 = vector.extract_strided_slice %130 {offsets = [0, 32], sizes = [16, 32], strides = [1, 1]} : vector<16x96xf32> to vector<16x32xf32>
    %141 = arith.addf %139, %140 : vector<16x32xf32>
    %142 = arith.negf %141 : vector<16x32xf32>
    %143 = math.exp %142 : vector<16x32xf32>
    %cst_28 = arith.constant 1.000000e+00 : f32
    %144 = vector.broadcast %cst_28 : f32 to vector<16x32xf32>
    %145 = arith.addf %144, %143 : vector<16x32xf32>
    %146 = arith.divf %144, %145 : vector<16x32xf32>
    %147 = vector.extract_strided_slice %129 {offsets = [0, 64], sizes = [16, 32], strides = [1, 1]} : vector<16x96xf32> to vector<16x32xf32>
    %148 = vector.extract_strided_slice %130 {offsets = [0, 64], sizes = [16, 32], strides = [1, 1]} : vector<16x96xf32> to vector<16x32xf32>
    %149 = vector.broadcast %3 : vector<1x32xf32> to vector<16x32xf32>
    %150 = arith.addf %148, %149 : vector<16x32xf32>
    %151 = arith.mulf %138, %150 : vector<16x32xf32>
    %152 = arith.addf %147, %151 : vector<16x32xf32>
    %153 = math.tanh %152 : vector<16x32xf32>
    %cst_29 = arith.constant 1.000000e+00 : f32
    %154 = vector.broadcast %cst_29 : f32 to vector<16x32xf32>
    %155 = arith.subf %154, %146 : vector<16x32xf32>
    %156 = arith.mulf %155, %153 : vector<16x32xf32>
    %157 = arith.mulf %146, %128 : vector<16x32xf32>
    %158 = arith.addf %156, %157 : vector<16x32xf32>
    %159 = vector.extract_strided_slice %7 {offsets = [80, 0], sizes = [16, 96], strides = [1, 1]} : vector<128x96xf32> to vector<16x96xf32>
    %cst_30 = arith.constant dense<0.000000e+00> : vector<16x96xf32>
    %160 = tpu.matmul %158, %1, %cst_30 {dimension_numbers = #tpu.dot_dimension_numbers<[1], [0], [0], [1], [0, 0, 1, 1], [], []>} : vector<16x32xf32>, vector<32x96xf32>, vector<16x96xf32> -> vector<16x96xf32>
    %161 = vector.extract_strided_slice %159 {offsets = [0, 0], sizes = [16, 32], strides = [1, 1]} : vector<16x96xf32> to vector<16x32xf32>
    %162 = vector.extract_strided_slice %160 {offsets = [0, 0], sizes = [16, 32], strides = [1, 1]} : vector<16x96xf32> to vector<16x32xf32>
    %163 = arith.addf %161, %162 : vector<16x32xf32>
    %164 = arith.negf %163 : vector<16x32xf32>
    %165 = math.exp %164 : vector<16x32xf32>
    %cst_31 = arith.constant 1.000000e+00 : f32
    %166 = vector.broadcast %cst_31 : f32 to vector<16x32xf32>
    %167 = arith.addf %166, %165 : vector<16x32xf32>
    %168 = arith.divf %166, %167 : vector<16x32xf32>
    %169 = vector.extract_strided_slice %159 {offsets = [0, 32], sizes = [16, 32], strides = [1, 1]} : vector<16x96xf32> to vector<16x32xf32>
    %170 = vector.extract_strided_slice %160 {offsets = [0, 32], sizes = [16, 32], strides = [1, 1]} : vector<16x96xf32> to vector<16x32xf32>
    %171 = arith.addf %169, %170 : vector<16x32xf32>
    %172 = arith.negf %171 : vector<16x32xf32>
    %173 = math.exp %172 : vector<16x32xf32>
    %cst_32 = arith.constant 1.000000e+00 : f32
    %174 = vector.broadcast %cst_32 : f32 to vector<16x32xf32>
    %175 = arith.addf %174, %173 : vector<16x32xf32>
    %176 = arith.divf %174, %175 : vector<16x32xf32>
    %177 = vector.extract_strided_slice %159 {offsets = [0, 64], sizes = [16, 32], strides = [1, 1]} : vector<16x96xf32> to vector<16x32xf32>
    %178 = vector.extract_strided_slice %160 {offsets = [0, 64], sizes = [16, 32], strides = [1, 1]} : vector<16x96xf32> to vector<16x32xf32>
    %179 = vector.broadcast %3 : vector<1x32xf32> to vector<16x32xf32>
    %180 = arith.addf %178, %179 : vector<16x32xf32>
    %181 = arith.mulf %168, %180 : vector<16x32xf32>
    %182 = arith.addf %177, %181 : vector<16x32xf32>
    %183 = math.tanh %182 : vector<16x32xf32>
    %cst_33 = arith.constant 1.000000e+00 : f32
    %184 = vector.broadcast %cst_33 : f32 to vector<16x32xf32>
    %185 = arith.subf %184, %176 : vector<16x32xf32>
    %186 = arith.mulf %185, %183 : vector<16x32xf32>
    %187 = arith.mulf %176, %158 : vector<16x32xf32>
    %188 = arith.addf %186, %187 : vector<16x32xf32>
    %189 = vector.extract_strided_slice %7 {offsets = [96, 0], sizes = [16, 96], strides = [1, 1]} : vector<128x96xf32> to vector<16x96xf32>
    %cst_34 = arith.constant dense<0.000000e+00> : vector<16x96xf32>
    %190 = tpu.matmul %188, %1, %cst_34 {dimension_numbers = #tpu.dot_dimension_numbers<[1], [0], [0], [1], [0, 0, 1, 1], [], []>} : vector<16x32xf32>, vector<32x96xf32>, vector<16x96xf32> -> vector<16x96xf32>
    %191 = vector.extract_strided_slice %189 {offsets = [0, 0], sizes = [16, 32], strides = [1, 1]} : vector<16x96xf32> to vector<16x32xf32>
    %192 = vector.extract_strided_slice %190 {offsets = [0, 0], sizes = [16, 32], strides = [1, 1]} : vector<16x96xf32> to vector<16x32xf32>
    %193 = arith.addf %191, %192 : vector<16x32xf32>
    %194 = arith.negf %193 : vector<16x32xf32>
    %195 = math.exp %194 : vector<16x32xf32>
    %cst_35 = arith.constant 1.000000e+00 : f32
    %196 = vector.broadcast %cst_35 : f32 to vector<16x32xf32>
    %197 = arith.addf %196, %195 : vector<16x32xf32>
    %198 = arith.divf %196, %197 : vector<16x32xf32>
    %199 = vector.extract_strided_slice %189 {offsets = [0, 32], sizes = [16, 32], strides = [1, 1]} : vector<16x96xf32> to vector<16x32xf32>
    %200 = vector.extract_strided_slice %190 {offsets = [0, 32], sizes = [16, 32], strides = [1, 1]} : vector<16x96xf32> to vector<16x32xf32>
    %201 = arith.addf %199, %200 : vector<16x32xf32>
    %202 = arith.negf %201 : vector<16x32xf32>
    %203 = math.exp %202 : vector<16x32xf32>
    %cst_36 = arith.constant 1.000000e+00 : f32
    %204 = vector.broadcast %cst_36 : f32 to vector<16x32xf32>
    %205 = arith.addf %204, %203 : vector<16x32xf32>
    %206 = arith.divf %204, %205 : vector<16x32xf32>
    %207 = vector.extract_strided_slice %189 {offsets = [0, 64], sizes = [16, 32], strides = [1, 1]} : vector<16x96xf32> to vector<16x32xf32>
    %208 = vector.extract_strided_slice %190 {offsets = [0, 64], sizes = [16, 32], strides = [1, 1]} : vector<16x96xf32> to vector<16x32xf32>
    %209 = vector.broadcast %3 : vector<1x32xf32> to vector<16x32xf32>
    %210 = arith.addf %208, %209 : vector<16x32xf32>
    %211 = arith.mulf %198, %210 : vector<16x32xf32>
    %212 = arith.addf %207, %211 : vector<16x32xf32>
    %213 = math.tanh %212 : vector<16x32xf32>
    %cst_37 = arith.constant 1.000000e+00 : f32
    %214 = vector.broadcast %cst_37 : f32 to vector<16x32xf32>
    %215 = arith.subf %214, %206 : vector<16x32xf32>
    %216 = arith.mulf %215, %213 : vector<16x32xf32>
    %217 = arith.mulf %206, %188 : vector<16x32xf32>
    %218 = arith.addf %216, %217 : vector<16x32xf32>
    %219 = vector.extract_strided_slice %7 {offsets = [112, 0], sizes = [16, 96], strides = [1, 1]} : vector<128x96xf32> to vector<16x96xf32>
    %cst_38 = arith.constant dense<0.000000e+00> : vector<16x96xf32>
    %220 = tpu.matmul %218, %1, %cst_38 {dimension_numbers = #tpu.dot_dimension_numbers<[1], [0], [0], [1], [0, 0, 1, 1], [], []>} : vector<16x32xf32>, vector<32x96xf32>, vector<16x96xf32> -> vector<16x96xf32>
    %221 = vector.extract_strided_slice %219 {offsets = [0, 0], sizes = [16, 32], strides = [1, 1]} : vector<16x96xf32> to vector<16x32xf32>
    %222 = vector.extract_strided_slice %220 {offsets = [0, 0], sizes = [16, 32], strides = [1, 1]} : vector<16x96xf32> to vector<16x32xf32>
    %223 = arith.addf %221, %222 : vector<16x32xf32>
    %224 = arith.negf %223 : vector<16x32xf32>
    %225 = math.exp %224 : vector<16x32xf32>
    %cst_39 = arith.constant 1.000000e+00 : f32
    %226 = vector.broadcast %cst_39 : f32 to vector<16x32xf32>
    %227 = arith.addf %226, %225 : vector<16x32xf32>
    %228 = arith.divf %226, %227 : vector<16x32xf32>
    %229 = vector.extract_strided_slice %219 {offsets = [0, 32], sizes = [16, 32], strides = [1, 1]} : vector<16x96xf32> to vector<16x32xf32>
    %230 = vector.extract_strided_slice %220 {offsets = [0, 32], sizes = [16, 32], strides = [1, 1]} : vector<16x96xf32> to vector<16x32xf32>
    %231 = arith.addf %229, %230 : vector<16x32xf32>
    %232 = arith.negf %231 : vector<16x32xf32>
    %233 = math.exp %232 : vector<16x32xf32>
    %cst_40 = arith.constant 1.000000e+00 : f32
    %234 = vector.broadcast %cst_40 : f32 to vector<16x32xf32>
    %235 = arith.addf %234, %233 : vector<16x32xf32>
    %236 = arith.divf %234, %235 : vector<16x32xf32>
    %237 = vector.extract_strided_slice %219 {offsets = [0, 64], sizes = [16, 32], strides = [1, 1]} : vector<16x96xf32> to vector<16x32xf32>
    %238 = vector.extract_strided_slice %220 {offsets = [0, 64], sizes = [16, 32], strides = [1, 1]} : vector<16x96xf32> to vector<16x32xf32>
    %239 = vector.broadcast %3 : vector<1x32xf32> to vector<16x32xf32>
    %240 = arith.addf %238, %239 : vector<16x32xf32>
    %241 = arith.mulf %228, %240 : vector<16x32xf32>
    %242 = arith.addf %237, %241 : vector<16x32xf32>
    %243 = math.tanh %242 : vector<16x32xf32>
    %cst_41 = arith.constant 1.000000e+00 : f32
    %244 = vector.broadcast %cst_41 : f32 to vector<16x32xf32>
    %245 = arith.subf %244, %236 : vector<16x32xf32>
    %246 = arith.mulf %245, %243 : vector<16x32xf32>
    %247 = arith.mulf %236, %218 : vector<16x32xf32>
    %248 = arith.addf %246, %247 : vector<16x32xf32>
    %c0_42 = arith.constant 0 : index
    %c0_43 = arith.constant 0 : index
    %249 = vector.load %arg6[%c0_42, %c0_43] : memref<32x96xf32, #tpu.memory_space<vmem>>, vector<32x96xf32>
    %c0_44 = arith.constant 0 : index
    %c0_45 = arith.constant 0 : index
    %250 = vector.load %arg7[%c0_44, %c0_45] : memref<32x96xf32, #tpu.memory_space<vmem>>, vector<32x96xf32>
    %c0_46 = arith.constant 0 : index
    %c0_47 = arith.constant 0 : index
    %251 = vector.load %arg8[%c0_46, %c0_47] : memref<1x96xf32, #tpu.memory_space<vmem>>, vector<1x96xf32>
    %c0_48 = arith.constant 0 : index
    %c0_49 = arith.constant 0 : index
    %252 = vector.load %arg9[%c0_48, %c0_49] : memref<1x32xf32, #tpu.memory_space<vmem>>, vector<1x32xf32>
    %c0_50 = arith.constant 0 : index
    %c0_51 = arith.constant 0 : index
    %253 = vector.load %arg1[%c0_50, %c0_51] : memref<128x32xf32, #tpu.memory_space<vmem>>, vector<128x32xf32>
    %cst_52 = arith.constant dense<0.000000e+00> : vector<128x96xf32>
    %254 = tpu.matmul %253, %249, %cst_52 {dimension_numbers = #tpu.dot_dimension_numbers<[1], [0], [0], [1], [0, 0, 1, 1], [], []>} : vector<128x32xf32>, vector<32x96xf32>, vector<128x96xf32> -> vector<128x96xf32>
    %255 = vector.broadcast %251 : vector<1x96xf32> to vector<128x96xf32>
    %256 = arith.addf %254, %255 : vector<128x96xf32>
    %cst_53 = arith.constant 0.000000e+00 : f32
    %257 = vector.broadcast %cst_53 : f32 to vector<16x32xf32>
    %258 = vector.extract_strided_slice %256 {offsets = [0, 0], sizes = [16, 96], strides = [1, 1]} : vector<128x96xf32> to vector<16x96xf32>
    %cst_54 = arith.constant dense<0.000000e+00> : vector<16x96xf32>
    %259 = tpu.matmul %257, %250, %cst_54 {dimension_numbers = #tpu.dot_dimension_numbers<[1], [0], [0], [1], [0, 0, 1, 1], [], []>} : vector<16x32xf32>, vector<32x96xf32>, vector<16x96xf32> -> vector<16x96xf32>
    %260 = vector.extract_strided_slice %258 {offsets = [0, 0], sizes = [16, 32], strides = [1, 1]} : vector<16x96xf32> to vector<16x32xf32>
    %261 = vector.extract_strided_slice %259 {offsets = [0, 0], sizes = [16, 32], strides = [1, 1]} : vector<16x96xf32> to vector<16x32xf32>
    %262 = arith.addf %260, %261 : vector<16x32xf32>
    %263 = arith.negf %262 : vector<16x32xf32>
    %264 = math.exp %263 : vector<16x32xf32>
    %cst_55 = arith.constant 1.000000e+00 : f32
    %265 = vector.broadcast %cst_55 : f32 to vector<16x32xf32>
    %266 = arith.addf %265, %264 : vector<16x32xf32>
    %267 = arith.divf %265, %266 : vector<16x32xf32>
    %268 = vector.extract_strided_slice %258 {offsets = [0, 32], sizes = [16, 32], strides = [1, 1]} : vector<16x96xf32> to vector<16x32xf32>
    %269 = vector.extract_strided_slice %259 {offsets = [0, 32], sizes = [16, 32], strides = [1, 1]} : vector<16x96xf32> to vector<16x32xf32>
    %270 = arith.addf %268, %269 : vector<16x32xf32>
    %271 = arith.negf %270 : vector<16x32xf32>
    %272 = math.exp %271 : vector<16x32xf32>
    %cst_56 = arith.constant 1.000000e+00 : f32
    %273 = vector.broadcast %cst_56 : f32 to vector<16x32xf32>
    %274 = arith.addf %273, %272 : vector<16x32xf32>
    %275 = arith.divf %273, %274 : vector<16x32xf32>
    %276 = vector.extract_strided_slice %258 {offsets = [0, 64], sizes = [16, 32], strides = [1, 1]} : vector<16x96xf32> to vector<16x32xf32>
    %277 = vector.extract_strided_slice %259 {offsets = [0, 64], sizes = [16, 32], strides = [1, 1]} : vector<16x96xf32> to vector<16x32xf32>
    %278 = vector.broadcast %252 : vector<1x32xf32> to vector<16x32xf32>
    %279 = arith.addf %277, %278 : vector<16x32xf32>
    %280 = arith.mulf %267, %279 : vector<16x32xf32>
    %281 = arith.addf %276, %280 : vector<16x32xf32>
    %282 = math.tanh %281 : vector<16x32xf32>
    %cst_57 = arith.constant 1.000000e+00 : f32
    %283 = vector.broadcast %cst_57 : f32 to vector<16x32xf32>
    %284 = arith.subf %283, %275 : vector<16x32xf32>
    %285 = arith.mulf %284, %282 : vector<16x32xf32>
    %286 = arith.mulf %275, %257 : vector<16x32xf32>
    %287 = arith.addf %285, %286 : vector<16x32xf32>
    %288 = vector.extract_strided_slice %256 {offsets = [16, 0], sizes = [16, 96], strides = [1, 1]} : vector<128x96xf32> to vector<16x96xf32>
    %cst_58 = arith.constant dense<0.000000e+00> : vector<16x96xf32>
    %289 = tpu.matmul %287, %250, %cst_58 {dimension_numbers = #tpu.dot_dimension_numbers<[1], [0], [0], [1], [0, 0, 1, 1], [], []>} : vector<16x32xf32>, vector<32x96xf32>, vector<16x96xf32> -> vector<16x96xf32>
    %290 = vector.extract_strided_slice %288 {offsets = [0, 0], sizes = [16, 32], strides = [1, 1]} : vector<16x96xf32> to vector<16x32xf32>
    %291 = vector.extract_strided_slice %289 {offsets = [0, 0], sizes = [16, 32], strides = [1, 1]} : vector<16x96xf32> to vector<16x32xf32>
    %292 = arith.addf %290, %291 : vector<16x32xf32>
    %293 = arith.negf %292 : vector<16x32xf32>
    %294 = math.exp %293 : vector<16x32xf32>
    %cst_59 = arith.constant 1.000000e+00 : f32
    %295 = vector.broadcast %cst_59 : f32 to vector<16x32xf32>
    %296 = arith.addf %295, %294 : vector<16x32xf32>
    %297 = arith.divf %295, %296 : vector<16x32xf32>
    %298 = vector.extract_strided_slice %288 {offsets = [0, 32], sizes = [16, 32], strides = [1, 1]} : vector<16x96xf32> to vector<16x32xf32>
    %299 = vector.extract_strided_slice %289 {offsets = [0, 32], sizes = [16, 32], strides = [1, 1]} : vector<16x96xf32> to vector<16x32xf32>
    %300 = arith.addf %298, %299 : vector<16x32xf32>
    %301 = arith.negf %300 : vector<16x32xf32>
    %302 = math.exp %301 : vector<16x32xf32>
    %cst_60 = arith.constant 1.000000e+00 : f32
    %303 = vector.broadcast %cst_60 : f32 to vector<16x32xf32>
    %304 = arith.addf %303, %302 : vector<16x32xf32>
    %305 = arith.divf %303, %304 : vector<16x32xf32>
    %306 = vector.extract_strided_slice %288 {offsets = [0, 64], sizes = [16, 32], strides = [1, 1]} : vector<16x96xf32> to vector<16x32xf32>
    %307 = vector.extract_strided_slice %289 {offsets = [0, 64], sizes = [16, 32], strides = [1, 1]} : vector<16x96xf32> to vector<16x32xf32>
    %308 = vector.broadcast %252 : vector<1x32xf32> to vector<16x32xf32>
    %309 = arith.addf %307, %308 : vector<16x32xf32>
    %310 = arith.mulf %297, %309 : vector<16x32xf32>
    %311 = arith.addf %306, %310 : vector<16x32xf32>
    %312 = math.tanh %311 : vector<16x32xf32>
    %cst_61 = arith.constant 1.000000e+00 : f32
    %313 = vector.broadcast %cst_61 : f32 to vector<16x32xf32>
    %314 = arith.subf %313, %305 : vector<16x32xf32>
    %315 = arith.mulf %314, %312 : vector<16x32xf32>
    %316 = arith.mulf %305, %287 : vector<16x32xf32>
    %317 = arith.addf %315, %316 : vector<16x32xf32>
    %318 = vector.extract_strided_slice %256 {offsets = [32, 0], sizes = [16, 96], strides = [1, 1]} : vector<128x96xf32> to vector<16x96xf32>
    %cst_62 = arith.constant dense<0.000000e+00> : vector<16x96xf32>
    %319 = tpu.matmul %317, %250, %cst_62 {dimension_numbers = #tpu.dot_dimension_numbers<[1], [0], [0], [1], [0, 0, 1, 1], [], []>} : vector<16x32xf32>, vector<32x96xf32>, vector<16x96xf32> -> vector<16x96xf32>
    %320 = vector.extract_strided_slice %318 {offsets = [0, 0], sizes = [16, 32], strides = [1, 1]} : vector<16x96xf32> to vector<16x32xf32>
    %321 = vector.extract_strided_slice %319 {offsets = [0, 0], sizes = [16, 32], strides = [1, 1]} : vector<16x96xf32> to vector<16x32xf32>
    %322 = arith.addf %320, %321 : vector<16x32xf32>
    %323 = arith.negf %322 : vector<16x32xf32>
    %324 = math.exp %323 : vector<16x32xf32>
    %cst_63 = arith.constant 1.000000e+00 : f32
    %325 = vector.broadcast %cst_63 : f32 to vector<16x32xf32>
    %326 = arith.addf %325, %324 : vector<16x32xf32>
    %327 = arith.divf %325, %326 : vector<16x32xf32>
    %328 = vector.extract_strided_slice %318 {offsets = [0, 32], sizes = [16, 32], strides = [1, 1]} : vector<16x96xf32> to vector<16x32xf32>
    %329 = vector.extract_strided_slice %319 {offsets = [0, 32], sizes = [16, 32], strides = [1, 1]} : vector<16x96xf32> to vector<16x32xf32>
    %330 = arith.addf %328, %329 : vector<16x32xf32>
    %331 = arith.negf %330 : vector<16x32xf32>
    %332 = math.exp %331 : vector<16x32xf32>
    %cst_64 = arith.constant 1.000000e+00 : f32
    %333 = vector.broadcast %cst_64 : f32 to vector<16x32xf32>
    %334 = arith.addf %333, %332 : vector<16x32xf32>
    %335 = arith.divf %333, %334 : vector<16x32xf32>
    %336 = vector.extract_strided_slice %318 {offsets = [0, 64], sizes = [16, 32], strides = [1, 1]} : vector<16x96xf32> to vector<16x32xf32>
    %337 = vector.extract_strided_slice %319 {offsets = [0, 64], sizes = [16, 32], strides = [1, 1]} : vector<16x96xf32> to vector<16x32xf32>
    %338 = vector.broadcast %252 : vector<1x32xf32> to vector<16x32xf32>
    %339 = arith.addf %337, %338 : vector<16x32xf32>
    %340 = arith.mulf %327, %339 : vector<16x32xf32>
    %341 = arith.addf %336, %340 : vector<16x32xf32>
    %342 = math.tanh %341 : vector<16x32xf32>
    %cst_65 = arith.constant 1.000000e+00 : f32
    %343 = vector.broadcast %cst_65 : f32 to vector<16x32xf32>
    %344 = arith.subf %343, %335 : vector<16x32xf32>
    %345 = arith.mulf %344, %342 : vector<16x32xf32>
    %346 = arith.mulf %335, %317 : vector<16x32xf32>
    %347 = arith.addf %345, %346 : vector<16x32xf32>
    %348 = vector.extract_strided_slice %256 {offsets = [48, 0], sizes = [16, 96], strides = [1, 1]} : vector<128x96xf32> to vector<16x96xf32>
    %cst_66 = arith.constant dense<0.000000e+00> : vector<16x96xf32>
    %349 = tpu.matmul %347, %250, %cst_66 {dimension_numbers = #tpu.dot_dimension_numbers<[1], [0], [0], [1], [0, 0, 1, 1], [], []>} : vector<16x32xf32>, vector<32x96xf32>, vector<16x96xf32> -> vector<16x96xf32>
    %350 = vector.extract_strided_slice %348 {offsets = [0, 0], sizes = [16, 32], strides = [1, 1]} : vector<16x96xf32> to vector<16x32xf32>
    %351 = vector.extract_strided_slice %349 {offsets = [0, 0], sizes = [16, 32], strides = [1, 1]} : vector<16x96xf32> to vector<16x32xf32>
    %352 = arith.addf %350, %351 : vector<16x32xf32>
    %353 = arith.negf %352 : vector<16x32xf32>
    %354 = math.exp %353 : vector<16x32xf32>
    %cst_67 = arith.constant 1.000000e+00 : f32
    %355 = vector.broadcast %cst_67 : f32 to vector<16x32xf32>
    %356 = arith.addf %355, %354 : vector<16x32xf32>
    %357 = arith.divf %355, %356 : vector<16x32xf32>
    %358 = vector.extract_strided_slice %348 {offsets = [0, 32], sizes = [16, 32], strides = [1, 1]} : vector<16x96xf32> to vector<16x32xf32>
    %359 = vector.extract_strided_slice %349 {offsets = [0, 32], sizes = [16, 32], strides = [1, 1]} : vector<16x96xf32> to vector<16x32xf32>
    %360 = arith.addf %358, %359 : vector<16x32xf32>
    %361 = arith.negf %360 : vector<16x32xf32>
    %362 = math.exp %361 : vector<16x32xf32>
    %cst_68 = arith.constant 1.000000e+00 : f32
    %363 = vector.broadcast %cst_68 : f32 to vector<16x32xf32>
    %364 = arith.addf %363, %362 : vector<16x32xf32>
    %365 = arith.divf %363, %364 : vector<16x32xf32>
    %366 = vector.extract_strided_slice %348 {offsets = [0, 64], sizes = [16, 32], strides = [1, 1]} : vector<16x96xf32> to vector<16x32xf32>
    %367 = vector.extract_strided_slice %349 {offsets = [0, 64], sizes = [16, 32], strides = [1, 1]} : vector<16x96xf32> to vector<16x32xf32>
    %368 = vector.broadcast %252 : vector<1x32xf32> to vector<16x32xf32>
    %369 = arith.addf %367, %368 : vector<16x32xf32>
    %370 = arith.mulf %357, %369 : vector<16x32xf32>
    %371 = arith.addf %366, %370 : vector<16x32xf32>
    %372 = math.tanh %371 : vector<16x32xf32>
    %cst_69 = arith.constant 1.000000e+00 : f32
    %373 = vector.broadcast %cst_69 : f32 to vector<16x32xf32>
    %374 = arith.subf %373, %365 : vector<16x32xf32>
    %375 = arith.mulf %374, %372 : vector<16x32xf32>
    %376 = arith.mulf %365, %347 : vector<16x32xf32>
    %377 = arith.addf %375, %376 : vector<16x32xf32>
    %378 = vector.extract_strided_slice %256 {offsets = [64, 0], sizes = [16, 96], strides = [1, 1]} : vector<128x96xf32> to vector<16x96xf32>
    %cst_70 = arith.constant dense<0.000000e+00> : vector<16x96xf32>
    %379 = tpu.matmul %377, %250, %cst_70 {dimension_numbers = #tpu.dot_dimension_numbers<[1], [0], [0], [1], [0, 0, 1, 1], [], []>} : vector<16x32xf32>, vector<32x96xf32>, vector<16x96xf32> -> vector<16x96xf32>
    %380 = vector.extract_strided_slice %378 {offsets = [0, 0], sizes = [16, 32], strides = [1, 1]} : vector<16x96xf32> to vector<16x32xf32>
    %381 = vector.extract_strided_slice %379 {offsets = [0, 0], sizes = [16, 32], strides = [1, 1]} : vector<16x96xf32> to vector<16x32xf32>
    %382 = arith.addf %380, %381 : vector<16x32xf32>
    %383 = arith.negf %382 : vector<16x32xf32>
    %384 = math.exp %383 : vector<16x32xf32>
    %cst_71 = arith.constant 1.000000e+00 : f32
    %385 = vector.broadcast %cst_71 : f32 to vector<16x32xf32>
    %386 = arith.addf %385, %384 : vector<16x32xf32>
    %387 = arith.divf %385, %386 : vector<16x32xf32>
    %388 = vector.extract_strided_slice %378 {offsets = [0, 32], sizes = [16, 32], strides = [1, 1]} : vector<16x96xf32> to vector<16x32xf32>
    %389 = vector.extract_strided_slice %379 {offsets = [0, 32], sizes = [16, 32], strides = [1, 1]} : vector<16x96xf32> to vector<16x32xf32>
    %390 = arith.addf %388, %389 : vector<16x32xf32>
    %391 = arith.negf %390 : vector<16x32xf32>
    %392 = math.exp %391 : vector<16x32xf32>
    %cst_72 = arith.constant 1.000000e+00 : f32
    %393 = vector.broadcast %cst_72 : f32 to vector<16x32xf32>
    %394 = arith.addf %393, %392 : vector<16x32xf32>
    %395 = arith.divf %393, %394 : vector<16x32xf32>
    %396 = vector.extract_strided_slice %378 {offsets = [0, 64], sizes = [16, 32], strides = [1, 1]} : vector<16x96xf32> to vector<16x32xf32>
    %397 = vector.extract_strided_slice %379 {offsets = [0, 64], sizes = [16, 32], strides = [1, 1]} : vector<16x96xf32> to vector<16x32xf32>
    %398 = vector.broadcast %252 : vector<1x32xf32> to vector<16x32xf32>
    %399 = arith.addf %397, %398 : vector<16x32xf32>
    %400 = arith.mulf %387, %399 : vector<16x32xf32>
    %401 = arith.addf %396, %400 : vector<16x32xf32>
    %402 = math.tanh %401 : vector<16x32xf32>
    %cst_73 = arith.constant 1.000000e+00 : f32
    %403 = vector.broadcast %cst_73 : f32 to vector<16x32xf32>
    %404 = arith.subf %403, %395 : vector<16x32xf32>
    %405 = arith.mulf %404, %402 : vector<16x32xf32>
    %406 = arith.mulf %395, %377 : vector<16x32xf32>
    %407 = arith.addf %405, %406 : vector<16x32xf32>
    %408 = vector.extract_strided_slice %256 {offsets = [80, 0], sizes = [16, 96], strides = [1, 1]} : vector<128x96xf32> to vector<16x96xf32>
    %cst_74 = arith.constant dense<0.000000e+00> : vector<16x96xf32>
    %409 = tpu.matmul %407, %250, %cst_74 {dimension_numbers = #tpu.dot_dimension_numbers<[1], [0], [0], [1], [0, 0, 1, 1], [], []>} : vector<16x32xf32>, vector<32x96xf32>, vector<16x96xf32> -> vector<16x96xf32>
    %410 = vector.extract_strided_slice %408 {offsets = [0, 0], sizes = [16, 32], strides = [1, 1]} : vector<16x96xf32> to vector<16x32xf32>
    %411 = vector.extract_strided_slice %409 {offsets = [0, 0], sizes = [16, 32], strides = [1, 1]} : vector<16x96xf32> to vector<16x32xf32>
    %412 = arith.addf %410, %411 : vector<16x32xf32>
    %413 = arith.negf %412 : vector<16x32xf32>
    %414 = math.exp %413 : vector<16x32xf32>
    %cst_75 = arith.constant 1.000000e+00 : f32
    %415 = vector.broadcast %cst_75 : f32 to vector<16x32xf32>
    %416 = arith.addf %415, %414 : vector<16x32xf32>
    %417 = arith.divf %415, %416 : vector<16x32xf32>
    %418 = vector.extract_strided_slice %408 {offsets = [0, 32], sizes = [16, 32], strides = [1, 1]} : vector<16x96xf32> to vector<16x32xf32>
    %419 = vector.extract_strided_slice %409 {offsets = [0, 32], sizes = [16, 32], strides = [1, 1]} : vector<16x96xf32> to vector<16x32xf32>
    %420 = arith.addf %418, %419 : vector<16x32xf32>
    %421 = arith.negf %420 : vector<16x32xf32>
    %422 = math.exp %421 : vector<16x32xf32>
    %cst_76 = arith.constant 1.000000e+00 : f32
    %423 = vector.broadcast %cst_76 : f32 to vector<16x32xf32>
    %424 = arith.addf %423, %422 : vector<16x32xf32>
    %425 = arith.divf %423, %424 : vector<16x32xf32>
    %426 = vector.extract_strided_slice %408 {offsets = [0, 64], sizes = [16, 32], strides = [1, 1]} : vector<16x96xf32> to vector<16x32xf32>
    %427 = vector.extract_strided_slice %409 {offsets = [0, 64], sizes = [16, 32], strides = [1, 1]} : vector<16x96xf32> to vector<16x32xf32>
    %428 = vector.broadcast %252 : vector<1x32xf32> to vector<16x32xf32>
    %429 = arith.addf %427, %428 : vector<16x32xf32>
    %430 = arith.mulf %417, %429 : vector<16x32xf32>
    %431 = arith.addf %426, %430 : vector<16x32xf32>
    %432 = math.tanh %431 : vector<16x32xf32>
    %cst_77 = arith.constant 1.000000e+00 : f32
    %433 = vector.broadcast %cst_77 : f32 to vector<16x32xf32>
    %434 = arith.subf %433, %425 : vector<16x32xf32>
    %435 = arith.mulf %434, %432 : vector<16x32xf32>
    %436 = arith.mulf %425, %407 : vector<16x32xf32>
    %437 = arith.addf %435, %436 : vector<16x32xf32>
    %438 = vector.extract_strided_slice %256 {offsets = [96, 0], sizes = [16, 96], strides = [1, 1]} : vector<128x96xf32> to vector<16x96xf32>
    %cst_78 = arith.constant dense<0.000000e+00> : vector<16x96xf32>
    %439 = tpu.matmul %437, %250, %cst_78 {dimension_numbers = #tpu.dot_dimension_numbers<[1], [0], [0], [1], [0, 0, 1, 1], [], []>} : vector<16x32xf32>, vector<32x96xf32>, vector<16x96xf32> -> vector<16x96xf32>
    %440 = vector.extract_strided_slice %438 {offsets = [0, 0], sizes = [16, 32], strides = [1, 1]} : vector<16x96xf32> to vector<16x32xf32>
    %441 = vector.extract_strided_slice %439 {offsets = [0, 0], sizes = [16, 32], strides = [1, 1]} : vector<16x96xf32> to vector<16x32xf32>
    %442 = arith.addf %440, %441 : vector<16x32xf32>
    %443 = arith.negf %442 : vector<16x32xf32>
    %444 = math.exp %443 : vector<16x32xf32>
    %cst_79 = arith.constant 1.000000e+00 : f32
    %445 = vector.broadcast %cst_79 : f32 to vector<16x32xf32>
    %446 = arith.addf %445, %444 : vector<16x32xf32>
    %447 = arith.divf %445, %446 : vector<16x32xf32>
    %448 = vector.extract_strided_slice %438 {offsets = [0, 32], sizes = [16, 32], strides = [1, 1]} : vector<16x96xf32> to vector<16x32xf32>
    %449 = vector.extract_strided_slice %439 {offsets = [0, 32], sizes = [16, 32], strides = [1, 1]} : vector<16x96xf32> to vector<16x32xf32>
    %450 = arith.addf %448, %449 : vector<16x32xf32>
    %451 = arith.negf %450 : vector<16x32xf32>
    %452 = math.exp %451 : vector<16x32xf32>
    %cst_80 = arith.constant 1.000000e+00 : f32
    %453 = vector.broadcast %cst_80 : f32 to vector<16x32xf32>
    %454 = arith.addf %453, %452 : vector<16x32xf32>
    %455 = arith.divf %453, %454 : vector<16x32xf32>
    %456 = vector.extract_strided_slice %438 {offsets = [0, 64], sizes = [16, 32], strides = [1, 1]} : vector<16x96xf32> to vector<16x32xf32>
    %457 = vector.extract_strided_slice %439 {offsets = [0, 64], sizes = [16, 32], strides = [1, 1]} : vector<16x96xf32> to vector<16x32xf32>
    %458 = vector.broadcast %252 : vector<1x32xf32> to vector<16x32xf32>
    %459 = arith.addf %457, %458 : vector<16x32xf32>
    %460 = arith.mulf %447, %459 : vector<16x32xf32>
    %461 = arith.addf %456, %460 : vector<16x32xf32>
    %462 = math.tanh %461 : vector<16x32xf32>
    %cst_81 = arith.constant 1.000000e+00 : f32
    %463 = vector.broadcast %cst_81 : f32 to vector<16x32xf32>
    %464 = arith.subf %463, %455 : vector<16x32xf32>
    %465 = arith.mulf %464, %462 : vector<16x32xf32>
    %466 = arith.mulf %455, %437 : vector<16x32xf32>
    %467 = arith.addf %465, %466 : vector<16x32xf32>
    %468 = vector.extract_strided_slice %256 {offsets = [112, 0], sizes = [16, 96], strides = [1, 1]} : vector<128x96xf32> to vector<16x96xf32>
    %cst_82 = arith.constant dense<0.000000e+00> : vector<16x96xf32>
    %469 = tpu.matmul %467, %250, %cst_82 {dimension_numbers = #tpu.dot_dimension_numbers<[1], [0], [0], [1], [0, 0, 1, 1], [], []>} : vector<16x32xf32>, vector<32x96xf32>, vector<16x96xf32> -> vector<16x96xf32>
    %470 = vector.extract_strided_slice %468 {offsets = [0, 0], sizes = [16, 32], strides = [1, 1]} : vector<16x96xf32> to vector<16x32xf32>
    %471 = vector.extract_strided_slice %469 {offsets = [0, 0], sizes = [16, 32], strides = [1, 1]} : vector<16x96xf32> to vector<16x32xf32>
    %472 = arith.addf %470, %471 : vector<16x32xf32>
    %473 = arith.negf %472 : vector<16x32xf32>
    %474 = math.exp %473 : vector<16x32xf32>
    %cst_83 = arith.constant 1.000000e+00 : f32
    %475 = vector.broadcast %cst_83 : f32 to vector<16x32xf32>
    %476 = arith.addf %475, %474 : vector<16x32xf32>
    %477 = arith.divf %475, %476 : vector<16x32xf32>
    %478 = vector.extract_strided_slice %468 {offsets = [0, 32], sizes = [16, 32], strides = [1, 1]} : vector<16x96xf32> to vector<16x32xf32>
    %479 = vector.extract_strided_slice %469 {offsets = [0, 32], sizes = [16, 32], strides = [1, 1]} : vector<16x96xf32> to vector<16x32xf32>
    %480 = arith.addf %478, %479 : vector<16x32xf32>
    %481 = arith.negf %480 : vector<16x32xf32>
    %482 = math.exp %481 : vector<16x32xf32>
    %cst_84 = arith.constant 1.000000e+00 : f32
    %483 = vector.broadcast %cst_84 : f32 to vector<16x32xf32>
    %484 = arith.addf %483, %482 : vector<16x32xf32>
    %485 = arith.divf %483, %484 : vector<16x32xf32>
    %486 = vector.extract_strided_slice %468 {offsets = [0, 64], sizes = [16, 32], strides = [1, 1]} : vector<16x96xf32> to vector<16x32xf32>
    %487 = vector.extract_strided_slice %469 {offsets = [0, 64], sizes = [16, 32], strides = [1, 1]} : vector<16x96xf32> to vector<16x32xf32>
    %488 = vector.broadcast %252 : vector<1x32xf32> to vector<16x32xf32>
    %489 = arith.addf %487, %488 : vector<16x32xf32>
    %490 = arith.mulf %477, %489 : vector<16x32xf32>
    %491 = arith.addf %486, %490 : vector<16x32xf32>
    %492 = math.tanh %491 : vector<16x32xf32>
    %cst_85 = arith.constant 1.000000e+00 : f32
    %493 = vector.broadcast %cst_85 : f32 to vector<16x32xf32>
    %494 = arith.subf %493, %485 : vector<16x32xf32>
    %495 = arith.mulf %494, %492 : vector<16x32xf32>
    %496 = arith.mulf %485, %467 : vector<16x32xf32>
    %497 = arith.addf %495, %496 : vector<16x32xf32>
    %498 = vector.extract_strided_slice %248 {offsets = [0, 0], sizes = [8, 32], strides = [1, 1]} : vector<16x32xf32> to vector<8x32xf32>
    %499 = vector.extract_strided_slice %248 {offsets = [8, 0], sizes = [8, 32], strides = [1, 1]} : vector<16x32xf32> to vector<8x32xf32>
    %500 = vector.extract_strided_slice %497 {offsets = [0, 0], sizes = [8, 32], strides = [1, 1]} : vector<16x32xf32> to vector<8x32xf32>
    %501 = vector.extract_strided_slice %497 {offsets = [8, 0], sizes = [8, 32], strides = [1, 1]} : vector<16x32xf32> to vector<8x32xf32>
    %502 = arith.subf %498, %499 : vector<8x32xf32>
    %503 = math.absf %502 : vector<8x32xf32>
    %504 = arith.mulf %498, %499 : vector<8x32xf32>
    %505 = arith.subf %500, %501 : vector<8x32xf32>
    %506 = math.absf %505 : vector<8x32xf32>
    %507 = arith.mulf %500, %501 : vector<8x32xf32>
    %508 = tpu.concatenate %498, %499, %503, %504, %500, %501, %506, %507 in 1 : vector<8x32xf32>, vector<8x32xf32>, vector<8x32xf32>, vector<8x32xf32>, vector<8x32xf32>, vector<8x32xf32>, vector<8x32xf32>, vector<8x32xf32> -> vector<8x256xf32>
    %c0_86 = arith.constant 0 : index
    %c0_87 = arith.constant 0 : index
    %509 = vector.load %arg10[%c0_86, %c0_87] : memref<256x64xf32, #tpu.memory_space<vmem>>, vector<256x64xf32>
    %cst_88 = arith.constant dense<0.000000e+00> : vector<8x64xf32>
    %510 = tpu.matmul %508, %509, %cst_88 {dimension_numbers = #tpu.dot_dimension_numbers<[1], [0], [0], [1], [0, 0, 1, 1], [], []>} : vector<8x256xf32>, vector<256x64xf32>, vector<8x64xf32> -> vector<8x64xf32>
    %c0_89 = arith.constant 0 : index
    %c0_90 = arith.constant 0 : index
    %511 = vector.load %arg11[%c0_89, %c0_90] : memref<1x64xf32, #tpu.memory_space<vmem>>, vector<1x64xf32>
    %512 = vector.broadcast %511 : vector<1x64xf32> to vector<8x64xf32>
    %513 = arith.addf %510, %512 : vector<8x64xf32>
    %cst_91 = arith.constant 0.000000e+00 : f32
    %514 = vector.broadcast %cst_91 : f32 to vector<8x64xf32>
    %515 = arith.maximumf %513, %514 : vector<8x64xf32>
    %c0_92 = arith.constant 0 : index
    %c0_93 = arith.constant 0 : index
    %516 = vector.load %arg12[%c0_92, %c0_93] : memref<64x1xf32, #tpu.memory_space<vmem>>, vector<64x1xf32>
    %cst_94 = arith.constant dense<0.000000e+00> : vector<8x1xf32>
    %517 = tpu.matmul %515, %516, %cst_94 {dimension_numbers = #tpu.dot_dimension_numbers<[1], [0], [0], [1], [0, 0, 1, 1], [], []>} : vector<8x64xf32>, vector<64x1xf32>, vector<8x1xf32> -> vector<8x1xf32>
    %c0_95 = arith.constant 0 : index
    %c0_96 = arith.constant 0 : index
    %518 = vector.load %arg13[%c0_95, %c0_96] : memref<1x1xf32, #tpu.memory_space<vmem>>, vector<1x1xf32>
    %519 = vector.broadcast %518 : vector<1x1xf32> to vector<8x1xf32>
    %520 = arith.addf %517, %519 : vector<8x1xf32>
    %521 = arith.negf %520 : vector<8x1xf32>
    %522 = math.exp %521 : vector<8x1xf32>
    %cst_97 = arith.constant 1.000000e+00 : f32
    %523 = vector.broadcast %cst_97 : f32 to vector<8x1xf32>
    %524 = arith.addf %523, %522 : vector<8x1xf32>
    %525 = arith.divf %523, %524 : vector<8x1xf32>
    %c0_98 = arith.constant 0 : index
    %c0_99 = arith.constant 0 : index
    %526 = vector.load %arg14[%c0_98, %c0_99] : memref<8x1xf32, #tpu.memory_space<vmem>>, vector<8x1xf32>
    tpu.vector_store %arg14[%c0_98, %c0_99], %525 {strides = array<i32>} : memref<8x1xf32, #tpu.memory_space<vmem>>, vector<8x1xf32>,
    return
  }
}

</mosaic_0001>

<llo_original>
// kernel: phrase_sim_forward.1
$region0: #{phrase_sim_forward.1}
  #allocation0 [shape = 'u32[]', space=smem, size = 0x4, offset = 0x4, fixed_abs, tag = 'smem constant byte address 0x4 - core index']
  #allocation1 [shape = 'u32[144,128]{1,0:T(1,128)}', space=vmem, size = 0x12000, scoped, tag = 'internal scratch']
  #allocation2 [shape = 'f32[1,1]{1,0:T(1,128)S(1)}', space=vmem, size = 0x200, scoped, tag = 'scoped memory for phrase_sim_forward.1']
  %s0 = inlined_call_operand.vmem [shape: f32[128,16], index: 0, kind: input, shape index: {}]
  %s1 = inlined_call_operand.vmem [shape: f32[128,32], index: 1, kind: input, shape index: {}]
  %s2 = inlined_call_operand.vmem [shape: f32[16,96], index: 2, kind: input, shape index: {}]
  %s3 = inlined_call_operand.vmem [shape: f32[32,96], index: 3, kind: input, shape index: {}]
  %s4 = inlined_call_operand.vmem [shape: f32[1,96], index: 4, kind: input, shape index: {}]
  %s5 = inlined_call_operand.vmem [shape: f32[1,32], index: 5, kind: input, shape index: {}]
  %s6 = inlined_call_operand.vmem [shape: f32[32,96], index: 6, kind: input, shape index: {}]
  %s7 = inlined_call_operand.vmem [shape: f32[32,96], index: 7, kind: input, shape index: {}]
  %s8 = inlined_call_operand.vmem [shape: f32[1,96], index: 8, kind: input, shape index: {}]
  %s9 = inlined_call_operand.vmem [shape: f32[1,32], index: 9, kind: input, shape index: {}]
  %s10 = inlined_call_operand.vmem [shape: f32[256,64], index: 10, kind: input, shape index: {}]
  %s11 = inlined_call_operand.vmem [shape: f32[1,64], index: 11, kind: input, shape index: {}]
  %s12 = inlined_call_operand.vmem [shape: f32[64,1], index: 12, kind: input, shape index: {}]
  %s13 = inlined_call_operand.<no memory space> [shape: f32[1,1], index: 13, kind: input, shape index: {}]
  %s14 = inlined_call_operand.vmem [shape: f32[8,1], index: 14, kind: output, shape index: {}]
  %s15 = sld [smem:[#allocation0]]
  $region66: #{phrase_sim_forward.1} parent=0
    _
  %s17 = ssub.s32 1, %s15
  %s18 = scalar_select 0, %s17, %s15
  %v19 = vstv %s13
  %20 = vst [vmem:[#allocation2] sm:$0x1] %v19
  // Predicated region
  $region2: #{phrase_sim_forward.1} parent=0 // pred_check
    _
  $region3: #{phrase_sim_forward.1} parent=0 // pred_check_branch
    %22 = sbr.rel (0) target = $region5
  $region4: #{phrase_sim_forward.1} parent=0 // pred_region
    _
  $region5: #{phrase_sim_forward.1} parent=0 // pred_fallthru
    _
  // Predicated region
  $region6: #{phrase_sim_forward.1} parent=0 // pred_check
    _
  $region7: #{phrase_sim_forward.1} parent=0 // pred_check_branch
    %24 = sbr.rel (0) target = $region9
  $region8: #{phrase_sim_forward.1} parent=0 // pred_region
    _
  $region9: #{phrase_sim_forward.1} parent=0 // pred_fallthru
    _
  // Predicated region
  $region10: #{phrase_sim_forward.1} parent=0 // pred_check
    _
  $region11: #{phrase_sim_forward.1} parent=0 // pred_check_branch
    %26 = sbr.rel (0) target = $region13
  $region12: #{phrase_sim_forward.1} parent=0 // pred_region
    _
  $region13: #{phrase_sim_forward.1} parent=0 // pred_fallthru
    _
  // Predicated region
  $region14: #{phrase_sim_forward.1} parent=0 // pred_check
    _
  $region15: #{phrase_sim_forward.1} parent=0 // pred_check_branch
    %28 = sbr.rel (0) target = $region17
  $region16: #{phrase_sim_forward.1} parent=0 // pred_region
    _
  $region17: #{phrase_sim_forward.1} parent=0 // pred_fallthru
    _
  // Predicated region
  $region18: #{phrase_sim_forward.1} parent=0 // pred_check
    _
  $region19: #{phrase_sim_forward.1} parent=0 // pred_check_branch
    %30 = sbr.rel (0) target = $region21
  $region20: #{phrase_sim_forward.1} parent=0 // pred_region
    _
  $region21: #{phrase_sim_forward.1} parent=0 // pred_fallthru
    _
  // Predicated region
  $region22: #{phrase_sim_forward.1} parent=0 // pred_check
    _
  $region23: #{phrase_sim_forward.1} parent=0 // pred_check_branch
    %32 = sbr.rel (0) target = $region25
  $region24: #{phrase_sim_forward.1} parent=0 // pred_region
    _
  $region25: #{phrase_sim_forward.1} parent=0 // pred_fallthru
    _
  // Predicated region
  $region26: #{phrase_sim_forward.1} parent=0 // pred_check
    _
  $region27: #{phrase_sim_forward.1} parent=0 // pred_check_branch
    %34 = sbr.rel (0) target = $region29
  $region28: #{phrase_sim_forward.1} parent=0 // pred_region
    _
  $region29: #{phrase_sim_forward.1} parent=0 // pred_fallthru
    _
  // Predicated region
  $region30: #{phrase_sim_forward.1} parent=0 // pred_check
    _
  $region31: #{phrase_sim_forward.1} parent=0 // pred_check_branch
    %36 = sbr.rel (0) target = $region33
  $region32: #{phrase_sim_forward.1} parent=0 // pred_region
    _
  $region33: #{phrase_sim_forward.1} parent=0 // pred_fallthru
    _
  // Predicated region
  $region34: #{phrase_sim_forward.1} parent=0 // pred_check
    _
  $region35: #{phrase_sim_forward.1} parent=0 // pred_check_branch
    %38 = sbr.rel (0) target = $region37
  $region36: #{phrase_sim_forward.1} parent=0 // pred_region
    _
  $region37: #{phrase_sim_forward.1} parent=0 // pred_fallthru
    _
  // Predicated region
  $region38: #{phrase_sim_forward.1} parent=0 // pred_check
    _
  $region39: #{phrase_sim_forward.1} parent=0 // pred_check_branch
    %40 = sbr.rel (0) target = $region41
  $region40: #{phrase_sim_forward.1} parent=0 // pred_region
    _
  $region41: #{phrase_sim_forward.1} parent=0 // pred_fallthru
    _
  // Predicated region
  $region42: #{phrase_sim_forward.1} parent=0 // pred_check
    _
  $region43: #{phrase_sim_forward.1} parent=0 // pred_check_branch
    %42 = sbr.rel (0) target = $region45
  $region44: #{phrase_sim_forward.1} parent=0 // pred_region
    _
  $region45: #{phrase_sim_forward.1} parent=0 // pred_fallthru
    _
  // Predicated region
  $region46: #{phrase_sim_forward.1} parent=0 // pred_check
    _
  $region47: #{phrase_sim_forward.1} parent=0 // pred_check_branch
    %44 = sbr.rel (0) target = $region49
  $region48: #{phrase_sim_forward.1} parent=0 // pred_region
    _
  $region49: #{phrase_sim_forward.1} parent=0 // pred_fallthru
    _
  // Predicated region
  $region50: #{phrase_sim_forward.1} parent=0 // pred_check
    _
  $region51: #{phrase_sim_forward.1} parent=0 // pred_check_branch
    %46 = sbr.rel (0) target = $region53
  $region52: #{phrase_sim_forward.1} parent=0 // pred_region
    _
  $region53: #{phrase_sim_forward.1} parent=0 // pred_fallthru
    _
  // Predicated region
  $region54: #{phrase_sim_forward.1} parent=0 // pred_check
    _
  $region55: #{phrase_sim_forward.1} parent=0 // pred_check_branch
    %48 = sbr.rel (0) target = $region57
  $region56: #{phrase_sim_forward.1} parent=0 // pred_region
    _
  $region57: #{phrase_sim_forward.1} parent=0 // pred_fallthru
    _
  %v49 = vld [vmem:[%s2] sm:$0xff]
  %v50 = vld [vmem:[%s2 + $0x8] sm:$0xff]
  %v51 = vld [vmem:[%s3] sm:$0xff]
  %v52 = vld [vmem:[%s3 + $0x8] sm:$0xff]
  %v53 = vld [vmem:[%s3 + $0x10] sm:$0xff]
  %v54 = vld [vmem:[%s3 + $0x18] sm:$0xff]
  %v55 = vld [vmem:[%s4] sm:$0x1]
  %v56 = vld [vmem:[%s5] sm:$0x1]
  %v57 = vld [vmem:[%s0] sm:$0xff]
  %v58 = vld [vmem:[%s0 + $0x8] sm:$0xff]
  %v59 = vld [vmem:[%s0 + $0x10] sm:$0xff]
  %v60 = vld [vmem:[%s0 + $0x18] sm:$0xff]
  %v61 = vld [vmem:[%s0 + $0x20] sm:$0xff]
  %v62 = vld [vmem:[%s0 + $0x28] sm:$0xff]
  %v63 = vld [vmem:[%s0 + $0x30] sm:$0xff]
  %v64 = vld [vmem:[%s0 + $0x38] sm:$0xff]
  %v65 = vld [vmem:[%s0 + $0x40] sm:$0xff]
  %v66 = vld [vmem:[%s0 + $0x48] sm:$0xff]
  %v67 = vld [vmem:[%s0 + $0x50] sm:$0xff]
  %v68 = vld [vmem:[%s0 + $0x58] sm:$0xff]
  %v69 = vld [vmem:[%s0 + $0x60] sm:$0xff]
  %v70 = vld [vmem:[%s0 + $0x68] sm:$0xff]
  %v71 = vld [vmem:[%s0 + $0x70] sm:$0xff]
  %v72 = vld [vmem:[%s0 + $0x78] sm:$0xff]
  %v74 = vlaneseq
  %v75 = vshrl.u32 %v74, 7
  %v76 = vsub.s32 0, %v75
  %v77 = vrot.slane %v55, %v76
  %vm79 = vcmask 130048
  %v81 = vsel %vm79, %v57, 0
  %v84 = vsel %vm79, %v58, 0
  %v87 = vsel %vm79, %v59, 0
  %v90 = vsel %vm79, %v60, 0
  %v93 = vsel %vm79, %v61, 0
  %v96 = vsel %vm79, %v62, 0
  %v99 = vsel %vm79, %v63, 0
  %v102 = vsel %vm79, %v64, 0
  %v105 = vsel %vm79, %v65, 0
  %v108 = vsel %vm79, %v66, 0
  %v111 = vsel %vm79, %v67, 0
  %v114 = vsel %vm79, %v68, 0
  %v117 = vsel %vm79, %v69, 0
  %v120 = vsel %vm79, %v70, 0
  %v123 = vsel %vm79, %v71, 0
  %v126 = vsel %vm79, %v72, 0
  %128 = vmatprep.subr.mxu0 0.0
  %129 = vmatpush1.msra.mxu0 %v49
  %130 = vmatprep.subr.mxu0 0.0
  %131 = vmatpush1.msra.mxu0 %v50
  %132 = vmatprep.subr.mxu0 0.0
  %133 = vmatpush1.msra.mxu0 0.0
  %134 = vmatprep.subr.mxu0 0.0
  %135 = vmatpush1.msra.mxu0 0.0
  %136 = vmatprep.subr.mxu0 0.0
  %137 = vmatpush1.msra.mxu0 0.0
  %138 = vmatprep.subr.mxu0 0.0
  %139 = vmatpush1.msra.mxu0 0.0
  %140 = vmatprep.subr.mxu0 0.0
  %141 = vmatpush1.msra.mxu0 0.0
  %142 = vmatprep.subr.mxu0 0.0
  %143 = vmatpush1.msra.mxu0 0.0
  %144 = vmatprep.subr.mxu0 0.0
  %145 = vmatpush1.msra.mxu0 0.0
  %146 = vmatprep.subr.mxu0 0.0
  %147 = vmatpush1.msra.mxu0 0.0
  %148 = vmatprep.subr.mxu0 0.0
  %149 = vmatpush1.msra.mxu0 0.0
  %150 = vmatprep.subr.mxu0 0.0
  %151 = vmatpush1.msra.mxu0 0.0
  %152 = vmatprep.subr.mxu0 0.0
  %153 = vmatpush1.msra.mxu0 0.0
  %154 = vmatprep.subr.mxu0 0.0
  %155 = vmatpush1.msra.mxu0 0.0
  %156 = vmatprep.subr.mxu0 0.0
  %157 = vmatpush1.msra.mxu0 0.0
  %158 = vmatprep.subr.mxu0 0.0
  %159 = vmatpush1.msra.mxu0 0.0
  %160 = vmatprep.subr.mxu0 0.0
  %161 = vmatpush1.msra.mxu0 0.0
  %162 = vmatprep.subr.mxu0 0.0
  %163 = vmatpush1.msra.mxu0 0.0
  %164 = vmatprep.subr.mxu0 0.0
  %165 = vmatpush1.msra.mxu0 0.0
  %166 = vmatprep.subr.mxu0 0.0
  %167 = vmatpush1.msra.mxu0 0.0
  %168 = vmatprep.subr.mxu0 0.0
  %169 = vmatpush1.msra.mxu0 0.0
  %170 = vmatprep.subr.mxu0 0.0
  %171 = vmatpush1.msra.mxu0 0.0
  %172 = vmatprep.subr.mxu0 0.0
  %173 = vmatpush1.msra.mxu0 0.0
  %174 = vmatprep.subr.mxu0 0.0
  %175 = vmatpush1.msra.mxu0 0.0
  %176 = vmatprep.subr.mxu0 0.0
  %177 = vmatpush1.msra.mxu0 0.0
  %178 = vmatprep.subr.mxu0 0.0
  %179 = vmatpush1.msra.mxu0 0.0
  %180 = vmatprep.subr.mxu0 0.0
  %181 = vmatpush1.msra.mxu0 0.0
  %182 = vmatprep.subr.mxu0 0.0
  %183 = vmatpush1.msra.mxu0 0.0
  %184 = vmatprep.subr.mxu0 0.0
  %185 = vmatpush1.msra.mxu0 0.0
  %186 = vmatprep.subr.mxu0 0.0
  %187 = vmatpush1.msra.mxu0 0.0
  %188 = vmatprep.subr.mxu0 0.0
  %189 = vmatpush1.msra.mxu0 0.0
  %190 = vmatprep.subr.mxu0 0.0
  %191 = vmatpush1.msra.mxu0 0.0
  %192 = vmatprep.mubr.f32.mxu0 0.0
  %193 = vmatmul.mubr.f32.gmra.mrb[0].mxu0 %v81
  %v194 = vpop.f32.mrb[0].mxu0
  %v195 = vadd.f32 %v77, %v194
  %v196 = vpop.f32.mrb[0].mxu0
  %197 = vmatprep.mubr.f32.mxu0 0.0
  %198 = vmatmul.mubr.f32.gmra.mrb[0].mxu0 %v84
  %v199 = vpop.f32.mrb[0].mxu0
  %v200 = vadd.f32 %v77, %v199
  %v201 = vpop.f32.mrb[0].mxu0
  %202 = vmatprep.mubr.f32.mxu0 0.0
  %203 = vmatmul.mubr.f32.gmra.mrb[0].mxu0 %v87
  %v204 = vpop.f32.mrb[0].mxu0
  %v205 = vadd.f32 %v77, %v204
  %v206 = vpop.f32.mrb[0].mxu0
  %207 = vmatprep.mubr.f32.mxu0 0.0
  %208 = vmatmul.mubr.f32.gmra.mrb[0].mxu0 %v90
  %v209 = vpop.f32.mrb[0].mxu0
  %v210 = vadd.f32 %v77, %v209
  %v211 = vpop.f32.mrb[0].mxu0
  %212 = vmatprep.mubr.f32.mxu0 0.0
  %213 = vmatmul.mubr.f32.gmra.mrb[0].mxu0 %v93
  %v214 = vpop.f32.mrb[0].mxu0
  %v215 = vadd.f32 %v77, %v214
  %v216 = vpop.f32.mrb[0].mxu0
  %217 = vmatprep.mubr.f32.mxu0 0.0
  %218 = vmatmul.mubr.f32.gmra.mrb[0].mxu0 %v96
  %v219 = vpop.f32.mrb[0].mxu0
  %v220 = vadd.f32 %v77, %v219
  %v221 = vpop.f32.mrb[0].mxu0
  %222 = vmatprep.mubr.f32.mxu0 0.0
  %223 = vmatmul.mubr.f32.gmra.mrb[0].mxu0 %v99
  %v224 = vpop.f32.mrb[0].mxu0
  %v225 = vadd.f32 %v77, %v224
  %v226 = vpop.f32.mrb[0].mxu0
  %227 = vmatprep.mubr.f32.mxu0 0.0
  %228 = vmatmul.mubr.f32.gmra.mrb[0].mxu0 %v102
  %v229 = vpop.f32.mrb[0].mxu0
  %v230 = vadd.f32 %v77, %v229
  %v231 = vpop.f32.mrb[0].mxu0
  %232 = vmatprep.mubr.f32.mxu0 0.0
  %233 = vmatmul.mubr.f32.gmra.mrb[0].mxu0 %v105
  %v234 = vpop.f32.mrb[0].mxu0
  %v235 = vadd.f32 %v77, %v234
  %v236 = vpop.f32.mrb[0].mxu0
  %237 = vmatprep.mubr.f32.mxu0 0.0
  %238 = vmatmul.mubr.f32.gmra.mrb[0].mxu0 %v108
  %v239 = vpop.f32.mrb[0].mxu0
  %v240 = vadd.f32 %v77, %v239
  %v241 = vpop.f32.mrb[0].mxu0
  %242 = vmatprep.mubr.f32.mxu0 0.0
  %243 = vmatmul.mubr.f32.gmra.mrb[0].mxu0 %v111
  %v244 = vpop.f32.mrb[0].mxu0
  %v245 = vadd.f32 %v77, %v244
  %v246 = vpop.f32.mrb[0].mxu0
  %247 = vmatprep.mubr.f32.mxu0 0.0
  %248 = vmatmul.mubr.f32.gmra.mrb[0].mxu0 %v114
  %v249 = vpop.f32.mrb[0].mxu0
  %v250 = vadd.f32 %v77, %v249
  %v251 = vpop.f32.mrb[0].mxu0
  %252 = vmatprep.mubr.f32.mxu0 0.0
  %253 = vmatmul.mubr.f32.gmra.mrb[0].mxu0 %v117
  %v254 = vpop.f32.mrb[0].mxu0
  %v255 = vadd.f32 %v77, %v254
  %v256 = vpop.f32.mrb[0].mxu0
  %257 = vmatprep.mubr.f32.mxu0 0.0
  %258 = vmatmul.mubr.f32.gmra.mrb[0].mxu0 %v120
  %v259 = vpop.f32.mrb[0].mxu0
  %v260 = vadd.f32 %v77, %v259
  %v261 = vpop.f32.mrb[0].mxu0
  %262 = vmatprep.mubr.f32.mxu0 0.0
  %263 = vmatmul.mubr.f32.gmra.mrb[0].mxu0 %v123
  %v264 = vpop.f32.mrb[0].mxu0
  %v265 = vadd.f32 %v77, %v264
  %v266 = vpop.f32.mrb[0].mxu0
  %267 = vmatprep.mubr.f32.mxu0 0.0
  %268 = vmatmul.mubr.f32.gmra.mrb[0].mxu0 %v126
  %v269 = vpop.f32.mrb[0].mxu0
  %v270 = vadd.f32 %v77, %v269
  %v271 = vpop.f32.mrb[0].mxu0
  %272 = vdwg.mxu0
  %vm273 = vcmask 261120
  %v275 = vsel %vm273, 0.0, 0
  %277 = vmatprep.subr.mxu0 0.0
  %278 = vmatpush1.msra.mxu0 %v51
  %279 = vmatprep.subr.mxu0 0.0
  %280 = vmatpush1.msra.mxu0 %v52
  %281 = vmatprep.subr.mxu0 0.0
  %282 = vmatpush1.msra.mxu0 %v53
  %283 = vmatprep.subr.mxu0 0.0
  %284 = vmatpush1.msra.mxu0 %v54
  %285 = vmatprep.subr.mxu0 0.0
  %286 = vmatpush1.msra.mxu0 0.0
  %287 = vmatprep.subr.mxu0 0.0
  %288 = vmatpush1.msra.mxu0 0.0
  %289 = vmatprep.subr.mxu0 0.0
  %290 = vmatpush1.msra.mxu0 0.0
  %291 = vmatprep.subr.mxu0 0.0
  %292 = vmatpush1.msra.mxu0 0.0
  %293 = vmatprep.subr.mxu0 0.0
  %294 = vmatpush1.msra.mxu0 0.0
  %295 = vmatprep.subr.mxu0 0.0
  %296 = vmatpush1.msra.mxu0 0.0
  %297 = vmatprep.subr.mxu0 0.0
  %298 = vmatpush1.msra.mxu0 0.0
  %299 = vmatprep.subr.mxu0 0.0
  %300 = vmatpush1.msra.mxu0 0.0
  %301 = vmatprep.subr.mxu0 0.0
  %302 = vmatpush1.msra.mxu0 0.0
  %303 = vmatprep.subr.mxu0 0.0
  %304 = vmatpush1.msra.mxu0 0.0
  %305 = vmatprep.subr.mxu0 0.0
  %306 = vmatpush1.msra.mxu0 0.0
  %307 = vmatprep.subr.mxu0 0.0
  %308 = vmatpush1.msra.mxu0 0.0
  %309 = vmatprep.subr.mxu0 0.0
  %310 = vmatpush1.msra.mxu0 0.0
  %311 = vmatprep.subr.mxu0 0.0
  %312 = vmatpush1.msra.mxu0 0.0
  %313 = vmatprep.subr.mxu0 0.0
  %314 = vmatpush1.msra.mxu0 0.0
  %315 = vmatprep.subr.mxu0 0.0
  %316 = vmatpush1.msra.mxu0 0.0
  %317 = vmatprep.subr.mxu0 0.0
  %318 = vmatpush1.msra.mxu0 0.0
  %319 = vmatprep.subr.mxu0 0.0
  %320 = vmatpush1.msra.mxu0 0.0
  %321 = vmatprep.subr.mxu0 0.0
  %322 = vmatpush1.msra.mxu0 0.0
  %323 = vmatprep.subr.mxu0 0.0
  %324 = vmatpush1.msra.mxu0 0.0
  %325 = vmatprep.subr.mxu0 0.0
  %326 = vmatpush1.msra.mxu0 0.0
  %327 = vmatprep.subr.mxu0 0.0
  %328 = vmatpush1.msra.mxu0 0.0
  %329 = vmatprep.subr.mxu0 0.0
  %330 = vmatpush1.msra.mxu0 0.0
  %331 = vmatprep.subr.mxu0 0.0
  %332 = vmatpush1.msra.mxu0 0.0
  %333 = vmatprep.subr.mxu0 0.0
  %334 = vmatpush1.msra.mxu0 0.0
  %335 = vmatprep.subr.mxu0 0.0
  %336 = vmatpush1.msra.mxu0 0.0
  %337 = vmatprep.subr.mxu0 0.0
  %338 = vmatpush1.msra.mxu0 0.0
  %339 = vmatprep.subr.mxu0 0.0
  %340 = vmatpush1.msra.mxu0 0.0
  %341 = vmatprep.mubr.f32.mxu0 0.0
  %342 = vmatmul.mubr.f32.gmra.mrb[0].mxu0 %v275
  %v343 = vpop.f32.mrb[0].mxu0
  %v344 = vadd.f32 0.0, %v343
  %v345 = vpop.f32.mrb[0].mxu0
  %346 = vmatprep.mubr.f32.mxu0 0.0
  %347 = vmatmul.mubr.f32.gmra.mrb[0].mxu0 %v275
  %v348 = vpop.f32.mrb[0].mxu0
  %v349 = vadd.f32 0.0, %v348
  %v350 = vpop.f32.mrb[0].mxu0
  %351 = vdwg.mxu0
  %v352 = vadd.f32 %v195, %v344
  %v353 = vadd.f32 %v200, %v349
  %v354 = vxor.u32 %v352, 2147483648
  %v355 = vxor.u32 %v353, 2147483648
  %v356 = vmul.f32 %v354, 1.442695
  %v357 = vpow.pop %v356
  %v358 = vmul.f32 %v355, 1.442695
  %v359 = vpow.pop %v358
  %v360 = vadd.f32 %v357, 1.0
  %v361 = vadd.f32 %v359, 1.0
  %v362 = vrcp.pop %v360
  %v363 = vmul.f32 1.0, %v362
  %v364 = vrcp.pop %v361
  %v365 = vmul.f32 1.0, %v364
  %v367 = vlaneseq
  %v368 = vshrl.u32 %v367, 7
  %v369 = vsub.s32 0, %v368
  %v370 = vrot.slane %v56, %v369
  %371 = vrot.lane.b32.xlu0 %v370, 64
  %v372 = vpop.permute.xlu0 %371
  %v374 = vadd.f32 %v344, %v372
  %v375 = vadd.f32 %v349, %v372
  %378 = vrot.lane.b32.xlu0 %v374, 64
  %v379 = vpop.permute.xlu0 %378
  %380 = vrot.lane.b32.xlu0 %v375, 64
  %v381 = vpop.permute.xlu0 %380
  %v384 = vmul.f32 %v363, %v379
  %v385 = vmul.f32 %v365, %v381
  %388 = vrot.lane.b32.xlu0 %v384, 64
  %v389 = vpop.permute.xlu0 %388
  %390 = vrot.lane.b32.xlu0 %v385, 64
  %v391 = vpop.permute.xlu0 %390
  %v394 = vadd.f32 %v195, %v389
  %v395 = vadd.f32 %v200, %v391
  %v396 = vtanh.pop %v394
  %v397 = vtanh.pop %v395
  %v398 = vsub.f32 1.0, %v363
  %v399 = vsub.f32 1.0, %v365
  %402 = vrot.lane.b32.xlu0 %v396, 96
  %v403 = vpop.permute.xlu0 %402
  %404 = vrot.lane.b32.xlu0 %v397, 96
  %v405 = vpop.permute.xlu0 %404
  %v408 = vmul.f32 %v398, %v403
  %v409 = vmul.f32 %v399, %v405
  %v410 = vmul.f32 %v363, 0.0
  %v411 = vmul.f32 %v365, 0.0
  %v412 = vadd.f32 %v408, %v410
  %v413 = vadd.f32 %v409, %v411
  %416 = vrot.lane.b32.xlu0 %v412, 96
  %v417 = vpop.permute.xlu0 %416
  %418 = vrot.lane.b32.xlu0 %v413, 96
  %v419 = vpop.permute.xlu0 %418
  %v420 = vsel %vm273, %v417, 0
  %v422 = vsel %vm273, %v419, 0
  %424 = vmatprep.subr.mxu0 0.0
  %425 = vmatpush1.msra.mxu0 %v51
  %426 = vmatprep.subr.mxu0 0.0
  %427 = vmatpush1.msra.mxu0 %v52
  %428 = vmatprep.subr.mxu0 0.0
  %429 = vmatpush1.msra.mxu0 %v53
  %430 = vmatprep.subr.mxu0 0.0
  %431 = vmatpush1.msra.mxu0 %v54
  %432 = vmatprep.subr.mxu0 0.0
  %433 = vmatpush1.msra.mxu0 0.0
  %434 = vmatprep.subr.mxu0 0.0
  %435 = vmatpush1.msra.mxu0 0.0
  %436 = vmatprep.subr.mxu0 0.0
  %437 = vmatpush1.msra.mxu0 0.0
  %438 = vmatprep.subr.mxu0 0.0
  %439 = vmatpush1.msra.mxu0 0.0
  %440 = vmatprep.subr.mxu0 0.0
  %441 = vmatpush1.msra.mxu0 0.0
  %442 = vmatprep.subr.mxu0 0.0
  %443 = vmatpush1.msra.mxu0 0.0
  %444 = vmatprep.subr.mxu0 0.0
  %445 = vmatpush1.msra.mxu0 0.0
  %446 = vmatprep.subr.mxu0 0.0
  %447 = vmatpush1.msra.mxu0 0.0
  %448 = vmatprep.subr.mxu0 0.0
  %449 = vmatpush1.msra.mxu0 0.0
  %450 = vmatprep.subr.mxu0 0.0
  %451 = vmatpush1.msra.mxu0 0.0
  %452 = vmatprep.subr.mxu0 0.0
  %453 = vmatpush1.msra.mxu0 0.0
  %454 = vmatprep.subr.mxu0 0.0
  %455 = vmatpush1.msra.mxu0 0.0
  %456 = vmatprep.subr.mxu0 0.0
  %457 = vmatpush1.msra.mxu0 0.0
  %458 = vmatprep.subr.mxu0 0.0
  %459 = vmatpush1.msra.mxu0 0.0
  %460 = vmatprep.subr.mxu0 0.0
  %461 = vmatpush1.msra.mxu0 0.0
  %462 = vmatprep.subr.mxu0 0.0
  %463 = vmatpush1.msra.mxu0 0.0
  %464 = vmatprep.subr.mxu0 0.0
  %465 = vmatpush1.msra.mxu0 0.0
  %466 = vmatprep.subr.mxu0 0.0
  %467 = vmatpush1.msra.mxu0 0.0
  %468 = vmatprep.subr.mxu0 0.0
  %469 = vmatpush1.msra.mxu0 0.0
  %470 = vmatprep.subr.mxu0 0.0
  %471 = vmatpush1.msra.mxu0 0.0
  %472 = vmatprep.subr.mxu0 0.0
  %473 = vmatpush1.msra.mxu0 0.0
  %474 = vmatprep.subr.mxu0 0.0
  %475 = vmatpush1.msra.mxu0 0.0
  %476 = vmatprep.subr.mxu0 0.0
  %477 = vmatpush1.msra.mxu0 0.0
  %478 = vmatprep.subr.mxu0 0.0
  %479 = vmatpush1.msra.mxu0 0.0
  %480 = vmatprep.subr.mxu0 0.0
  %481 = vmatpush1.msra.mxu0 0.0
  %482 = vmatprep.subr.mxu0 0.0
  %483 = vmatpush1.msra.mxu0 0.0
  %484 = vmatprep.subr.mxu0 0.0
  %485 = vmatpush1.msra.mxu0 0.0
  %486 = vmatprep.subr.mxu0 0.0
  %487 = vmatpush1.msra.mxu0 0.0
  %488 = vmatprep.mubr.f32.mxu0 0.0
  %489 = vmatmul.mubr.f32.gmra.mrb[0].mxu0 %v420
  %v490 = vpop.f32.mrb[0].mxu0
  %v491 = vadd.f32 0.0, %v490
  %v492 = vpop.f32.mrb[0].mxu0
  %493 = vmatprep.mubr.f32.mxu0 0.0
  %494 = vmatmul.mubr.f32.gmra.mrb[0].mxu0 %v422
  %v495 = vpop.f32.mrb[0].mxu0
  %v496 = vadd.f32 0.0, %v495
  %v497 = vpop.f32.mrb[0].mxu0
  %498 = vdwg.mxu0
  %v499 = vadd.f32 %v205, %v491
  %v500 = vadd.f32 %v210, %v496
  %v501 = vxor.u32 %v499, 2147483648
  %v502 = vxor.u32 %v500, 2147483648
  %v503 = vmul.f32 %v501, 1.442695
  %v504 = vpow.pop %v503
  %v505 = vmul.f32 %v502, 1.442695
  %v506 = vpow.pop %v505
  %v507 = vadd.f32 %v504, 1.0
  %v508 = vadd.f32 %v506, 1.0
  %v509 = vrcp.pop %v507
  %v510 = vmul.f32 1.0, %v509
  %v511 = vrcp.pop %v508
  %v512 = vmul.f32 1.0, %v511
  %v513 = vadd.f32 %v491, %v372
  %v514 = vadd.f32 %v496, %v372
  %517 = vrot.lane.b32.xlu0 %v513, 64
  %v518 = vpop.permute.xlu0 %517
  %519 = vrot.lane.b32.xlu0 %v514, 64
  %v520 = vpop.permute.xlu0 %519
  %v523 = vmul.f32 %v510, %v518
  %v524 = vmul.f32 %v512, %v520
  %527 = vrot.lane.b32.xlu0 %v523, 64
  %v528 = vpop.permute.xlu0 %527
  %529 = vrot.lane.b32.xlu0 %v524, 64
  %v530 = vpop.permute.xlu0 %529
  %v533 = vadd.f32 %v205, %v528
  %v534 = vadd.f32 %v210, %v530
  %v535 = vtanh.pop %v533
  %v536 = vtanh.pop %v534
  %v537 = vsub.f32 1.0, %v510
  %v538 = vsub.f32 1.0, %v512
  %541 = vrot.lane.b32.xlu0 %v535, 96
  %v542 = vpop.permute.xlu0 %541
  %543 = vrot.lane.b32.xlu0 %v536, 96
  %v544 = vpop.permute.xlu0 %543
  %v547 = vmul.f32 %v537, %v542
  %v548 = vmul.f32 %v538, %v544
  %v549 = vmul.f32 %v510, %v412
  %v550 = vmul.f32 %v512, %v413
  %v551 = vadd.f32 %v547, %v549
  %v552 = vadd.f32 %v548, %v550
  %555 = vrot.lane.b32.xlu0 %v551, 96
  %v556 = vpop.permute.xlu0 %555
  %557 = vrot.lane.b32.xlu0 %v552, 96
  %v558 = vpop.permute.xlu0 %557
  %v559 = vsel %vm273, %v556, 0
  %v561 = vsel %vm273, %v558, 0
  %563 = vmatprep.subr.mxu0 0.0
  %564 = vmatpush1.msra.mxu0 %v51
  %565 = vmatprep.subr.mxu0 0.0
  %566 = vmatpush1.msra.mxu0 %v52
  %567 = vmatprep.subr.mxu0 0.0
  %568 = vmatpush1.msra.mxu0 %v53
  %569 = vmatprep.subr.mxu0 0.0
  %570 = vmatpush1.msra.mxu0 %v54
  %571 = vmatprep.subr.mxu0 0.0
  %572 = vmatpush1.msra.mxu0 0.0
  %573 = vmatprep.subr.mxu0 0.0
  %574 = vmatpush1.msra.mxu0 0.0
  %575 = vmatprep.subr.mxu0 0.0
  %576 = vmatpush1.msra.mxu0 0.0
  %577 = vmatprep.subr.mxu0 0.0
  %578 = vmatpush1.msra.mxu0 0.0
  %579 = vmatprep.subr.mxu0 0.0
  %580 = vmatpush1.msra.mxu0 0.0
  %581 = vmatprep.subr.mxu0 0.0
  %582 = vmatpush1.msra.mxu0 0.0
  %583 = vmatprep.subr.mxu0 0.0
  %584 = vmatpush1.msra.mxu0 0.0
  %585 = vmatprep.subr.mxu0 0.0
  %586 = vmatpush1.msra.mxu0 0.0
  %587 = vmatprep.subr.mxu0 0.0
  %588 = vmatpush1.msra.mxu0 0.0
  %589 = vmatprep.subr.mxu0 0.0
  %590 = vmatpush1.msra.mxu0 0.0
  %591 = vmatprep.subr.mxu0 0.0
  %592 = vmatpush1.msra.mxu0 0.0
  %593 = vmatprep.subr.mxu0 0.0
  %594 = vmatpush1.msra.mxu0 0.0
  %595 = vmatprep.subr.mxu0 0.0
  %596 = vmatpush1.msra.mxu0 0.0
  %597 = vmatprep.subr.mxu0 0.0
  %598 = vmatpush1.msra.mxu0 0.0
  %599 = vmatprep.subr.mxu0 0.0
  %600 = vmatpush1.msra.mxu0 0.0
  %601 = vmatprep.subr.mxu0 0.0
  %602 = vmatpush1.msra.mxu0 0.0
  %603 = vmatprep.subr.mxu0 0.0
  %604 = vmatpush1.msra.mxu0 0.0
  %605 = vmatprep.subr.mxu0 0.0
  %606 = vmatpush1.msra.mxu0 0.0
  %607 = vmatprep.subr.mxu0 0.0
  %608 = vmatpush1.msra.mxu0 0.0
  %609 = vmatprep.subr.mxu0 0.0
  %610 = vmatpush1.msra.mxu0 0.0
  %611 = vmatprep.subr.mxu0 0.0
  %612 = vmatpush1.msra.mxu0 0.0
  %613 = vmatprep.subr.mxu0 0.0
  %614 = vmatpush1.msra.mxu0 0.0
  %615 = vmatprep.subr.mxu0 0.0
  %616 = vmatpush1.msra.mxu0 0.0
  %617 = vmatprep.subr.mxu0 0.0
  %618 = vmatpush1.msra.mxu0 0.0
  %619 = vmatprep.subr.mxu0 0.0
  %620 = vmatpush1.msra.mxu0 0.0
  %621 = vmatprep.subr.mxu0 0.0
  %622 = vmatpush1.msra.mxu0 0.0
  %623 = vmatprep.subr.mxu0 0.0
  %624 = vmatpush1.msra.mxu0 0.0
  %625 = vmatprep.subr.mxu0 0.0
  %626 = vmatpush1.msra.mxu0 0.0
  %627 = vmatprep.mubr.f32.mxu0 0.0
  %628 = vmatmul.mubr.f32.gmra.mrb[0].mxu0 %v559
  %v629 = vpop.f32.mrb[0].mxu0
  %v630 = vadd.f32 0.0, %v629
  %v631 = vpop.f32.mrb[0].mxu0
  %632 = vmatprep.mubr.f32.mxu0 0.0
  %633 = vmatmul.mubr.f32.gmra.mrb[0].mxu0 %v561
  %v634 = vpop.f32.mrb[0].mxu0
  %v635 = vadd.f32 0.0, %v634
  %v636 = vpop.f32.mrb[0].mxu0
  %637 = vdwg.mxu0
  %v638 = vadd.f32 %v215, %v630
  %v639 = vadd.f32 %v220, %v635
  %v640 = vxor.u32 %v638, 2147483648
  %v641 = vxor.u32 %v639, 2147483648
  %v642 = vmul.f32 %v640, 1.442695
  %v643 = vpow.pop %v642
  %v644 = vmul.f32 %v641, 1.442695
  %v645 = vpow.pop %v644
  %v646 = vadd.f32 %v643, 1.0
  %v647 = vadd.f32 %v645, 1.0
  %v648 = vrcp.pop %v646
  %v649 = vmul.f32 1.0, %v648
  %v650 = vrcp.pop %v647
  %v651 = vmul.f32 1.0, %v650
  %v652 = vadd.f32 %v630, %v372
  %v653 = vadd.f32 %v635, %v372
  %656 = vrot.lane.b32.xlu0 %v652, 64
  %v657 = vpop.permute.xlu0 %656
  %658 = vrot.lane.b32.xlu0 %v653, 64
  %v659 = vpop.permute.xlu0 %658
  %v662 = vmul.f32 %v649, %v657
  %v663 = vmul.f32 %v651, %v659
  %666 = vrot.lane.b32.xlu0 %v662, 64
  %v667 = vpop.permute.xlu0 %666
  %668 = vrot.lane.b32.xlu0 %v663, 64
  %v669 = vpop.permute.xlu0 %668
  %v672 = vadd.f32 %v215, %v667
  %v673 = vadd.f32 %v220, %v669
  %v674 = vtanh.pop %v672
  %v675 = vtanh.pop %v673
  %v676 = vsub.f32 1.0, %v649
  %v677 = vsub.f32 1.0, %v651
  %680 = vrot.lane.b32.xlu0 %v674, 96
  %v681 = vpop.permute.xlu0 %680
  %682 = vrot.lane.b32.xlu0 %v675, 96
  %v683 = vpop.permute.xlu0 %682
  %v686 = vmul.f32 %v676, %v681
  %v687 = vmul.f32 %v677, %v683
  %v688 = vmul.f32 %v649, %v551
  %v689 = vmul.f32 %v651, %v552
  %v690 = vadd.f32 %v686, %v688
  %v691 = vadd.f32 %v687, %v689
  %694 = vrot.lane.b32.xlu0 %v690, 96
  %v695 = vpop.permute.xlu0 %694
  %696 = vrot.lane.b32.xlu0 %v691, 96
  %v697 = vpop.permute.xlu0 %696
  %v698 = vsel %vm273, %v695, 0
  %v700 = vsel %vm273, %v697, 0
  %702 = vmatprep.subr.mxu0 0.0
  %703 = vmatpush1.msra.mxu0 %v51
  %704 = vmatprep.subr.mxu0 0.0
  %705 = vmatpush1.msra.mxu0 %v52
  %706 = vmatprep.subr.mxu0 0.0
  %707 = vmatpush1.msra.mxu0 %v53
  %708 = vmatprep.subr.mxu0 0.0
  %709 = vmatpush1.msra.mxu0 %v54
  %710 = vmatprep.subr.mxu0 0.0
  %711 = vmatpush1.msra.mxu0 0.0
  %712 = vmatprep.subr.mxu0 0.0
  %713 = vmatpush1.msra.mxu0 0.0
  %714 = vmatprep.subr.mxu0 0.0
  %715 = vmatpush1.msra.mxu0 0.0
  %716 = vmatprep.subr.mxu0 0.0
  %717 = vmatpush1.msra.mxu0 0.0
  %718 = vmatprep.subr.mxu0 0.0
  %719 = vmatpush1.msra.mxu0 0.0
  %720 = vmatprep.subr.mxu0 0.0
  %721 = vmatpush1.msra.mxu0 0.0
  %722 = vmatprep.subr.mxu0 0.0
  %723 = vmatpush1.msra.mxu0 0.0
  %724 = vmatprep.subr.mxu0 0.0
  %725 = vmatpush1.msra.mxu0 0.0
  %726 = vmatprep.subr.mxu0 0.0
  %727 = vmatpush1.msra.mxu0 0.0
  %728 = vmatprep.subr.mxu0 0.0
  %729 = vmatpush1.msra.mxu0 0.0
  %730 = vmatprep.subr.mxu0 0.0
  %731 = vmatpush1.msra.mxu0 0.0
  %732 = vmatprep.subr.mxu0 0.0
  %733 = vmatpush1.msra.mxu0 0.0
  %734 = vmatprep.subr.mxu0 0.0
  %735 = vmatpush1.msra.mxu0 0.0
  %736 = vmatprep.subr.mxu0 0.0
  %737 = vmatpush1.msra.mxu0 0.0
  %738 = vmatprep.subr.mxu0 0.0
  %739 = vmatpush1.msra.mxu0 0.0
  %740 = vmatprep.subr.mxu0 0.0
  %741 = vmatpush1.msra.mxu0 0.0
  %742 = vmatprep.subr.mxu0 0.0
  %743 = vmatpush1.msra.mxu0 0.0
  %744 = vmatprep.subr.mxu0 0.0
  %745 = vmatpush1.msra.mxu0 0.0
  %746 = vmatprep.subr.mxu0 0.0
  %747 = vmatpush1.msra.mxu0 0.0
  %748 = vmatprep.subr.mxu0 0.0
  %749 = vmatpush1.msra.mxu0 0.0
  %750 = vmatprep.subr.mxu0 0.0
  %751 = vmatpush1.msra.mxu0 0.0
  %752 = vmatprep.subr.mxu0 0.0
  %753 = vmatpush1.msra.mxu0 0.0
  %754 = vmatprep.subr.mxu0 0.0
  %755 = vmatpush1.msra.mxu0 0.0
  %756 = vmatprep.subr.mxu0 0.0
  %757 = vmatpush1.msra.mxu0 0.0
  %758 = vmatprep.subr.mxu0 0.0
  %759 = vmatpush1.msra.mxu0 0.0
  %760 = vmatprep.subr.mxu0 0.0
  %761 = vmatpush1.msra.mxu0 0.0
  %762 = vmatprep.subr.mxu0 0.0
  %763 = vmatpush1.msra.mxu0 0.0
  %764 = vmatprep.subr.mxu0 0.0
  %765 = vmatpush1.msra.mxu0 0.0
  %766 = vmatprep.mubr.f32.mxu0 0.0
  %767 = vmatmul.mubr.f32.gmra.mrb[0].mxu0 %v698
  %v768 = vpop.f32.mrb[0].mxu0
  %v769 = vadd.f32 0.0, %v768
  %v770 = vpop.f32.mrb[0].mxu0
  %771 = vmatprep.mubr.f32.mxu0 0.0
  %772 = vmatmul.mubr.f32.gmra.mrb[0].mxu0 %v700
  %v773 = vpop.f32.mrb[0].mxu0
  %v774 = vadd.f32 0.0, %v773
  %v775 = vpop.f32.mrb[0].mxu0
  %776 = vdwg.mxu0
  %v777 = vadd.f32 %v225, %v769
  %v778 = vadd.f32 %v230, %v774
  %v779 = vxor.u32 %v777, 2147483648
  %v780 = vxor.u32 %v778, 2147483648
  %v781 = vmul.f32 %v779, 1.442695
  %v782 = vpow.pop %v781
  %v783 = vmul.f32 %v780, 1.442695
  %v784 = vpow.pop %v783
  %v785 = vadd.f32 %v782, 1.0
  %v786 = vadd.f32 %v784, 1.0
  %v787 = vrcp.pop %v785
  %v788 = vmul.f32 1.0, %v787
  %v789 = vrcp.pop %v786
  %v790 = vmul.f32 1.0, %v789
  %v791 = vadd.f32 %v769, %v372
  %v792 = vadd.f32 %v774, %v372
  %795 = vrot.lane.b32.xlu0 %v791, 64
  %v796 = vpop.permute.xlu0 %795
  %797 = vrot.lane.b32.xlu0 %v792, 64
  %v798 = vpop.permute.xlu0 %797
  %v801 = vmul.f32 %v788, %v796
  %v802 = vmul.f32 %v790, %v798
  %805 = vrot.lane.b32.xlu0 %v801, 64
  %v806 = vpop.permute.xlu0 %805
  %807 = vrot.lane.b32.xlu0 %v802, 64
  %v808 = vpop.permute.xlu0 %807
  %v811 = vadd.f32 %v225, %v806
  %v812 = vadd.f32 %v230, %v808
  %v813 = vtanh.pop %v811
  %v814 = vtanh.pop %v812
  %v815 = vsub.f32 1.0, %v788
  %v816 = vsub.f32 1.0, %v790
  %819 = vrot.lane.b32.xlu0 %v813, 96
  %v820 = vpop.permute.xlu0 %819
  %821 = vrot.lane.b32.xlu0 %v814, 96
  %v822 = vpop.permute.xlu0 %821
  %v825 = vmul.f32 %v815, %v820
  %v826 = vmul.f32 %v816, %v822
  %v827 = vmul.f32 %v788, %v690
  %v828 = vmul.f32 %v790, %v691
  %v829 = vadd.f32 %v825, %v827
  %v830 = vadd.f32 %v826, %v828
  %833 = vrot.lane.b32.xlu0 %v829, 96
  %v834 = vpop.permute.xlu0 %833
  %835 = vrot.lane.b32.xlu0 %v830, 96
  %v836 = vpop.permute.xlu0 %835
  %v837 = vsel %vm273, %v834, 0
  %v839 = vsel %vm273, %v836, 0
  %841 = vmatprep.subr.mxu0 0.0
  %842 = vmatpush1.msra.mxu0 %v51
  %843 = vmatprep.subr.mxu0 0.0
  %844 = vmatpush1.msra.mxu0 %v52
  %845 = vmatprep.subr.mxu0 0.0
  %846 = vmatpush1.msra.mxu0 %v53
  %847 = vmatprep.subr.mxu0 0.0
  %848 = vmatpush1.msra.mxu0 %v54
  %849 = vmatprep.subr.mxu0 0.0
  %850 = vmatpush1.msra.mxu0 0.0
  %851 = vmatprep.subr.mxu0 0.0
  %852 = vmatpush1.msra.mxu0 0.0
  %853 = vmatprep.subr.mxu0 0.0
  %854 = vmatpush1.msra.mxu0 0.0
  %855 = vmatprep.subr.mxu0 0.0
  %856 = vmatpush1.msra.mxu0 0.0
  %857 = vmatprep.subr.mxu0 0.0
  %858 = vmatpush1.msra.mxu0 0.0
  %859 = vmatprep.subr.mxu0 0.0
  %860 = vmatpush1.msra.mxu0 0.0
  %861 = vmatprep.subr.mxu0 0.0
  %862 = vmatpush1.msra.mxu0 0.0
  %863 = vmatprep.subr.mxu0 0.0
  %864 = vmatpush1.msra.mxu0 0.0
  %865 = vmatprep.subr.mxu0 0.0
  %866 = vmatpush1.msra.mxu0 0.0
  %867 = vmatprep.subr.mxu0 0.0
  %868 = vmatpush1.msra.mxu0 0.0
  %869 = vmatprep.subr.mxu0 0.0
  %870 = vmatpush1.msra.mxu0 0.0
  %871 = vmatprep.subr.mxu0 0.0
  %872 = vmatpush1.msra.mxu0 0.0
  %873 = vmatprep.subr.mxu0 0.0
  %874 = vmatpush1.msra.mxu0 0.0
  %875 = vmatprep.subr.mxu0 0.0
  %876 = vmatpush1.msra.mxu0 0.0
  %877 = vmatprep.subr.mxu0 0.0
  %878 = vmatpush1.msra.mxu0 0.0
  %879 = vmatprep.subr.mxu0 0.0
  %880 = vmatpush1.msra.mxu0 0.0
  %881 = vmatprep.subr.mxu0 0.0
  %882 = vmatpush1.msra.mxu0 0.0
  %883 = vmatprep.subr.mxu0 0.0
  %884 = vmatpush1.msra.mxu0 0.0
  %885 = vmatprep.subr.mxu0 0.0
  %886 = vmatpush1.msra.mxu0 0.0
  %887 = vmatprep.subr.mxu0 0.0
  %888 = vmatpush1.msra.mxu0 0.0
  %889 = vmatprep.subr.mxu0 0.0
  %890 = vmatpush1.msra.mxu0 0.0
  %891 = vmatprep.subr.mxu0 0.0
  %892 = vmatpush1.msra.mxu0 0.0
  %893 = vmatprep.subr.mxu0 0.0
  %894 = vmatpush1.msra.mxu0 0.0
  %895 = vmatprep.subr.mxu0 0.0
  %896 = vmatpush1.msra.mxu0 0.0
  %897 = vmatprep.subr.mxu0 0.0
  %898 = vmatpush1.msra.mxu0 0.0
  %899 = vmatprep.subr.mxu0 0.0
  %900 = vmatpush1.msra.mxu0 0.0
  %901 = vmatprep.subr.mxu0 0.0
  %902 = vmatpush1.msra.mxu0 0.0
  %903 = vmatprep.subr.mxu0 0.0
  %904 = vmatpush1.msra.mxu0 0.0
  %905 = vmatprep.mubr.f32.mxu0 0.0
  %906 = vmatmul.mubr.f32.gmra.mrb[0].mxu0 %v837
  %v907 = vpop.f32.mrb[0].mxu0
  %v908 = vadd.f32 0.0, %v907
  %v909 = vpop.f32.mrb[0].mxu0
  %910 = vmatprep.mubr.f32.mxu0 0.0
  %911 = vmatmul.mubr.f32.gmra.mrb[0].mxu0 %v839
  %v912 = vpop.f32.mrb[0].mxu0
  %v913 = vadd.f32 0.0, %v912
  %v914 = vpop.f32.mrb[0].mxu0
  %915 = vdwg.mxu0
  %v916 = vadd.f32 %v235, %v908
  %v917 = vadd.f32 %v240, %v913
  %v918 = vxor.u32 %v916, 2147483648
  %v919 = vxor.u32 %v917, 2147483648
  %v920 = vmul.f32 %v918, 1.442695
  %v921 = vpow.pop %v920
  %v922 = vmul.f32 %v919, 1.442695
  %v923 = vpow.pop %v922
  %v924 = vadd.f32 %v921, 1.0
  %v925 = vadd.f32 %v923, 1.0
  %v926 = vrcp.pop %v924
  %v927 = vmul.f32 1.0, %v926
  %v928 = vrcp.pop %v925
  %v929 = vmul.f32 1.0, %v928
  %v930 = vadd.f32 %v908, %v372
  %v931 = vadd.f32 %v913, %v372
  %934 = vrot.lane.b32.xlu0 %v930, 64
  %v935 = vpop.permute.xlu0 %934
  %936 = vrot.lane.b32.xlu0 %v931, 64
  %v937 = vpop.permute.xlu0 %936
  %v940 = vmul.f32 %v927, %v935
  %v941 = vmul.f32 %v929, %v937
  %944 = vrot.lane.b32.xlu0 %v940, 64
  %v945 = vpop.permute.xlu0 %944
  %946 = vrot.lane.b32.xlu0 %v941, 64
  %v947 = vpop.permute.xlu0 %946
  %v950 = vadd.f32 %v235, %v945
  %v951 = vadd.f32 %v240, %v947
  %v952 = vtanh.pop %v950
  %v953 = vtanh.pop %v951
  %v954 = vsub.f32 1.0, %v927
  %v955 = vsub.f32 1.0, %v929
  %958 = vrot.lane.b32.xlu0 %v952, 96
  %v959 = vpop.permute.xlu0 %958
  %960 = vrot.lane.b32.xlu0 %v953, 96
  %v961 = vpop.permute.xlu0 %960
  %v964 = vmul.f32 %v954, %v959
  %v965 = vmul.f32 %v955, %v961
  %v966 = vmul.f32 %v927, %v829
  %v967 = vmul.f32 %v929, %v830
  %v968 = vadd.f32 %v964, %v966
  %v969 = vadd.f32 %v965, %v967
  %972 = vrot.lane.b32.xlu0 %v968, 96
  %v973 = vpop.permute.xlu0 %972
  %974 = vrot.lane.b32.xlu0 %v969, 96
  %v975 = vpop.permute.xlu0 %974
  %v976 = vsel %vm273, %v973, 0
  %v978 = vsel %vm273, %v975, 0
  %980 = vmatprep.subr.mxu0 0.0
  %981 = vmatpush1.msra.mxu0 %v51
  %982 = vmatprep.subr.mxu0 0.0
  %983 = vmatpush1.msra.mxu0 %v52
  %984 = vmatprep.subr.mxu0 0.0
  %985 = vmatpush1.msra.mxu0 %v53
  %986 = vmatprep.subr.mxu0 0.0
  %987 = vmatpush1.msra.mxu0 %v54
  %988 = vmatprep.subr.mxu0 0.0
  %989 = vmatpush1.msra.mxu0 0.0
  %990 = vmatprep.subr.mxu0 0.0
  %991 = vmatpush1.msra.mxu0 0.0
  %992 = vmatprep.subr.mxu0 0.0
  %993 = vmatpush1.msra.mxu0 0.0
  %994 = vmatprep.subr.mxu0 0.0
  %995 = vmatpush1.msra.mxu0 0.0
  %996 = vmatprep.subr.mxu0 0.0
  %997 = vmatpush1.msra.mxu0 0.0
  %998 = vmatprep.subr.mxu0 0.0
  %999 = vmatpush1.msra.mxu0 0.0
  %1000 = vmatprep.subr.mxu0 0.0
  %1001 = vmatpush1.msra.mxu0 0.0
  %1002 = vmatprep.subr.mxu0 0.0
  %1003 = vmatpush1.msra.mxu0 0.0
  %1004 = vmatprep.subr.mxu0 0.0
  %1005 = vmatpush1.msra.mxu0 0.0
  %1006 = vmatprep.subr.mxu0 0.0
  %1007 = vmatpush1.msra.mxu0 0.0
  %1008 = vmatprep.subr.mxu0 0.0
  %1009 = vmatpush1.msra.mxu0 0.0
  %1010 = vmatprep.subr.mxu0 0.0
  %1011 = vmatpush1.msra.mxu0 0.0
  %1012 = vmatprep.subr.mxu0 0.0
  %1013 = vmatpush1.msra.mxu0 0.0
  %1014 = vmatprep.subr.mxu0 0.0
  %1015 = vmatpush1.msra.mxu0 0.0
  %1016 = vmatprep.subr.mxu0 0.0
  %1017 = vmatpush1.msra.mxu0 0.0
  %1018 = vmatprep.subr.mxu0 0.0
  %1019 = vmatpush1.msra.mxu0 0.0
  %1020 = vmatprep.subr.mxu0 0.0
  %1021 = vmatpush1.msra.mxu0 0.0
  %1022 = vmatprep.subr.mxu0 0.0
  %1023 = vmatpush1.msra.mxu0 0.0
  %1024 = vmatprep.subr.mxu0 0.0
  %1025 = vmatpush1.msra.mxu0 0.0
  %1026 = vmatprep.subr.mxu0 0.0
  %1027 = vmatpush1.msra.mxu0 0.0
  %1028 = vmatprep.subr.mxu0 0.0
  %1029 = vmatpush1.msra.mxu0 0.0
  %1030 = vmatprep.subr.mxu0 0.0
  %1031 = vmatpush1.msra.mxu0 0.0
  %1032 = vmatprep.subr.mxu0 0.0
  %1033 = vmatpush1.msra.mxu0 0.0
  %1034 = vmatprep.subr.mxu0 0.0
  %1035 = vmatpush1.msra.mxu0 0.0
  %1036 = vmatprep.subr.mxu0 0.0
  %1037 = vmatpush1.msra.mxu0 0.0
  %1038 = vmatprep.subr.mxu0 0.0
  %1039 = vmatpush1.msra.mxu0 0.0
  %1040 = vmatprep.subr.mxu0 0.0
  %1041 = vmatpush1.msra.mxu0 0.0
  %1042 = vmatprep.subr.mxu0 0.0
  %1043 = vmatpush1.msra.mxu0 0.0
  %1044 = vmatprep.mubr.f32.mxu0 0.0
  %1045 = vmatmul.mubr.f32.gmra.mrb[0].mxu0 %v976
  %v1046 = vpop.f32.mrb[0].mxu0
  %v1047 = vadd.f32 0.0, %v1046
  %v1048 = vpop.f32.mrb[0].mxu0
  %1049 = vmatprep.mubr.f32.mxu0 0.0
  %1050 = vmatmul.mubr.f32.gmra.mrb[0].mxu0 %v978
  %v1051 = vpop.f32.mrb[0].mxu0
  %v1052 = vadd.f32 0.0, %v1051
  %v1053 = vpop.f32.mrb[0].mxu0
  %1054 = vdwg.mxu0
  %v1055 = vadd.f32 %v245, %v1047
  %v1056 = vadd.f32 %v250, %v1052
  %v1057 = vxor.u32 %v1055, 2147483648
  %v1058 = vxor.u32 %v1056, 2147483648
  %v1059 = vmul.f32 %v1057, 1.442695
  %v1060 = vpow.pop %v1059
  %v1061 = vmul.f32 %v1058, 1.442695
  %v1062 = vpow.pop %v1061
  %v1063 = vadd.f32 %v1060, 1.0
  %v1064 = vadd.f32 %v1062, 1.0
  %v1065 = vrcp.pop %v1063
  %v1066 = vmul.f32 1.0, %v1065
  %v1067 = vrcp.pop %v1064
  %v1068 = vmul.f32 1.0, %v1067
  %v1069 = vadd.f32 %v1047, %v372
  %v1070 = vadd.f32 %v1052, %v372
  %1073 = vrot.lane.b32.xlu0 %v1069, 64
  %v1074 = vpop.permute.xlu0 %1073
  %1075 = vrot.lane.b32.xlu0 %v1070, 64
  %v1076 = vpop.permute.xlu0 %1075
  %v1079 = vmul.f32 %v1066, %v1074
  %v1080 = vmul.f32 %v1068, %v1076
  %1083 = vrot.lane.b32.xlu0 %v1079, 64
  %v1084 = vpop.permute.xlu0 %1083
  %1085 = vrot.lane.b32.xlu0 %v1080, 64
  %v1086 = vpop.permute.xlu0 %1085
  %v1089 = vadd.f32 %v245, %v1084
  %v1090 = vadd.f32 %v250, %v1086
  %v1091 = vtanh.pop %v1089
  %v1092 = vtanh.pop %v1090
  %v1093 = vsub.f32 1.0, %v1066
  %v1094 = vsub.f32 1.0, %v1068
  %1097 = vrot.lane.b32.xlu0 %v1091, 96
  %v1098 = vpop.permute.xlu0 %1097
  %1099 = vrot.lane.b32.xlu0 %v1092, 96
  %v1100 = vpop.permute.xlu0 %1099
  %v1103 = vmul.f32 %v1093, %v1098
  %v1104 = vmul.f32 %v1094, %v1100
  %v1105 = vmul.f32 %v1066, %v968
  %v1106 = vmul.f32 %v1068, %v969
  %v1107 = vadd.f32 %v1103, %v1105
  %v1108 = vadd.f32 %v1104, %v1106
  %1111 = vrot.lane.b32.xlu0 %v1107, 96
  %v1112 = vpop.permute.xlu0 %1111
  %1113 = vrot.lane.b32.xlu0 %v1108, 96
  %v1114 = vpop.permute.xlu0 %1113
  %v1115 = vsel %vm273, %v1112, 0
  %v1117 = vsel %vm273, %v1114, 0
  %1119 = vmatprep.subr.mxu0 0.0
  %1120 = vmatpush1.msra.mxu0 %v51
  %1121 = vmatprep.subr.mxu0 0.0
  %1122 = vmatpush1.msra.mxu0 %v52
  %1123 = vmatprep.subr.mxu0 0.0
  %1124 = vmatpush1.msra.mxu0 %v53
  %1125 = vmatprep.subr.mxu0 0.0
  %1126 = vmatpush1.msra.mxu0 %v54
  %1127 = vmatprep.subr.mxu0 0.0
  %1128 = vmatpush1.msra.mxu0 0.0
  %1129 = vmatprep.subr.mxu0 0.0
  %1130 = vmatpush1.msra.mxu0 0.0
  %1131 = vmatprep.subr.mxu0 0.0
  %1132 = vmatpush1.msra.mxu0 0.0
  %1133 = vmatprep.subr.mxu0 0.0
  %1134 = vmatpush1.msra.mxu0 0.0
  %1135 = vmatprep.subr.mxu0 0.0
  %1136 = vmatpush1.msra.mxu0 0.0
  %1137 = vmatprep.subr.mxu0 0.0
  %1138 = vmatpush1.msra.mxu0 0.0
  %1139 = vmatprep.subr.mxu0 0.0
  %1140 = vmatpush1.msra.mxu0 0.0
  %1141 = vmatprep.subr.mxu0 0.0
  %1142 = vmatpush1.msra.mxu0 0.0
  %1143 = vmatprep.subr.mxu0 0.0
  %1144 = vmatpush1.msra.mxu0 0.0
  %1145 = vmatprep.subr.mxu0 0.0
  %1146 = vmatpush1.msra.mxu0 0.0
  %1147 = vmatprep.subr.mxu0 0.0
  %1148 = vmatpush1.msra.mxu0 0.0
  %1149 = vmatprep.subr.mxu0 0.0
  %1150 = vmatpush1.msra.mxu0 0.0
  %1151 = vmatprep.subr.mxu0 0.0
  %1152 = vmatpush1.msra.mxu0 0.0
  %1153 = vmatprep.subr.mxu0 0.0
  %1154 = vmatpush1.msra.mxu0 0.0
  %1155 = vmatprep.subr.mxu0 0.0
  %1156 = vmatpush1.msra.mxu0 0.0
  %1157 = vmatprep.subr.mxu0 0.0
  %1158 = vmatpush1.msra.mxu0 0.0
  %1159 = vmatprep.subr.mxu0 0.0
  %1160 = vmatpush1.msra.mxu0 0.0
  %1161 = vmatprep.subr.mxu0 0.0
  %1162 = vmatpush1.msra.mxu0 0.0
  %1163 = vmatprep.subr.mxu0 0.0
  %1164 = vmatpush1.msra.mxu0 0.0
  %1165 = vmatprep.subr.mxu0 0.0
  %1166 = vmatpush1.msra.mxu0 0.0
  %1167 = vmatprep.subr.mxu0 0.0
  %1168 = vmatpush1.msra.mxu0 0.0
  %1169 = vmatprep.subr.mxu0 0.0
  %1170 = vmatpush1.msra.mxu0 0.0
  %1171 = vmatprep.subr.mxu0 0.0
  %1172 = vmatpush1.msra.mxu0 0.0
  %1173 = vmatprep.subr.mxu0 0.0
  %1174 = vmatpush1.msra.mxu0 0.0
  %1175 = vmatprep.subr.mxu0 0.0
  %1176 = vmatpush1.msra.mxu0 0.0
  %1177 = vmatprep.subr.mxu0 0.0
  %1178 = vmatpush1.msra.mxu0 0.0
  %1179 = vmatprep.subr.mxu0 0.0
  %1180 = vmatpush1.msra.mxu0 0.0
  %1181 = vmatprep.subr.mxu0 0.0
  %1182 = vmatpush1.msra.mxu0 0.0
  %1183 = vmatprep.mubr.f32.mxu0 0.0
  %1184 = vmatmul.mubr.f32.gmra.mrb[0].mxu0 %v1115
  %v1185 = vpop.f32.mrb[0].mxu0
  %v1186 = vadd.f32 0.0, %v1185
  %v1187 = vpop.f32.mrb[0].mxu0
  %1188 = vmatprep.mubr.f32.mxu0 0.0
  %1189 = vmatmul.mubr.f32.gmra.mrb[0].mxu0 %v1117
  %v1190 = vpop.f32.mrb[0].mxu0
  %v1191 = vadd.f32 0.0, %v1190
  %v1192 = vpop.f32.mrb[0].mxu0
  %1193 = vdwg.mxu0
  %v1194 = vadd.f32 %v255, %v1186
  %v1195 = vadd.f32 %v260, %v1191
  %v1196 = vxor.u32 %v1194, 2147483648
  %v1197 = vxor.u32 %v1195, 2147483648
  %v1198 = vmul.f32 %v1196, 1.442695
  %v1199 = vpow.pop %v1198
  %v1200 = vmul.f32 %v1197, 1.442695
  %v1201 = vpow.pop %v1200
  %v1202 = vadd.f32 %v1199, 1.0
  %v1203 = vadd.f32 %v1201, 1.0
  %v1204 = vrcp.pop %v1202
  %v1205 = vmul.f32 1.0, %v1204
  %v1206 = vrcp.pop %v1203
  %v1207 = vmul.f32 1.0, %v1206
  %v1208 = vadd.f32 %v1186, %v372
  %v1209 = vadd.f32 %v1191, %v372
  %1212 = vrot.lane.b32.xlu0 %v1208, 64
  %v1213 = vpop.permute.xlu0 %1212
  %1214 = vrot.lane.b32.xlu0 %v1209, 64
  %v1215 = vpop.permute.xlu0 %1214
  %v1218 = vmul.f32 %v1205, %v1213
  %v1219 = vmul.f32 %v1207, %v1215
  %1222 = vrot.lane.b32.xlu0 %v1218, 64
  %v1223 = vpop.permute.xlu0 %1222
  %1224 = vrot.lane.b32.xlu0 %v1219, 64
  %v1225 = vpop.permute.xlu0 %1224
  %v1228 = vadd.f32 %v255, %v1223
  %v1229 = vadd.f32 %v260, %v1225
  %v1230 = vtanh.pop %v1228
  %v1231 = vtanh.pop %v1229
  %v1232 = vsub.f32 1.0, %v1205
  %v1233 = vsub.f32 1.0, %v1207
  %1236 = vrot.lane.b32.xlu0 %v1230, 96
  %v1237 = vpop.permute.xlu0 %1236
  %1238 = vrot.lane.b32.xlu0 %v1231, 96
  %v1239 = vpop.permute.xlu0 %1238
  %v1242 = vmul.f32 %v1232, %v1237
  %v1243 = vmul.f32 %v1233, %v1239
  %v1244 = vmul.f32 %v1205, %v1107
  %v1245 = vmul.f32 %v1207, %v1108
  %v1246 = vadd.f32 %v1242, %v1244
  %v1247 = vadd.f32 %v1243, %v1245
  %1250 = vrot.lane.b32.xlu0 %v1246, 96
  %v1251 = vpop.permute.xlu0 %1250
  %1252 = vrot.lane.b32.xlu0 %v1247, 96
  %v1253 = vpop.permute.xlu0 %1252
  %v1254 = vsel %vm273, %v1251, 0
  %v1256 = vsel %vm273, %v1253, 0
  %1258 = vmatprep.subr.mxu0 0.0
  %1259 = vmatpush1.msra.mxu0 %v51
  %1260 = vmatprep.subr.mxu0 0.0
  %1261 = vmatpush1.msra.mxu0 %v52
  %1262 = vmatprep.subr.mxu0 0.0
  %1263 = vmatpush1.msra.mxu0 %v53
  %1264 = vmatprep.subr.mxu0 0.0
  %1265 = vmatpush1.msra.mxu0 %v54
  %1266 = vmatprep.subr.mxu0 0.0
  %1267 = vmatpush1.msra.mxu0 0.0
  %1268 = vmatprep.subr.mxu0 0.0
  %1269 = vmatpush1.msra.mxu0 0.0
  %1270 = vmatprep.subr.mxu0 0.0
  %1271 = vmatpush1.msra.mxu0 0.0
  %1272 = vmatprep.subr.mxu0 0.0
  %1273 = vmatpush1.msra.mxu0 0.0
  %1274 = vmatprep.subr.mxu0 0.0
  %1275 = vmatpush1.msra.mxu0 0.0
  %1276 = vmatprep.subr.mxu0 0.0
  %1277 = vmatpush1.msra.mxu0 0.0
  %1278 = vmatprep.subr.mxu0 0.0
  %1279 = vmatpush1.msra.mxu0 0.0
  %1280 = vmatprep.subr.mxu0 0.0
  %1281 = vmatpush1.msra.mxu0 0.0
  %1282 = vmatprep.subr.mxu0 0.0
  %1283 = vmatpush1.msra.mxu0 0.0
  %1284 = vmatprep.subr.mxu0 0.0
  %1285 = vmatpush1.msra.mxu0 0.0
  %1286 = vmatprep.subr.mxu0 0.0
  %1287 = vmatpush1.msra.mxu0 0.0
  %1288 = vmatprep.subr.mxu0 0.0
  %1289 = vmatpush1.msra.mxu0 0.0
  %1290 = vmatprep.subr.mxu0 0.0
  %1291 = vmatpush1.msra.mxu0 0.0
  %1292 = vmatprep.subr.mxu0 0.0
  %1293 = vmatpush1.msra.mxu0 0.0
  %1294 = vmatprep.subr.mxu0 0.0
  %1295 = vmatpush1.msra.mxu0 0.0
  %1296 = vmatprep.subr.mxu0 0.0
  %1297 = vmatpush1.msra.mxu0 0.0
  %1298 = vmatprep.subr.mxu0 0.0
  %1299 = vmatpush1.msra.mxu0 0.0
  %1300 = vmatprep.subr.mxu0 0.0
  %1301 = vmatpush1.msra.mxu0 0.0
  %1302 = vmatprep.subr.mxu0 0.0
  %1303 = vmatpush1.msra.mxu0 0.0
  %1304 = vmatprep.subr.mxu0 0.0
  %1305 = vmatpush1.msra.mxu0 0.0
  %1306 = vmatprep.subr.mxu0 0.0
  %1307 = vmatpush1.msra.mxu0 0.0
  %1308 = vmatprep.subr.mxu0 0.0
  %1309 = vmatpush1.msra.mxu0 0.0
  %1310 = vmatprep.subr.mxu0 0.0
  %1311 = vmatpush1.msra.mxu0 0.0
  %1312 = vmatprep.subr.mxu0 0.0
  %1313 = vmatpush1.msra.mxu0 0.0
  %1314 = vmatprep.subr.mxu0 0.0
  %1315 = vmatpush1.msra.mxu0 0.0
  %1316 = vmatprep.subr.mxu0 0.0
  %1317 = vmatpush1.msra.mxu0 0.0
  %1318 = vmatprep.subr.mxu0 0.0
  %1319 = vmatpush1.msra.mxu0 0.0
  %1320 = vmatprep.subr.mxu0 0.0
  %1321 = vmatpush1.msra.mxu0 0.0
  %1322 = vmatprep.mubr.f32.mxu0 0.0
  %1323 = vmatmul.mubr.f32.gmra.mrb[0].mxu0 %v1254
  %v1324 = vpop.f32.mrb[0].mxu0
  %v1325 = vadd.f32 0.0, %v1324
  %v1326 = vpop.f32.mrb[0].mxu0
  %1327 = vmatprep.mubr.f32.mxu0 0.0
  %1328 = vmatmul.mubr.f32.gmra.mrb[0].mxu0 %v1256
  %v1329 = vpop.f32.mrb[0].mxu0
  %v1330 = vadd.f32 0.0, %v1329
  %v1331 = vpop.f32.mrb[0].mxu0
  %1332 = vdwg.mxu0
  %v1333 = vadd.f32 %v265, %v1325
  %v1334 = vadd.f32 %v270, %v1330
  %v1335 = vxor.u32 %v1333, 2147483648
  %v1336 = vxor.u32 %v1334, 2147483648
  %v1337 = vmul.f32 %v1335, 1.442695
  %v1338 = vpow.pop %v1337
  %v1339 = vmul.f32 %v1336, 1.442695
  %v1340 = vpow.pop %v1339
  %v1341 = vadd.f32 %v1338, 1.0
  %v1342 = vadd.f32 %v1340, 1.0
  %v1343 = vrcp.pop %v1341
  %v1344 = vmul.f32 1.0, %v1343
  %v1345 = vrcp.pop %v1342
  %v1346 = vmul.f32 1.0, %v1345
  %v1347 = vadd.f32 %v1325, %v372
  %v1348 = vadd.f32 %v1330, %v372
  %1351 = vrot.lane.b32.xlu0 %v1347, 64
  %v1352 = vpop.permute.xlu0 %1351
  %1353 = vrot.lane.b32.xlu0 %v1348, 64
  %v1354 = vpop.permute.xlu0 %1353
  %v1357 = vmul.f32 %v1344, %v1352
  %v1358 = vmul.f32 %v1346, %v1354
  %1361 = vrot.lane.b32.xlu0 %v1357, 64
  %v1362 = vpop.permute.xlu0 %1361
  %1363 = vrot.lane.b32.xlu0 %v1358, 64
  %v1364 = vpop.permute.xlu0 %1363
  %v1367 = vadd.f32 %v265, %v1362
  %v1368 = vadd.f32 %v270, %v1364
  %v1369 = vtanh.pop %v1367
  %v1370 = vtanh.pop %v1368
  %v1371 = vsub.f32 1.0, %v1344
  %v1372 = vsub.f32 1.0, %v1346
  %1375 = vrot.lane.b32.xlu0 %v1369, 96
  %v1376 = vpop.permute.xlu0 %1375
  %1377 = vrot.lane.b32.xlu0 %v1370, 96
  %v1378 = vpop.permute.xlu0 %1377
  %v1381 = vmul.f32 %v1371, %v1376
  %v1382 = vmul.f32 %v1372, %v1378
  %v1383 = vmul.f32 %v1344, %v1246
  %v1384 = vmul.f32 %v1346, %v1247
  %v1385 = vadd.f32 %v1381, %v1383
  %v1386 = vadd.f32 %v1382, %v1384
  %v1387 = vld [vmem:[%s6] sm:$0xff]
  %v1388 = vld [vmem:[%s6 + $0x8] sm:$0xff]
  %v1389 = vld [vmem:[%s6 + $0x10] sm:$0xff]
  %v1390 = vld [vmem:[%s6 + $0x18] sm:$0xff]
  %v1391 = vld [vmem:[%s7] sm:$0xff]
  %v1392 = vld [vmem:[%s7 + $0x8] sm:$0xff]
  %v1393 = vld [vmem:[%s7 + $0x10] sm:$0xff]
  %v1394 = vld [vmem:[%s7 + $0x18] sm:$0xff]
  %v1395 = vld [vmem:[%s8] sm:$0x1]
  %v1396 = vld [vmem:[%s9] sm:$0x1]
  %v1397 = vld [vmem:[%s1] sm:$0xff]
  %v1398 = vld [vmem:[%s1 + $0x8] sm:$0xff]
  %v1399 = vld [vmem:[%s1 + $0x10] sm:$0xff]
  %v1400 = vld [vmem:[%s1 + $0x18] sm:$0xff]
  %v1401 = vld [vmem:[%s1 + $0x20] sm:$0xff]
  %v1402 = vld [vmem:[%s1 + $0x28] sm:$0xff]
  %v1403 = vld [vmem:[%s1 + $0x30] sm:$0xff]
  %v1404 = vld [vmem:[%s1 + $0x38] sm:$0xff]
  %v1405 = vld [vmem:[%s1 + $0x40] sm:$0xff]
  %v1406 = vld [vmem:[%s1 + $0x48] sm:$0xff]
  %v1407 = vld [vmem:[%s1 + $0x50] sm:$0xff]
  %v1408 = vld [vmem:[%s1 + $0x58] sm:$0xff]
  %v1409 = vld [vmem:[%s1 + $0x60] sm:$0xff]
  %v1410 = vld [vmem:[%s1 + $0x68] sm:$0xff]
  %v1411 = vld [vmem:[%s1 + $0x70] sm:$0xff]
  %v1412 = vld [vmem:[%s1 + $0x78] sm:$0xff]
  %v1414 = vlaneseq
  %v1415 = vshrl.u32 %v1414, 7
  %v1416 = vsub.s32 0, %v1415
  %v1417 = vrot.slane %v1395, %v1416
  %v1420 = vsel %vm273, %v1397, 0
  %v1423 = vsel %vm273, %v1398, 0
  %v1426 = vsel %vm273, %v1399, 0
  %v1429 = vsel %vm273, %v1400, 0
  %v1432 = vsel %vm273, %v1401, 0
  %v1435 = vsel %vm273, %v1402, 0
  %v1438 = vsel %vm273, %v1403, 0
  %v1441 = vsel %vm273, %v1404, 0
  %v1444 = vsel %vm273, %v1405, 0
  %v1447 = vsel %vm273, %v1406, 0
  %v1450 = vsel %vm273, %v1407, 0
  %v1453 = vsel %vm273, %v1408, 0
  %v1456 = vsel %vm273, %v1409, 0
  %v1459 = vsel %vm273, %v1410, 0
  %v1462 = vsel %vm273, %v1411, 0
  %v1465 = vsel %vm273, %v1412, 0
  %1467 = vmatprep.subr.mxu0 0.0
  %1468 = vmatpush1.msra.mxu0 %v1387
  %1469 = vmatprep.subr.mxu0 0.0
  %1470 = vmatpush1.msra.mxu0 %v1388
  %1471 = vmatprep.subr.mxu0 0.0
  %1472 = vmatpush1.msra.mxu0 %v1389
  %1473 = vmatprep.subr.mxu0 0.0
  %1474 = vmatpush1.msra.mxu0 %v1390
  %1475 = vmatprep.subr.mxu0 0.0
  %1476 = vmatpush1.msra.mxu0 0.0
  %1477 = vmatprep.subr.mxu0 0.0
  %1478 = vmatpush1.msra.mxu0 0.0
  %1479 = vmatprep.subr.mxu0 0.0
  %1480 = vmatpush1.msra.mxu0 0.0
  %1481 = vmatprep.subr.mxu0 0.0
  %1482 = vmatpush1.msra.mxu0 0.0
  %1483 = vmatprep.subr.mxu0 0.0
  %1484 = vmatpush1.msra.mxu0 0.0
  %1485 = vmatprep.subr.mxu0 0.0
  %1486 = vmatpush1.msra.mxu0 0.0
  %1487 = vmatprep.subr.mxu0 0.0
  %1488 = vmatpush1.msra.mxu0 0.0
  %1489 = vmatprep.subr.mxu0 0.0
  %1490 = vmatpush1.msra.mxu0 0.0
  %1491 = vmatprep.subr.mxu0 0.0
  %1492 = vmatpush1.msra.mxu0 0.0
  %1493 = vmatprep.subr.mxu0 0.0
  %1494 = vmatpush1.msra.mxu0 0.0
  %1495 = vmatprep.subr.mxu0 0.0
  %1496 = vmatpush1.msra.mxu0 0.0
  %1497 = vmatprep.subr.mxu0 0.0
  %1498 = vmatpush1.msra.mxu0 0.0
  %1499 = vmatprep.subr.mxu0 0.0
  %1500 = vmatpush1.msra.mxu0 0.0
  %1501 = vmatprep.subr.mxu0 0.0
  %1502 = vmatpush1.msra.mxu0 0.0
  %1503 = vmatprep.subr.mxu0 0.0
  %1504 = vmatpush1.msra.mxu0 0.0
  %1505 = vmatprep.subr.mxu0 0.0
  %1506 = vmatpush1.msra.mxu0 0.0
  %1507 = vmatprep.subr.mxu0 0.0
  %1508 = vmatpush1.msra.mxu0 0.0
  %1509 = vmatprep.subr.mxu0 0.0
  %1510 = vmatpush1.msra.mxu0 0.0
  %1511 = vmatprep.subr.mxu0 0.0
  %1512 = vmatpush1.msra.mxu0 0.0
  %1513 = vmatprep.subr.mxu0 0.0
  %1514 = vmatpush1.msra.mxu0 0.0
  %1515 = vmatprep.subr.mxu0 0.0
  %1516 = vmatpush1.msra.mxu0 0.0
  %1517 = vmatprep.subr.mxu0 0.0
  %1518 = vmatpush1.msra.mxu0 0.0
  %1519 = vmatprep.subr.mxu0 0.0
  %1520 = vmatpush1.msra.mxu0 0.0
  %1521 = vmatprep.subr.mxu0 0.0
  %1522 = vmatpush1.msra.mxu0 0.0
  %1523 = vmatprep.subr.mxu0 0.0
  %1524 = vmatpush1.msra.mxu0 0.0
  %1525 = vmatprep.subr.mxu0 0.0
  %1526 = vmatpush1.msra.mxu0 0.0
  %1527 = vmatprep.subr.mxu0 0.0
  %1528 = vmatpush1.msra.mxu0 0.0
  %1529 = vmatprep.subr.mxu0 0.0
  %1530 = vmatpush1.msra.mxu0 0.0
  %1531 = vmatprep.mubr.f32.mxu0 0.0
  %1532 = vmatmul.mubr.f32.gmra.mrb[0].mxu0 %v1420
  %v1533 = vpop.f32.mrb[0].mxu0
  %v1534 = vadd.f32 %v1417, %v1533
  %v1535 = vpop.f32.mrb[0].mxu0
  %1536 = vmatprep.mubr.f32.mxu0 0.0
  %1537 = vmatmul.mubr.f32.gmra.mrb[0].mxu0 %v1423
  %v1538 = vpop.f32.mrb[0].mxu0
  %v1539 = vadd.f32 %v1417, %v1538
  %v1540 = vpop.f32.mrb[0].mxu0
  %1541 = vmatprep.mubr.f32.mxu0 0.0
  %1542 = vmatmul.mubr.f32.gmra.mrb[0].mxu0 %v1426
  %v1543 = vpop.f32.mrb[0].mxu0
  %v1544 = vadd.f32 %v1417, %v1543
  %v1545 = vpop.f32.mrb[0].mxu0
  %1546 = vmatprep.mubr.f32.mxu0 0.0
  %1547 = vmatmul.mubr.f32.gmra.mrb[0].mxu0 %v1429
  %v1548 = vpop.f32.mrb[0].mxu0
  %v1549 = vadd.f32 %v1417, %v1548
  %v1550 = vpop.f32.mrb[0].mxu0
  %1551 = vmatprep.mubr.f32.mxu0 0.0
  %1552 = vmatmul.mubr.f32.gmra.mrb[0].mxu0 %v1432
  %v1553 = vpop.f32.mrb[0].mxu0
  %v1554 = vadd.f32 %v1417, %v1553
  %v1555 = vpop.f32.mrb[0].mxu0
  %1556 = vmatprep.mubr.f32.mxu0 0.0
  %1557 = vmatmul.mubr.f32.gmra.mrb[0].mxu0 %v1435
  %v1558 = vpop.f32.mrb[0].mxu0
  %v1559 = vadd.f32 %v1417, %v1558
  %v1560 = vpop.f32.mrb[0].mxu0
  %1561 = vmatprep.mubr.f32.mxu0 0.0
  %1562 = vmatmul.mubr.f32.gmra.mrb[0].mxu0 %v1438
  %v1563 = vpop.f32.mrb[0].mxu0
  %v1564 = vadd.f32 %v1417, %v1563
  %v1565 = vpop.f32.mrb[0].mxu0
  %1566 = vmatprep.mubr.f32.mxu0 0.0
  %1567 = vmatmul.mubr.f32.gmra.mrb[0].mxu0 %v1441
  %v1568 = vpop.f32.mrb[0].mxu0
  %v1569 = vadd.f32 %v1417, %v1568
  %v1570 = vpop.f32.mrb[0].mxu0
  %1571 = vmatprep.mubr.f32.mxu0 0.0
  %1572 = vmatmul.mubr.f32.gmra.mrb[0].mxu0 %v1444
  %v1573 = vpop.f32.mrb[0].mxu0
  %v1574 = vadd.f32 %v1417, %v1573
  %v1575 = vpop.f32.mrb[0].mxu0
  %1576 = vmatprep.mubr.f32.mxu0 0.0
  %1577 = vmatmul.mubr.f32.gmra.mrb[0].mxu0 %v1447
  %v1578 = vpop.f32.mrb[0].mxu0
  %v1579 = vadd.f32 %v1417, %v1578
  %v1580 = vpop.f32.mrb[0].mxu0
  %1581 = vmatprep.mubr.f32.mxu0 0.0
  %1582 = vmatmul.mubr.f32.gmra.mrb[0].mxu0 %v1450
  %v1583 = vpop.f32.mrb[0].mxu0
  %v1584 = vadd.f32 %v1417, %v1583
  %v1585 = vpop.f32.mrb[0].mxu0
  %1586 = vmatprep.mubr.f32.mxu0 0.0
  %1587 = vmatmul.mubr.f32.gmra.mrb[0].mxu0 %v1453
  %v1588 = vpop.f32.mrb[0].mxu0
  %v1589 = vadd.f32 %v1417, %v1588
  %v1590 = vpop.f32.mrb[0].mxu0
  %1591 = vmatprep.mubr.f32.mxu0 0.0
  %1592 = vmatmul.mubr.f32.gmra.mrb[0].mxu0 %v1456
  %v1593 = vpop.f32.mrb[0].mxu0
  %v1594 = vadd.f32 %v1417, %v1593
  %v1595 = vpop.f32.mrb[0].mxu0
  %1596 = vmatprep.mubr.f32.mxu0 0.0
  %1597 = vmatmul.mubr.f32.gmra.mrb[0].mxu0 %v1459
  %v1598 = vpop.f32.mrb[0].mxu0
  %v1599 = vadd.f32 %v1417, %v1598
  %v1600 = vpop.f32.mrb[0].mxu0
  %1601 = vmatprep.mubr.f32.mxu0 0.0
  %1602 = vmatmul.mubr.f32.gmra.mrb[0].mxu0 %v1462
  %v1603 = vpop.f32.mrb[0].mxu0
  %v1604 = vadd.f32 %v1417, %v1603
  %v1605 = vpop.f32.mrb[0].mxu0
  %1606 = vmatprep.mubr.f32.mxu0 0.0
  %1607 = vmatmul.mubr.f32.gmra.mrb[0].mxu0 %v1465
  %v1608 = vpop.f32.mrb[0].mxu0
  %v1609 = vadd.f32 %v1417, %v1608
  %v1610 = vpop.f32.mrb[0].mxu0
  %1611 = vdwg.mxu0
  %1612 = vmatprep.subr.mxu0 0.0
  %1613 = vmatpush1.msra.mxu0 %v1391
  %1614 = vmatprep.subr.mxu0 0.0
  %1615 = vmatpush1.msra.mxu0 %v1392
  %1616 = vmatprep.subr.mxu0 0.0
  %1617 = vmatpush1.msra.mxu0 %v1393
  %1618 = vmatprep.subr.mxu0 0.0
  %1619 = vmatpush1.msra.mxu0 %v1394
  %1620 = vmatprep.subr.mxu0 0.0
  %1621 = vmatpush1.msra.mxu0 0.0
  %1622 = vmatprep.subr.mxu0 0.0
  %1623 = vmatpush1.msra.mxu0 0.0
  %1624 = vmatprep.subr.mxu0 0.0
  %1625 = vmatpush1.msra.mxu0 0.0
  %1626 = vmatprep.subr.mxu0 0.0
  %1627 = vmatpush1.msra.mxu0 0.0
  %1628 = vmatprep.subr.mxu0 0.0
  %1629 = vmatpush1.msra.mxu0 0.0
  %1630 = vmatprep.subr.mxu0 0.0
  %1631 = vmatpush1.msra.mxu0 0.0
  %1632 = vmatprep.subr.mxu0 0.0
  %1633 = vmatpush1.msra.mxu0 0.0
  %1634 = vmatprep.subr.mxu0 0.0
  %1635 = vmatpush1.msra.mxu0 0.0
  %1636 = vmatprep.subr.mxu0 0.0
  %1637 = vmatpush1.msra.mxu0 0.0
  %1638 = vmatprep.subr.mxu0 0.0
  %1639 = vmatpush1.msra.mxu0 0.0
  %1640 = vmatprep.subr.mxu0 0.0
  %1641 = vmatpush1.msra.mxu0 0.0
  %1642 = vmatprep.subr.mxu0 0.0
  %1643 = vmatpush1.msra.mxu0 0.0
  %1644 = vmatprep.subr.mxu0 0.0
  %1645 = vmatpush1.msra.mxu0 0.0
  %1646 = vmatprep.subr.mxu0 0.0
  %1647 = vmatpush1.msra.mxu0 0.0
  %1648 = vmatprep.subr.mxu0 0.0
  %1649 = vmatpush1.msra.mxu0 0.0
  %1650 = vmatprep.subr.mxu0 0.0
  %1651 = vmatpush1.msra.mxu0 0.0
  %1652 = vmatprep.subr.mxu0 0.0
  %1653 = vmatpush1.msra.mxu0 0.0
  %1654 = vmatprep.subr.mxu0 0.0
  %1655 = vmatpush1.msra.mxu0 0.0
  %1656 = vmatprep.subr.mxu0 0.0
  %1657 = vmatpush1.msra.mxu0 0.0
  %1658 = vmatprep.subr.mxu0 0.0
  %1659 = vmatpush1.msra.mxu0 0.0
  %1660 = vmatprep.subr.mxu0 0.0
  %1661 = vmatpush1.msra.mxu0 0.0
  %1662 = vmatprep.subr.mxu0 0.0
  %1663 = vmatpush1.msra.mxu0 0.0
  %1664 = vmatprep.subr.mxu0 0.0
  %1665 = vmatpush1.msra.mxu0 0.0
  %1666 = vmatprep.subr.mxu0 0.0
  %1667 = vmatpush1.msra.mxu0 0.0
  %1668 = vmatprep.subr.mxu0 0.0
  %1669 = vmatpush1.msra.mxu0 0.0
  %1670 = vmatprep.subr.mxu0 0.0
  %1671 = vmatpush1.msra.mxu0 0.0
  %1672 = vmatprep.subr.mxu0 0.0
  %1673 = vmatpush1.msra.mxu0 0.0
  %1674 = vmatprep.subr.mxu0 0.0
  %1675 = vmatpush1.msra.mxu0 0.0
  %1676 = vmatprep.mubr.f32.mxu0 0.0
  %1677 = vmatmul.mubr.f32.gmra.mrb[0].mxu0 %v275
  %v1678 = vpop.f32.mrb[0].mxu0
  %v1679 = vadd.f32 0.0, %v1678
  %v1680 = vpop.f32.mrb[0].mxu0
  %1681 = vmatprep.mubr.f32.mxu0 0.0
  %1682 = vmatmul.mubr.f32.gmra.mrb[0].mxu0 %v275
  %v1683 = vpop.f32.mrb[0].mxu0
  %v1684 = vadd.f32 0.0, %v1683
  %v1685 = vpop.f32.mrb[0].mxu0
  %1686 = vdwg.mxu0
  %v1687 = vadd.f32 %v1534, %v1679
  %v1688 = vadd.f32 %v1539, %v1684
  %v1689 = vxor.u32 %v1687, 2147483648
  %v1690 = vxor.u32 %v1688, 2147483648
  %v1691 = vmul.f32 %v1689, 1.442695
  %v1692 = vpow.pop %v1691
  %v1693 = vmul.f32 %v1690, 1.442695
  %v1694 = vpow.pop %v1693
  %v1695 = vadd.f32 %v1692, 1.0
  %v1696 = vadd.f32 %v1694, 1.0
  %v1697 = vrcp.pop %v1695
  %v1698 = vmul.f32 1.0, %v1697
  %v1699 = vrcp.pop %v1696
  %v1700 = vmul.f32 1.0, %v1699
  %v1702 = vlaneseq
  %v1703 = vshrl.u32 %v1702, 7
  %v1704 = vsub.s32 0, %v1703
  %v1705 = vrot.slane %v1396, %v1704
  %1706 = vrot.lane.b32.xlu0 %v1705, 64
  %v1707 = vpop.permute.xlu0 %1706
  %v1709 = vadd.f32 %v1679, %v1707
  %v1710 = vadd.f32 %v1684, %v1707
  %1713 = vrot.lane.b32.xlu0 %v1709, 64
  %v1714 = vpop.permute.xlu0 %1713
  %1715 = vrot.lane.b32.xlu0 %v1710, 64
  %v1716 = vpop.permute.xlu0 %1715
  %v1719 = vmul.f32 %v1698, %v1714
  %v1720 = vmul.f32 %v1700, %v1716
  %1723 = vrot.lane.b32.xlu0 %v1719, 64
  %v1724 = vpop.permute.xlu0 %1723
  %1725 = vrot.lane.b32.xlu0 %v1720, 64
  %v1726 = vpop.permute.xlu0 %1725
  %v1729 = vadd.f32 %v1534, %v1724
  %v1730 = vadd.f32 %v1539, %v1726
  %v1731 = vtanh.pop %v1729
  %v1732 = vtanh.pop %v1730
  %v1733 = vsub.f32 1.0, %v1698
  %v1734 = vsub.f32 1.0, %v1700
  %1737 = vrot.lane.b32.xlu0 %v1731, 96
  %v1738 = vpop.permute.xlu0 %1737
  %1739 = vrot.lane.b32.xlu0 %v1732, 96
  %v1740 = vpop.permute.xlu0 %1739
  %v1743 = vmul.f32 %v1733, %v1738
  %v1744 = vmul.f32 %v1734, %v1740
  %v1745 = vmul.f32 %v1698, 0.0
  %v1746 = vmul.f32 %v1700, 0.0
  %v1747 = vadd.f32 %v1743, %v1745
  %v1748 = vadd.f32 %v1744, %v1746
  %1751 = vrot.lane.b32.xlu0 %v1747, 96
  %v1752 = vpop.permute.xlu0 %1751
  %1753 = vrot.lane.b32.xlu0 %v1748, 96
  %v1754 = vpop.permute.xlu0 %1753
  %v1755 = vsel %vm273, %v1752, 0
  %v1757 = vsel %vm273, %v1754, 0
  %1759 = vmatprep.subr.mxu0 0.0
  %1760 = vmatpush1.msra.mxu0 %v1391
  %1761 = vmatprep.subr.mxu0 0.0
  %1762 = vmatpush1.msra.mxu0 %v1392
  %1763 = vmatprep.subr.mxu0 0.0
  %1764 = vmatpush1.msra.mxu0 %v1393
  %1765 = vmatprep.subr.mxu0 0.0
  %1766 = vmatpush1.msra.mxu0 %v1394
  %1767 = vmatprep.subr.mxu0 0.0
  %1768 = vmatpush1.msra.mxu0 0.0
  %1769 = vmatprep.subr.mxu0 0.0
  %1770 = vmatpush1.msra.mxu0 0.0
  %1771 = vmatprep.subr.mxu0 0.0
  %1772 = vmatpush1.msra.mxu0 0.0
  %1773 = vmatprep.subr.mxu0 0.0
  %1774 = vmatpush1.msra.mxu0 0.0
  %1775 = vmatprep.subr.mxu0 0.0
  %1776 = vmatpush1.msra.mxu0 0.0
  %1777 = vmatprep.subr.mxu0 0.0
  %1778 = vmatpush1.msra.mxu0 0.0
  %1779 = vmatprep.subr.mxu0 0.0
  %1780 = vmatpush1.msra.mxu0 0.0
  %1781 = vmatprep.subr.mxu0 0.0
  %1782 = vmatpush1.msra.mxu0 0.0
  %1783 = vmatprep.subr.mxu0 0.0
  %1784 = vmatpush1.msra.mxu0 0.0
  %1785 = vmatprep.subr.mxu0 0.0
  %1786 = vmatpush1.msra.mxu0 0.0
  %1787 = vmatprep.subr.mxu0 0.0
  %1788 = vmatpush1.msra.mxu0 0.0
  %1789 = vmatprep.subr.mxu0 0.0
  %1790 = vmatpush1.msra.mxu0 0.0
  %1791 = vmatprep.subr.mxu0 0.0
  %1792 = vmatpush1.msra.mxu0 0.0
  %1793 = vmatprep.subr.mxu0 0.0
  %1794 = vmatpush1.msra.mxu0 0.0
  %1795 = vmatprep.subr.mxu0 0.0
  %1796 = vmatpush1.msra.mxu0 0.0
  %1797 = vmatprep.subr.mxu0 0.0
  %1798 = vmatpush1.msra.mxu0 0.0
  %1799 = vmatprep.subr.mxu0 0.0
  %1800 = vmatpush1.msra.mxu0 0.0
  %1801 = vmatprep.subr.mxu0 0.0
  %1802 = vmatpush1.msra.mxu0 0.0
  %1803 = vmatprep.subr.mxu0 0.0
  %1804 = vmatpush1.msra.mxu0 0.0
  %1805 = vmatprep.subr.mxu0 0.0
  %1806 = vmatpush1.msra.mxu0 0.0
  %1807 = vmatprep.subr.mxu0 0.0
  %1808 = vmatpush1.msra.mxu0 0.0
  %1809 = vmatprep.subr.mxu0 0.0
  %1810 = vmatpush1.msra.mxu0 0.0
  %1811 = vmatprep.subr.mxu0 0.0
  %1812 = vmatpush1.msra.mxu0 0.0
  %1813 = vmatprep.subr.mxu0 0.0
  %1814 = vmatpush1.msra.mxu0 0.0
  %1815 = vmatprep.subr.mxu0 0.0
  %1816 = vmatpush1.msra.mxu0 0.0
  %1817 = vmatprep.subr.mxu0 0.0
  %1818 = vmatpush1.msra.mxu0 0.0
  %1819 = vmatprep.subr.mxu0 0.0
  %1820 = vmatpush1.msra.mxu0 0.0
  %1821 = vmatprep.subr.mxu0 0.0
  %1822 = vmatpush1.msra.mxu0 0.0
  %1823 = vmatprep.mubr.f32.mxu0 0.0
  %1824 = vmatmul.mubr.f32.gmra.mrb[0].mxu0 %v1755
  %v1825 = vpop.f32.mrb[0].mxu0
  %v1826 = vadd.f32 0.0, %v1825
  %v1827 = vpop.f32.mrb[0].mxu0
  %1828 = vmatprep.mubr.f32.mxu0 0.0
  %1829 = vmatmul.mubr.f32.gmra.mrb[0].mxu0 %v1757
  %v1830 = vpop.f32.mrb[0].mxu0
  %v1831 = vadd.f32 0.0, %v1830
  %v1832 = vpop.f32.mrb[0].mxu0
  %1833 = vdwg.mxu0
  %v1834 = vadd.f32 %v1544, %v1826
  %v1835 = vadd.f32 %v1549, %v1831
  %v1836 = vxor.u32 %v1834, 2147483648
  %v1837 = vxor.u32 %v1835, 2147483648
  %v1838 = vmul.f32 %v1836, 1.442695
  %v1839 = vpow.pop %v1838
  %v1840 = vmul.f32 %v1837, 1.442695
  %v1841 = vpow.pop %v1840
  %v1842 = vadd.f32 %v1839, 1.0
  %v1843 = vadd.f32 %v1841, 1.0
  %v1844 = vrcp.pop %v1842
  %v1845 = vmul.f32 1.0, %v1844
  %v1846 = vrcp.pop %v1843
  %v1847 = vmul.f32 1.0, %v1846
  %v1848 = vadd.f32 %v1826, %v1707
  %v1849 = vadd.f32 %v1831, %v1707
  %1852 = vrot.lane.b32.xlu0 %v1848, 64
  %v1853 = vpop.permute.xlu0 %1852
  %1854 = vrot.lane.b32.xlu0 %v1849, 64
  %v1855 = vpop.permute.xlu0 %1854
  %v1858 = vmul.f32 %v1845, %v1853
  %v1859 = vmul.f32 %v1847, %v1855
  %1862 = vrot.lane.b32.xlu0 %v1858, 64
  %v1863 = vpop.permute.xlu0 %1862
  %1864 = vrot.lane.b32.xlu0 %v1859, 64
  %v1865 = vpop.permute.xlu0 %1864
  %v1868 = vadd.f32 %v1544, %v1863
  %v1869 = vadd.f32 %v1549, %v1865
  %v1870 = vtanh.pop %v1868
  %v1871 = vtanh.pop %v1869
  %v1872 = vsub.f32 1.0, %v1845
  %v1873 = vsub.f32 1.0, %v1847
  %1876 = vrot.lane.b32.xlu0 %v1870, 96
  %v1877 = vpop.permute.xlu0 %1876
  %1878 = vrot.lane.b32.xlu0 %v1871, 96
  %v1879 = vpop.permute.xlu0 %1878
  %v1882 = vmul.f32 %v1872, %v1877
  %v1883 = vmul.f32 %v1873, %v1879
  %v1884 = vmul.f32 %v1845, %v1747
  %v1885 = vmul.f32 %v1847, %v1748
  %v1886 = vadd.f32 %v1882, %v1884
  %v1887 = vadd.f32 %v1883, %v1885
  %1890 = vrot.lane.b32.xlu0 %v1886, 96
  %v1891 = vpop.permute.xlu0 %1890
  %1892 = vrot.lane.b32.xlu0 %v1887, 96
  %v1893 = vpop.permute.xlu0 %1892
  %v1894 = vsel %vm273, %v1891, 0
  %v1896 = vsel %vm273, %v1893, 0
  %1898 = vmatprep.subr.mxu0 0.0
  %1899 = vmatpush1.msra.mxu0 %v1391
  %1900 = vmatprep.subr.mxu0 0.0
  %1901 = vmatpush1.msra.mxu0 %v1392
  %1902 = vmatprep.subr.mxu0 0.0
  %1903 = vmatpush1.msra.mxu0 %v1393
  %1904 = vmatprep.subr.mxu0 0.0
  %1905 = vmatpush1.msra.mxu0 %v1394
  %1906 = vmatprep.subr.mxu0 0.0
  %1907 = vmatpush1.msra.mxu0 0.0
  %1908 = vmatprep.subr.mxu0 0.0
  %1909 = vmatpush1.msra.mxu0 0.0
  %1910 = vmatprep.subr.mxu0 0.0
  %1911 = vmatpush1.msra.mxu0 0.0
  %1912 = vmatprep.subr.mxu0 0.0
  %1913 = vmatpush1.msra.mxu0 0.0
  %1914 = vmatprep.subr.mxu0 0.0
  %1915 = vmatpush1.msra.mxu0 0.0
  %1916 = vmatprep.subr.mxu0 0.0
  %1917 = vmatpush1.msra.mxu0 0.0
  %1918 = vmatprep.subr.mxu0 0.0
  %1919 = vmatpush1.msra.mxu0 0.0
  %1920 = vmatprep.subr.mxu0 0.0
  %1921 = vmatpush1.msra.mxu0 0.0
  %1922 = vmatprep.subr.mxu0 0.0
  %1923 = vmatpush1.msra.mxu0 0.0
  %1924 = vmatprep.subr.mxu0 0.0
  %1925 = vmatpush1.msra.mxu0 0.0
  %1926 = vmatprep.subr.mxu0 0.0
  %1927 = vmatpush1.msra.mxu0 0.0
  %1928 = vmatprep.subr.mxu0 0.0
  %1929 = vmatpush1.msra.mxu0 0.0
  %1930 = vmatprep.subr.mxu0 0.0
  %1931 = vmatpush1.msra.mxu0 0.0
  %1932 = vmatprep.subr.mxu0 0.0
  %1933 = vmatpush1.msra.mxu0 0.0
  %1934 = vmatprep.subr.mxu0 0.0
  %1935 = vmatpush1.msra.mxu0 0.0
  %1936 = vmatprep.subr.mxu0 0.0
  %1937 = vmatpush1.msra.mxu0 0.0
  %1938 = vmatprep.subr.mxu0 0.0
  %1939 = vmatpush1.msra.mxu0 0.0
  %1940 = vmatprep.subr.mxu0 0.0
  %1941 = vmatpush1.msra.mxu0 0.0
  %1942 = vmatprep.subr.mxu0 0.0
  %1943 = vmatpush1.msra.mxu0 0.0
  %1944 = vmatprep.subr.mxu0 0.0
  %1945 = vmatpush1.msra.mxu0 0.0
  %1946 = vmatprep.subr.mxu0 0.0
  %1947 = vmatpush1.msra.mxu0 0.0
  %1948 = vmatprep.subr.mxu0 0.0
  %1949 = vmatpush1.msra.mxu0 0.0
  %1950 = vmatprep.subr.mxu0 0.0
  %1951 = vmatpush1.msra.mxu0 0.0
  %1952 = vmatprep.subr.mxu0 0.0
  %1953 = vmatpush1.msra.mxu0 0.0
  %1954 = vmatprep.subr.mxu0 0.0
  %1955 = vmatpush1.msra.mxu0 0.0
  %1956 = vmatprep.subr.mxu0 0.0
  %1957 = vmatpush1.msra.mxu0 0.0
  %1958 = vmatprep.subr.mxu0 0.0
  %1959 = vmatpush1.msra.mxu0 0.0
  %1960 = vmatprep.subr.mxu0 0.0
  %1961 = vmatpush1.msra.mxu0 0.0
  %1962 = vmatprep.mubr.f32.mxu0 0.0
  %1963 = vmatmul.mubr.f32.gmra.mrb[0].mxu0 %v1894
  %v1964 = vpop.f32.mrb[0].mxu0
  %v1965 = vadd.f32 0.0, %v1964
  %v1966 = vpop.f32.mrb[0].mxu0
  %1967 = vmatprep.mubr.f32.mxu0 0.0
  %1968 = vmatmul.mubr.f32.gmra.mrb[0].mxu0 %v1896
  %v1969 = vpop.f32.mrb[0].mxu0
  %v1970 = vadd.f32 0.0, %v1969
  %v1971 = vpop.f32.mrb[0].mxu0
  %1972 = vdwg.mxu0
  %v1973 = vadd.f32 %v1554, %v1965
  %v1974 = vadd.f32 %v1559, %v1970
  %v1975 = vxor.u32 %v1973, 2147483648
  %v1976 = vxor.u32 %v1974, 2147483648
  %v1977 = vmul.f32 %v1975, 1.442695
  %v1978 = vpow.pop %v1977
  %v1979 = vmul.f32 %v1976, 1.442695
  %v1980 = vpow.pop %v1979
  %v1981 = vadd.f32 %v1978, 1.0
  %v1982 = vadd.f32 %v1980, 1.0
  %v1983 = vrcp.pop %v1981
  %v1984 = vmul.f32 1.0, %v1983
  %v1985 = vrcp.pop %v1982
  %v1986 = vmul.f32 1.0, %v1985
  %v1987 = vadd.f32 %v1965, %v1707
  %v1988 = vadd.f32 %v1970, %v1707
  %1991 = vrot.lane.b32.xlu0 %v1987, 64
  %v1992 = vpop.permute.xlu0 %1991
  %1993 = vrot.lane.b32.xlu0 %v1988, 64
  %v1994 = vpop.permute.xlu0 %1993
  %v1997 = vmul.f32 %v1984, %v1992
  %v1998 = vmul.f32 %v1986, %v1994
  %2001 = vrot.lane.b32.xlu0 %v1997, 64
  %v2002 = vpop.permute.xlu0 %2001
  %2003 = vrot.lane.b32.xlu0 %v1998, 64
  %v2004 = vpop.permute.xlu0 %2003
  %v2007 = vadd.f32 %v1554, %v2002
  %v2008 = vadd.f32 %v1559, %v2004
  %v2009 = vtanh.pop %v2007
  %v2010 = vtanh.pop %v2008
  %v2011 = vsub.f32 1.0, %v1984
  %v2012 = vsub.f32 1.0, %v1986
  %2015 = vrot.lane.b32.xlu0 %v2009, 96
  %v2016 = vpop.permute.xlu0 %2015
  %2017 = vrot.lane.b32.xlu0 %v2010, 96
  %v2018 = vpop.permute.xlu0 %2017
  %v2021 = vmul.f32 %v2011, %v2016
  %v2022 = vmul.f32 %v2012, %v2018
  %v2023 = vmul.f32 %v1984, %v1886
  %v2024 = vmul.f32 %v1986, %v1887
  %v2025 = vadd.f32 %v2021, %v2023
  %v2026 = vadd.f32 %v2022, %v2024
  %2029 = vrot.lane.b32.xlu0 %v2025, 96
  %v2030 = vpop.permute.xlu0 %2029
  %2031 = vrot.lane.b32.xlu0 %v2026, 96
  %v2032 = vpop.permute.xlu0 %2031
  %v2033 = vsel %vm273, %v2030, 0
  %v2035 = vsel %vm273, %v2032, 0
  %2037 = vmatprep.subr.mxu0 0.0
  %2038 = vmatpush1.msra.mxu0 %v1391
  %2039 = vmatprep.subr.mxu0 0.0
  %2040 = vmatpush1.msra.mxu0 %v1392
  %2041 = vmatprep.subr.mxu0 0.0
  %2042 = vmatpush1.msra.mxu0 %v1393
  %2043 = vmatprep.subr.mxu0 0.0
  %2044 = vmatpush1.msra.mxu0 %v1394
  %2045 = vmatprep.subr.mxu0 0.0
  %2046 = vmatpush1.msra.mxu0 0.0
  %2047 = vmatprep.subr.mxu0 0.0
  %2048 = vmatpush1.msra.mxu0 0.0
  %2049 = vmatprep.subr.mxu0 0.0
  %2050 = vmatpush1.msra.mxu0 0.0
  %2051 = vmatprep.subr.mxu0 0.0
  %2052 = vmatpush1.msra.mxu0 0.0
  %2053 = vmatprep.subr.mxu0 0.0
  %2054 = vmatpush1.msra.mxu0 0.0
  %2055 = vmatprep.subr.mxu0 0.0
  %2056 = vmatpush1.msra.mxu0 0.0
  %2057 = vmatprep.subr.mxu0 0.0
  %2058 = vmatpush1.msra.mxu0 0.0
  %2059 = vmatprep.subr.mxu0 0.0
  %2060 = vmatpush1.msra.mxu0 0.0
  %2061 = vmatprep.subr.mxu0 0.0
  %2062 = vmatpush1.msra.mxu0 0.0
  %2063 = vmatprep.subr.mxu0 0.0
  %2064 = vmatpush1.msra.mxu0 0.0
  %2065 = vmatprep.subr.mxu0 0.0
  %2066 = vmatpush1.msra.mxu0 0.0
  %2067 = vmatprep.subr.mxu0 0.0
  %2068 = vmatpush1.msra.mxu0 0.0
  %2069 = vmatprep.subr.mxu0 0.0
  %2070 = vmatpush1.msra.mxu0 0.0
  %2071 = vmatprep.subr.mxu0 0.0
  %2072 = vmatpush1.msra.mxu0 0.0
  %2073 = vmatprep.subr.mxu0 0.0
  %2074 = vmatpush1.msra.mxu0 0.0
  %2075 = vmatprep.subr.mxu0 0.0
  %2076 = vmatpush1.msra.mxu0 0.0
  %2077 = vmatprep.subr.mxu0 0.0
  %2078 = vmatpush1.msra.mxu0 0.0
  %2079 = vmatprep.subr.mxu0 0.0
  %2080 = vmatpush1.msra.mxu0 0.0
  %2081 = vmatprep.subr.mxu0 0.0
  %2082 = vmatpush1.msra.mxu0 0.0
  %2083 = vmatprep.subr.mxu0 0.0
  %2084 = vmatpush1.msra.mxu0 0.0
  %2085 = vmatprep.subr.mxu0 0.0
  %2086 = vmatpush1.msra.mxu0 0.0
  %2087 = vmatprep.subr.mxu0 0.0
  %2088 = vmatpush1.msra.mxu0 0.0
  %2089 = vmatprep.subr.mxu0 0.0
  %2090 = vmatpush1.msra.mxu0 0.0
  %2091 = vmatprep.subr.mxu0 0.0
  %2092 = vmatpush1.msra.mxu0 0.0
  %2093 = vmatprep.subr.mxu0 0.0
  %2094 = vmatpush1.msra.mxu0 0.0
  %2095 = vmatprep.subr.mxu0 0.0
  %2096 = vmatpush1.msra.mxu0 0.0
  %2097 = vmatprep.subr.mxu0 0.0
  %2098 = vmatpush1.msra.mxu0 0.0
  %2099 = vmatprep.subr.mxu0 0.0
  %2100 = vmatpush1.msra.mxu0 0.0
  %2101 = vmatprep.mubr.f32.mxu0 0.0
  %2102 = vmatmul.mubr.f32.gmra.mrb[0].mxu0 %v2033
  %v2103 = vpop.f32.mrb[0].mxu0
  %v2104 = vadd.f32 0.0, %v2103
  %v2105 = vpop.f32.mrb[0].mxu0
  %2106 = vmatprep.mubr.f32.mxu0 0.0
  %2107 = vmatmul.mubr.f32.gmra.mrb[0].mxu0 %v2035
  %v2108 = vpop.f32.mrb[0].mxu0
  %v2109 = vadd.f32 0.0, %v2108
  %v2110 = vpop.f32.mrb[0].mxu0
  %2111 = vdwg.mxu0
  %v2112 = vadd.f32 %v1564, %v2104
  %v2113 = vadd.f32 %v1569, %v2109
  %v2114 = vxor.u32 %v2112, 2147483648
  %v2115 = vxor.u32 %v2113, 2147483648
  %v2116 = vmul.f32 %v2114, 1.442695
  %v2117 = vpow.pop %v2116
  %v2118 = vmul.f32 %v2115, 1.442695
  %v2119 = vpow.pop %v2118
  %v2120 = vadd.f32 %v2117, 1.0
  %v2121 = vadd.f32 %v2119, 1.0
  %v2122 = vrcp.pop %v2120
  %v2123 = vmul.f32 1.0, %v2122
  %v2124 = vrcp.pop %v2121
  %v2125 = vmul.f32 1.0, %v2124
  %v2126 = vadd.f32 %v2104, %v1707
  %v2127 = vadd.f32 %v2109, %v1707
  %2130 = vrot.lane.b32.xlu0 %v2126, 64
  %v2131 = vpop.permute.xlu0 %2130
  %2132 = vrot.lane.b32.xlu0 %v2127, 64
  %v2133 = vpop.permute.xlu0 %2132
  %v2136 = vmul.f32 %v2123, %v2131
  %v2137 = vmul.f32 %v2125, %v2133
  %2140 = vrot.lane.b32.xlu0 %v2136, 64
  %v2141 = vpop.permute.xlu0 %2140
  %2142 = vrot.lane.b32.xlu0 %v2137, 64
  %v2143 = vpop.permute.xlu0 %2142
  %v2146 = vadd.f32 %v1564, %v2141
  %v2147 = vadd.f32 %v1569, %v2143
  %v2148 = vtanh.pop %v2146
  %v2149 = vtanh.pop %v2147
  %v2150 = vsub.f32 1.0, %v2123
  %v2151 = vsub.f32 1.0, %v2125
  %2154 = vrot.lane.b32.xlu0 %v2148, 96
  %v2155 = vpop.permute.xlu0 %2154
  %2156 = vrot.lane.b32.xlu0 %v2149, 96
  %v2157 = vpop.permute.xlu0 %2156
  %v2160 = vmul.f32 %v2150, %v2155
  %v2161 = vmul.f32 %v2151, %v2157
  %v2162 = vmul.f32 %v2123, %v2025
  %v2163 = vmul.f32 %v2125, %v2026
  %v2164 = vadd.f32 %v2160, %v2162
  %v2165 = vadd.f32 %v2161, %v2163
  %2168 = vrot.lane.b32.xlu0 %v2164, 96
  %v2169 = vpop.permute.xlu0 %2168
  %2170 = vrot.lane.b32.xlu0 %v2165, 96
  %v2171 = vpop.permute.xlu0 %2170
  %v2172 = vsel %vm273, %v2169, 0
  %v2174 = vsel %vm273, %v2171, 0
  %2176 = vmatprep.subr.mxu0 0.0
  %2177 = vmatpush1.msra.mxu0 %v1391
  %2178 = vmatprep.subr.mxu0 0.0
  %2179 = vmatpush1.msra.mxu0 %v1392
  %2180 = vmatprep.subr.mxu0 0.0
  %2181 = vmatpush1.msra.mxu0 %v1393
  %2182 = vmatprep.subr.mxu0 0.0
  %2183 = vmatpush1.msra.mxu0 %v1394
  %2184 = vmatprep.subr.mxu0 0.0
  %2185 = vmatpush1.msra.mxu0 0.0
  %2186 = vmatprep.subr.mxu0 0.0
  %2187 = vmatpush1.msra.mxu0 0.0
  %2188 = vmatprep.subr.mxu0 0.0
  %2189 = vmatpush1.msra.mxu0 0.0
  %2190 = vmatprep.subr.mxu0 0.0
  %2191 = vmatpush1.msra.mxu0 0.0
  %2192 = vmatprep.subr.mxu0 0.0
  %2193 = vmatpush1.msra.mxu0 0.0
  %2194 = vmatprep.subr.mxu0 0.0
  %2195 = vmatpush1.msra.mxu0 0.0
  %2196 = vmatprep.subr.mxu0 0.0
  %2197 = vmatpush1.msra.mxu0 0.0
  %2198 = vmatprep.subr.mxu0 0.0
  %2199 = vmatpush1.msra.mxu0 0.0
  %2200 = vmatprep.subr.mxu0 0.0
  %2201 = vmatpush1.msra.mxu0 0.0
  %2202 = vmatprep.subr.mxu0 0.0
  %2203 = vmatpush1.msra.mxu0 0.0
  %2204 = vmatprep.subr.mxu0 0.0
  %2205 = vmatpush1.msra.mxu0 0.0
  %2206 = vmatprep.subr.mxu0 0.0
  %2207 = vmatpush1.msra.mxu0 0.0
  %2208 = vmatprep.subr.mxu0 0.0
  %2209 = vmatpush1.msra.mxu0 0.0
  %2210 = vmatprep.subr.mxu0 0.0
  %2211 = vmatpush1.msra.mxu0 0.0
  %2212 = vmatprep.subr.mxu0 0.0
  %2213 = vmatpush1.msra.mxu0 0.0
  %2214 = vmatprep.subr.mxu0 0.0
  %2215 = vmatpush1.msra.mxu0 0.0
  %2216 = vmatprep.subr.mxu0 0.0
  %2217 = vmatpush1.msra.mxu0 0.0
  %2218 = vmatprep.subr.mxu0 0.0
  %2219 = vmatpush1.msra.mxu0 0.0
  %2220 = vmatprep.subr.mxu0 0.0
  %2221 = vmatpush1.msra.mxu0 0.0
  %2222 = vmatprep.subr.mxu0 0.0
  %2223 = vmatpush1.msra.mxu0 0.0
  %2224 = vmatprep.subr.mxu0 0.0
  %2225 = vmatpush1.msra.mxu0 0.0
  %2226 = vmatprep.subr.mxu0 0.0
  %2227 = vmatpush1.msra.mxu0 0.0
  %2228 = vmatprep.subr.mxu0 0.0
  %2229 = vmatpush1.msra.mxu0 0.0
  %2230 = vmatprep.subr.mxu0 0.0
  %2231 = vmatpush1.msra.mxu0 0.0
  %2232 = vmatprep.subr.mxu0 0.0
  %2233 = vmatpush1.msra.mxu0 0.0
  %2234 = vmatprep.subr.mxu0 0.0
  %2235 = vmatpush1.msra.mxu0 0.0
  %2236 = vmatprep.subr.mxu0 0.0
  %2237 = vmatpush1.msra.mxu0 0.0
  %2238 = vmatprep.subr.mxu0 0.0
  %2239 = vmatpush1.msra.mxu0 0.0
  %2240 = vmatprep.mubr.f32.mxu0 0.0
  %2241 = vmatmul.mubr.f32.gmra.mrb[0].mxu0 %v2172
  %v2242 = vpop.f32.mrb[0].mxu0
  %v2243 = vadd.f32 0.0, %v2242
  %v2244 = vpop.f32.mrb[0].mxu0
  %2245 = vmatprep.mubr.f32.mxu0 0.0
  %2246 = vmatmul.mubr.f32.gmra.mrb[0].mxu0 %v2174
  %v2247 = vpop.f32.mrb[0].mxu0
  %v2248 = vadd.f32 0.0, %v2247
  %v2249 = vpop.f32.mrb[0].mxu0
  %2250 = vdwg.mxu0
  %v2251 = vadd.f32 %v1574, %v2243
  %v2252 = vadd.f32 %v1579, %v2248
  %v2253 = vxor.u32 %v2251, 2147483648
  %v2254 = vxor.u32 %v2252, 2147483648
  %v2255 = vmul.f32 %v2253, 1.442695
  %v2256 = vpow.pop %v2255
  %v2257 = vmul.f32 %v2254, 1.442695
  %v2258 = vpow.pop %v2257
  %v2259 = vadd.f32 %v2256, 1.0
  %v2260 = vadd.f32 %v2258, 1.0
  %v2261 = vrcp.pop %v2259
  %v2262 = vmul.f32 1.0, %v2261
  %v2263 = vrcp.pop %v2260
  %v2264 = vmul.f32 1.0, %v2263
  %v2265 = vadd.f32 %v2243, %v1707
  %v2266 = vadd.f32 %v2248, %v1707
  %2269 = vrot.lane.b32.xlu0 %v2265, 64
  %v2270 = vpop.permute.xlu0 %2269
  %2271 = vrot.lane.b32.xlu0 %v2266, 64
  %v2272 = vpop.permute.xlu0 %2271
  %v2275 = vmul.f32 %v2262, %v2270
  %v2276 = vmul.f32 %v2264, %v2272
  %2279 = vrot.lane.b32.xlu0 %v2275, 64
  %v2280 = vpop.permute.xlu0 %2279
  %2281 = vrot.lane.b32.xlu0 %v2276, 64
  %v2282 = vpop.permute.xlu0 %2281
  %v2285 = vadd.f32 %v1574, %v2280
  %v2286 = vadd.f32 %v1579, %v2282
  %v2287 = vtanh.pop %v2285
  %v2288 = vtanh.pop %v2286
  %v2289 = vsub.f32 1.0, %v2262
  %v2290 = vsub.f32 1.0, %v2264
  %2293 = vrot.lane.b32.xlu0 %v2287, 96
  %v2294 = vpop.permute.xlu0 %2293
  %2295 = vrot.lane.b32.xlu0 %v2288, 96
  %v2296 = vpop.permute.xlu0 %2295
  %v2299 = vmul.f32 %v2289, %v2294
  %v2300 = vmul.f32 %v2290, %v2296
  %v2301 = vmul.f32 %v2262, %v2164
  %v2302 = vmul.f32 %v2264, %v2165
  %v2303 = vadd.f32 %v2299, %v2301
  %v2304 = vadd.f32 %v2300, %v2302
  %2307 = vrot.lane.b32.xlu0 %v2303, 96
  %v2308 = vpop.permute.xlu0 %2307
  %2309 = vrot.lane.b32.xlu0 %v2304, 96
  %v2310 = vpop.permute.xlu0 %2309
  %v2311 = vsel %vm273, %v2308, 0
  %v2313 = vsel %vm273, %v2310, 0
  %2315 = vmatprep.subr.mxu0 0.0
  %2316 = vmatpush1.msra.mxu0 %v1391
  %2317 = vmatprep.subr.mxu0 0.0
  %2318 = vmatpush1.msra.mxu0 %v1392
  %2319 = vmatprep.subr.mxu0 0.0
  %2320 = vmatpush1.msra.mxu0 %v1393
  %2321 = vmatprep.subr.mxu0 0.0
  %2322 = vmatpush1.msra.mxu0 %v1394
  %2323 = vmatprep.subr.mxu0 0.0
  %2324 = vmatpush1.msra.mxu0 0.0
  %2325 = vmatprep.subr.mxu0 0.0
  %2326 = vmatpush1.msra.mxu0 0.0
  %2327 = vmatprep.subr.mxu0 0.0
  %2328 = vmatpush1.msra.mxu0 0.0
  %2329 = vmatprep.subr.mxu0 0.0
  %2330 = vmatpush1.msra.mxu0 0.0
  %2331 = vmatprep.subr.mxu0 0.0
  %2332 = vmatpush1.msra.mxu0 0.0
  %2333 = vmatprep.subr.mxu0 0.0
  %2334 = vmatpush1.msra.mxu0 0.0
  %2335 = vmatprep.subr.mxu0 0.0
  %2336 = vmatpush1.msra.mxu0 0.0
  %2337 = vmatprep.subr.mxu0 0.0
  %2338 = vmatpush1.msra.mxu0 0.0
  %2339 = vmatprep.subr.mxu0 0.0
  %2340 = vmatpush1.msra.mxu0 0.0
  %2341 = vmatprep.subr.mxu0 0.0
  %2342 = vmatpush1.msra.mxu0 0.0
  %2343 = vmatprep.subr.mxu0 0.0
  %2344 = vmatpush1.msra.mxu0 0.0
  %2345 = vmatprep.subr.mxu0 0.0
  %2346 = vmatpush1.msra.mxu0 0.0
  %2347 = vmatprep.subr.mxu0 0.0
  %2348 = vmatpush1.msra.mxu0 0.0
  %2349 = vmatprep.subr.mxu0 0.0
  %2350 = vmatpush1.msra.mxu0 0.0
  %2351 = vmatprep.subr.mxu0 0.0
  %2352 = vmatpush1.msra.mxu0 0.0
  %2353 = vmatprep.subr.mxu0 0.0
  %2354 = vmatpush1.msra.mxu0 0.0
  %2355 = vmatprep.subr.mxu0 0.0
  %2356 = vmatpush1.msra.mxu0 0.0
  %2357 = vmatprep.subr.mxu0 0.0
  %2358 = vmatpush1.msra.mxu0 0.0
  %2359 = vmatprep.subr.mxu0 0.0
  %2360 = vmatpush1.msra.mxu0 0.0
  %2361 = vmatprep.subr.mxu0 0.0
  %2362 = vmatpush1.msra.mxu0 0.0
  %2363 = vmatprep.subr.mxu0 0.0
  %2364 = vmatpush1.msra.mxu0 0.0
  %2365 = vmatprep.subr.mxu0 0.0
  %2366 = vmatpush1.msra.mxu0 0.0
  %2367 = vmatprep.subr.mxu0 0.0
  %2368 = vmatpush1.msra.mxu0 0.0
  %2369 = vmatprep.subr.mxu0 0.0
  %2370 = vmatpush1.msra.mxu0 0.0
  %2371 = vmatprep.subr.mxu0 0.0
  %2372 = vmatpush1.msra.mxu0 0.0
  %2373 = vmatprep.subr.mxu0 0.0
  %2374 = vmatpush1.msra.mxu0 0.0
  %2375 = vmatprep.subr.mxu0 0.0
  %2376 = vmatpush1.msra.mxu0 0.0
  %2377 = vmatprep.subr.mxu0 0.0
  %2378 = vmatpush1.msra.mxu0 0.0
  %2379 = vmatprep.mubr.f32.mxu0 0.0
  %2380 = vmatmul.mubr.f32.gmra.mrb[0].mxu0 %v2311
  %v2381 = vpop.f32.mrb[0].mxu0
  %v2382 = vadd.f32 0.0, %v2381
  %v2383 = vpop.f32.mrb[0].mxu0
  %2384 = vmatprep.mubr.f32.mxu0 0.0
  %2385 = vmatmul.mubr.f32.gmra.mrb[0].mxu0 %v2313
  %v2386 = vpop.f32.mrb[0].mxu0
  %v2387 = vadd.f32 0.0, %v2386
  %v2388 = vpop.f32.mrb[0].mxu0
  %2389 = vdwg.mxu0
  %v2390 = vadd.f32 %v1584, %v2382
  %v2391 = vadd.f32 %v1589, %v2387
  %v2392 = vxor.u32 %v2390, 2147483648
  %v2393 = vxor.u32 %v2391, 2147483648
  %v2394 = vmul.f32 %v2392, 1.442695
  %v2395 = vpow.pop %v2394
  %v2396 = vmul.f32 %v2393, 1.442695
  %v2397 = vpow.pop %v2396
  %v2398 = vadd.f32 %v2395, 1.0
  %v2399 = vadd.f32 %v2397, 1.0
  %v2400 = vrcp.pop %v2398
  %v2401 = vmul.f32 1.0, %v2400
  %v2402 = vrcp.pop %v2399
  %v2403 = vmul.f32 1.0, %v2402
  %v2404 = vadd.f32 %v2382, %v1707
  %v2405 = vadd.f32 %v2387, %v1707
  %2408 = vrot.lane.b32.xlu0 %v2404, 64
  %v2409 = vpop.permute.xlu0 %2408
  %2410 = vrot.lane.b32.xlu0 %v2405, 64
  %v2411 = vpop.permute.xlu0 %2410
  %v2414 = vmul.f32 %v2401, %v2409
  %v2415 = vmul.f32 %v2403, %v2411
  %2418 = vrot.lane.b32.xlu0 %v2414, 64
  %v2419 = vpop.permute.xlu0 %2418
  %2420 = vrot.lane.b32.xlu0 %v2415, 64
  %v2421 = vpop.permute.xlu0 %2420
  %v2424 = vadd.f32 %v1584, %v2419
  %v2425 = vadd.f32 %v1589, %v2421
  %v2426 = vtanh.pop %v2424
  %v2427 = vtanh.pop %v2425
  %v2428 = vsub.f32 1.0, %v2401
  %v2429 = vsub.f32 1.0, %v2403
  %2432 = vrot.lane.b32.xlu0 %v2426, 96
  %v2433 = vpop.permute.xlu0 %2432
  %2434 = vrot.lane.b32.xlu0 %v2427, 96
  %v2435 = vpop.permute.xlu0 %2434
  %v2438 = vmul.f32 %v2428, %v2433
  %v2439 = vmul.f32 %v2429, %v2435
  %v2440 = vmul.f32 %v2401, %v2303
  %v2441 = vmul.f32 %v2403, %v2304
  %v2442 = vadd.f32 %v2438, %v2440
  %v2443 = vadd.f32 %v2439, %v2441
  %2446 = vrot.lane.b32.xlu0 %v2442, 96
  %v2447 = vpop.permute.xlu0 %2446
  %2448 = vrot.lane.b32.xlu0 %v2443, 96
  %v2449 = vpop.permute.xlu0 %2448
  %v2450 = vsel %vm273, %v2447, 0
  %v2452 = vsel %vm273, %v2449, 0
  %2454 = vmatprep.subr.mxu0 0.0
  %2455 = vmatpush1.msra.mxu0 %v1391
  %2456 = vmatprep.subr.mxu0 0.0
  %2457 = vmatpush1.msra.mxu0 %v1392
  %2458 = vmatprep.subr.mxu0 0.0
  %2459 = vmatpush1.msra.mxu0 %v1393
  %2460 = vmatprep.subr.mxu0 0.0
  %2461 = vmatpush1.msra.mxu0 %v1394
  %2462 = vmatprep.subr.mxu0 0.0
  %2463 = vmatpush1.msra.mxu0 0.0
  %2464 = vmatprep.subr.mxu0 0.0
  %2465 = vmatpush1.msra.mxu0 0.0
  %2466 = vmatprep.subr.mxu0 0.0
  %2467 = vmatpush1.msra.mxu0 0.0
  %2468 = vmatprep.subr.mxu0 0.0
  %2469 = vmatpush1.msra.mxu0 0.0
  %2470 = vmatprep.subr.mxu0 0.0
  %2471 = vmatpush1.msra.mxu0 0.0
  %2472 = vmatprep.subr.mxu0 0.0
  %2473 = vmatpush1.msra.mxu0 0.0
  %2474 = vmatprep.subr.mxu0 0.0
  %2475 = vmatpush1.msra.mxu0 0.0
  %2476 = vmatprep.subr.mxu0 0.0
  %2477 = vmatpush1.msra.mxu0 0.0
  %2478 = vmatprep.subr.mxu0 0.0
  %2479 = vmatpush1.msra.mxu0 0.0
  %2480 = vmatprep.subr.mxu0 0.0
  %2481 = vmatpush1.msra.mxu0 0.0
  %2482 = vmatprep.subr.mxu0 0.0
  %2483 = vmatpush1.msra.mxu0 0.0
  %2484 = vmatprep.subr.mxu0 0.0
  %2485 = vmatpush1.msra.mxu0 0.0
  %2486 = vmatprep.subr.mxu0 0.0
  %2487 = vmatpush1.msra.mxu0 0.0
  %2488 = vmatprep.subr.mxu0 0.0
  %2489 = vmatpush1.msra.mxu0 0.0
  %2490 = vmatprep.subr.mxu0 0.0
  %2491 = vmatpush1.msra.mxu0 0.0
  %2492 = vmatprep.subr.mxu0 0.0
  %2493 = vmatpush1.msra.mxu0 0.0
  %2494 = vmatprep.subr.mxu0 0.0
  %2495 = vmatpush1.msra.mxu0 0.0
  %2496 = vmatprep.subr.mxu0 0.0
  %2497 = vmatpush1.msra.mxu0 0.0
  %2498 = vmatprep.subr.mxu0 0.0
  %2499 = vmatpush1.msra.mxu0 0.0
  %2500 = vmatprep.subr.mxu0 0.0
  %2501 = vmatpush1.msra.mxu0 0.0
  %2502 = vmatprep.subr.mxu0 0.0
  %2503 = vmatpush1.msra.mxu0 0.0
  %2504 = vmatprep.subr.mxu0 0.0
  %2505 = vmatpush1.msra.mxu0 0.0
  %2506 = vmatprep.subr.mxu0 0.0
  %2507 = vmatpush1.msra.mxu0 0.0
  %2508 = vmatprep.subr.mxu0 0.0
  %2509 = vmatpush1.msra.mxu0 0.0
  %2510 = vmatprep.subr.mxu0 0.0
  %2511 = vmatpush1.msra.mxu0 0.0
  %2512 = vmatprep.subr.mxu0 0.0
  %2513 = vmatpush1.msra.mxu0 0.0
  %2514 = vmatprep.subr.mxu0 0.0
  %2515 = vmatpush1.msra.mxu0 0.0
  %2516 = vmatprep.subr.mxu0 0.0
  %2517 = vmatpush1.msra.mxu0 0.0
  %2518 = vmatprep.mubr.f32.mxu0 0.0
  %2519 = vmatmul.mubr.f32.gmra.mrb[0].mxu0 %v2450
  %v2520 = vpop.f32.mrb[0].mxu0
  %v2521 = vadd.f32 0.0, %v2520
  %v2522 = vpop.f32.mrb[0].mxu0
  %2523 = vmatprep.mubr.f32.mxu0 0.0
  %2524 = vmatmul.mubr.f32.gmra.mrb[0].mxu0 %v2452
  %v2525 = vpop.f32.mrb[0].mxu0
  %v2526 = vadd.f32 0.0, %v2525
  %v2527 = vpop.f32.mrb[0].mxu0
  %2528 = vdwg.mxu0
  %v2529 = vadd.f32 %v1594, %v2521
  %v2530 = vadd.f32 %v1599, %v2526
  %v2531 = vxor.u32 %v2529, 2147483648
  %v2532 = vxor.u32 %v2530, 2147483648
  %v2533 = vmul.f32 %v2531, 1.442695
  %v2534 = vpow.pop %v2533
  %v2535 = vmul.f32 %v2532, 1.442695
  %v2536 = vpow.pop %v2535
  %v2537 = vadd.f32 %v2534, 1.0
  %v2538 = vadd.f32 %v2536, 1.0
  %v2539 = vrcp.pop %v2537
  %v2540 = vmul.f32 1.0, %v2539
  %v2541 = vrcp.pop %v2538
  %v2542 = vmul.f32 1.0, %v2541
  %v2543 = vadd.f32 %v2521, %v1707
  %v2544 = vadd.f32 %v2526, %v1707
  %2547 = vrot.lane.b32.xlu0 %v2543, 64
  %v2548 = vpop.permute.xlu0 %2547
  %2549 = vrot.lane.b32.xlu0 %v2544, 64
  %v2550 = vpop.permute.xlu0 %2549
  %v2553 = vmul.f32 %v2540, %v2548
  %v2554 = vmul.f32 %v2542, %v2550
  %2557 = vrot.lane.b32.xlu0 %v2553, 64
  %v2558 = vpop.permute.xlu0 %2557
  %2559 = vrot.lane.b32.xlu0 %v2554, 64
  %v2560 = vpop.permute.xlu0 %2559
  %v2563 = vadd.f32 %v1594, %v2558
  %v2564 = vadd.f32 %v1599, %v2560
  %v2565 = vtanh.pop %v2563
  %v2566 = vtanh.pop %v2564
  %v2567 = vsub.f32 1.0, %v2540
  %v2568 = vsub.f32 1.0, %v2542
  %2571 = vrot.lane.b32.xlu0 %v2565, 96
  %v2572 = vpop.permute.xlu0 %2571
  %2573 = vrot.lane.b32.xlu0 %v2566, 96
  %v2574 = vpop.permute.xlu0 %2573
  %v2577 = vmul.f32 %v2567, %v2572
  %v2578 = vmul.f32 %v2568, %v2574
  %v2579 = vmul.f32 %v2540, %v2442
  %v2580 = vmul.f32 %v2542, %v2443
  %v2581 = vadd.f32 %v2577, %v2579
  %v2582 = vadd.f32 %v2578, %v2580
  %2585 = vrot.lane.b32.xlu0 %v2581, 96
  %v2586 = vpop.permute.xlu0 %2585
  %2587 = vrot.lane.b32.xlu0 %v2582, 96
  %v2588 = vpop.permute.xlu0 %2587
  %v2589 = vsel %vm273, %v2586, 0
  %v2591 = vsel %vm273, %v2588, 0
  %2593 = vmatprep.subr.mxu0 0.0
  %2594 = vmatpush1.msra.mxu0 %v1391
  %2595 = vmatprep.subr.mxu0 0.0
  %2596 = vmatpush1.msra.mxu0 %v1392
  %2597 = vmatprep.subr.mxu0 0.0
  %2598 = vmatpush1.msra.mxu0 %v1393
  %2599 = vmatprep.subr.mxu0 0.0
  %2600 = vmatpush1.msra.mxu0 %v1394
  %2601 = vmatprep.subr.mxu0 0.0
  %2602 = vmatpush1.msra.mxu0 0.0
  %2603 = vmatprep.subr.mxu0 0.0
  %2604 = vmatpush1.msra.mxu0 0.0
  %2605 = vmatprep.subr.mxu0 0.0
  %2606 = vmatpush1.msra.mxu0 0.0
  %2607 = vmatprep.subr.mxu0 0.0
  %2608 = vmatpush1.msra.mxu0 0.0
  %2609 = vmatprep.subr.mxu0 0.0
  %2610 = vmatpush1.msra.mxu0 0.0
  %2611 = vmatprep.subr.mxu0 0.0
  %2612 = vmatpush1.msra.mxu0 0.0
  %2613 = vmatprep.subr.mxu0 0.0
  %2614 = vmatpush1.msra.mxu0 0.0
  %2615 = vmatprep.subr.mxu0 0.0
  %2616 = vmatpush1.msra.mxu0 0.0
  %2617 = vmatprep.subr.mxu0 0.0
  %2618 = vmatpush1.msra.mxu0 0.0
  %2619 = vmatprep.subr.mxu0 0.0
  %2620 = vmatpush1.msra.mxu0 0.0
  %2621 = vmatprep.subr.mxu0 0.0
  %2622 = vmatpush1.msra.mxu0 0.0
  %2623 = vmatprep.subr.mxu0 0.0
  %2624 = vmatpush1.msra.mxu0 0.0
  %2625 = vmatprep.subr.mxu0 0.0
  %2626 = vmatpush1.msra.mxu0 0.0
  %2627 = vmatprep.subr.mxu0 0.0
  %2628 = vmatpush1.msra.mxu0 0.0
  %2629 = vmatprep.subr.mxu0 0.0
  %2630 = vmatpush1.msra.mxu0 0.0
  %2631 = vmatprep.subr.mxu0 0.0
  %2632 = vmatpush1.msra.mxu0 0.0
  %2633 = vmatprep.subr.mxu0 0.0
  %2634 = vmatpush1.msra.mxu0 0.0
  %2635 = vmatprep.subr.mxu0 0.0
  %2636 = vmatpush1.msra.mxu0 0.0
  %2637 = vmatprep.subr.mxu0 0.0
  %2638 = vmatpush1.msra.mxu0 0.0
  %2639 = vmatprep.subr.mxu0 0.0
  %2640 = vmatpush1.msra.mxu0 0.0
  %2641 = vmatprep.subr.mxu0 0.0
  %2642 = vmatpush1.msra.mxu0 0.0
  %2643 = vmatprep.subr.mxu0 0.0
  %2644 = vmatpush1.msra.mxu0 0.0
  %2645 = vmatprep.subr.mxu0 0.0
  %2646 = vmatpush1.msra.mxu0 0.0
  %2647 = vmatprep.subr.mxu0 0.0
  %2648 = vmatpush1.msra.mxu0 0.0
  %2649 = vmatprep.subr.mxu0 0.0
  %2650 = vmatpush1.msra.mxu0 0.0
  %2651 = vmatprep.subr.mxu0 0.0
  %2652 = vmatpush1.msra.mxu0 0.0
  %2653 = vmatprep.subr.mxu0 0.0
  %2654 = vmatpush1.msra.mxu0 0.0
  %2655 = vmatprep.subr.mxu0 0.0
  %2656 = vmatpush1.msra.mxu0 0.0
  %2657 = vmatprep.mubr.f32.mxu0 0.0
  %2658 = vmatmul.mubr.f32.gmra.mrb[0].mxu0 %v2589
  %v2659 = vpop.f32.mrb[0].mxu0
  %v2660 = vadd.f32 0.0, %v2659
  %v2661 = vpop.f32.mrb[0].mxu0
  %2662 = vmatprep.mubr.f32.mxu0 0.0
  %2663 = vmatmul.mubr.f32.gmra.mrb[0].mxu0 %v2591
  %v2664 = vpop.f32.mrb[0].mxu0
  %v2665 = vadd.f32 0.0, %v2664
  %v2666 = vpop.f32.mrb[0].mxu0
  %2667 = vdwg.mxu0
  %v2668 = vadd.f32 %v1604, %v2660
  %v2669 = vadd.f32 %v1609, %v2665
  %v2670 = vxor.u32 %v2668, 2147483648
  %v2671 = vxor.u32 %v2669, 2147483648
  %v2672 = vmul.f32 %v2670, 1.442695
  %v2673 = vpow.pop %v2672
  %v2674 = vmul.f32 %v2671, 1.442695
  %v2675 = vpow.pop %v2674
  %v2676 = vadd.f32 %v2673, 1.0
  %v2677 = vadd.f32 %v2675, 1.0
  %v2678 = vrcp.pop %v2676
  %v2679 = vmul.f32 1.0, %v2678
  %v2680 = vrcp.pop %v2677
  %v2681 = vmul.f32 1.0, %v2680
  %v2682 = vadd.f32 %v2660, %v1707
  %v2683 = vadd.f32 %v2665, %v1707
  %2686 = vrot.lane.b32.xlu0 %v2682, 64
  %v2687 = vpop.permute.xlu0 %2686
  %2688 = vrot.lane.b32.xlu0 %v2683, 64
  %v2689 = vpop.permute.xlu0 %2688
  %v2692 = vmul.f32 %v2679, %v2687
  %v2693 = vmul.f32 %v2681, %v2689
  %2696 = vrot.lane.b32.xlu0 %v2692, 64
  %v2697 = vpop.permute.xlu0 %2696
  %2698 = vrot.lane.b32.xlu0 %v2693, 64
  %v2699 = vpop.permute.xlu0 %2698
  %v2702 = vadd.f32 %v1604, %v2697
  %v2703 = vadd.f32 %v1609, %v2699
  %v2704 = vtanh.pop %v2702
  %v2705 = vtanh.pop %v2703
  %v2706 = vsub.f32 1.0, %v2679
  %v2707 = vsub.f32 1.0, %v2681
  %2710 = vrot.lane.b32.xlu0 %v2704, 96
  %v2711 = vpop.permute.xlu0 %2710
  %2712 = vrot.lane.b32.xlu0 %v2705, 96
  %v2713 = vpop.permute.xlu0 %2712
  %v2716 = vmul.f32 %v2706, %v2711
  %v2717 = vmul.f32 %v2707, %v2713
  %v2718 = vmul.f32 %v2679, %v2581
  %v2719 = vmul.f32 %v2681, %v2582
  %v2720 = vadd.f32 %v2716, %v2718
  %v2721 = vadd.f32 %v2717, %v2719
  %v2722 = vsub.f32 %v1385, %v1386
  %v2723 = vand.u32 2147483647, %v2722
  %v2724 = vmul.f32 %v1385, %v1386
  %v2725 = vsub.f32 %v2720, %v2721
  %v2726 = vand.u32 2147483647, %v2725
  %v2727 = vmul.f32 %v2720, %v2721
  %2729 = vrot.lane.b32.xlu0 %v1385, 96
  %v2730 = vpop.permute.xlu0 %2729
  %2733 = vrot.lane.b32.xlu0 %v2723, 32
  %v2734 = vpop.permute.xlu0 %2733
  %2737 = vrot.lane.b32.xlu0 %v2724, 64
  %v2738 = vpop.permute.xlu0 %2737
  %2741 = vrot.lane.b32.xlu0 %v2720, 96
  %v2742 = vpop.permute.xlu0 %2741
  %2745 = vrot.lane.b32.xlu0 %v2726, 32
  %v2746 = vpop.permute.xlu0 %2745
  %2749 = vrot.lane.b32.xlu0 %v2727, 64
  %v2750 = vpop.permute.xlu0 %2749
  %v2752 = vsel %vm273, %v2730, %v1386
  %vm2753 = vcmask 523264
  %v2754 = vsel %vm2753, %v2752, %v2734
  %vm2755 = vcmask 785408
  %v2756 = vsel %vm2755, %v2754, %v2738
  %v2757 = vsel %vm273, %v2742, %v2721
  %v2758 = vsel %vm2753, %v2757, %v2746
  %v2759 = vsel %vm2755, %v2758, %v2750
  %v2760 = vld [vmem:[%s10] sm:$0xff]
  %v2761 = vld [vmem:[%s10 + $0x8] sm:$0xff]
  %v2762 = vld [vmem:[%s10 + $0x10] sm:$0xff]
  %v2763 = vld [vmem:[%s10 + $0x18] sm:$0xff]
  %v2764 = vld [vmem:[%s10 + $0x20] sm:$0xff]
  %v2765 = vld [vmem:[%s10 + $0x28] sm:$0xff]
  %v2766 = vld [vmem:[%s10 + $0x30] sm:$0xff]
  %v2767 = vld [vmem:[%s10 + $0x38] sm:$0xff]
  %v2768 = vld [vmem:[%s10 + $0x40] sm:$0xff]
  %v2769 = vld [vmem:[%s10 + $0x48] sm:$0xff]
  %v2770 = vld [vmem:[%s10 + $0x50] sm:$0xff]
  %v2771 = vld [vmem:[%s10 + $0x58] sm:$0xff]
  %v2772 = vld [vmem:[%s10 + $0x60] sm:$0xff]
  %v2773 = vld [vmem:[%s10 + $0x68] sm:$0xff]
  %v2774 = vld [vmem:[%s10 + $0x70] sm:$0xff]
  %v2775 = vld [vmem:[%s10 + $0x78] sm:$0xff]
  %v2776 = vld [vmem:[%s10 + $0x80] sm:$0xff]
  %v2777 = vld [vmem:[%s10 + $0x88] sm:$0xff]
  %v2778 = vld [vmem:[%s10 + $0x90] sm:$0xff]
  %v2779 = vld [vmem:[%s10 + $0x98] sm:$0xff]
  %v2780 = vld [vmem:[%s10 + $0xa0] sm:$0xff]
  %v2781 = vld [vmem:[%s10 + $0xa8] sm:$0xff]
  %v2782 = vld [vmem:[%s10 + $0xb0] sm:$0xff]
  %v2783 = vld [vmem:[%s10 + $0xb8] sm:$0xff]
  %v2784 = vld [vmem:[%s10 + $0xc0] sm:$0xff]
  %v2785 = vld [vmem:[%s10 + $0xc8] sm:$0xff]
  %v2786 = vld [vmem:[%s10 + $0xd0] sm:$0xff]
  %v2787 = vld [vmem:[%s10 + $0xd8] sm:$0xff]
  %v2788 = vld [vmem:[%s10 + $0xe0] sm:$0xff]
  %v2789 = vld [vmem:[%s10 + $0xe8] sm:$0xff]
  %v2790 = vld [vmem:[%s10 + $0xf0] sm:$0xff]
  %v2791 = vld [vmem:[%s10 + $0xf8] sm:$0xff]
  %v2792 = vld [vmem:[%s11] sm:$0x1]
  %v2794 = vlaneseq
  %v2795 = vshrl.u32 %v2794, 7
  %v2796 = vsub.s32 0, %v2795
  %v2797 = vrot.slane %v2792, %v2796
  %2799 = vmatprep.subr.mxu0 0.0
  %2800 = vmatpush1.msra.mxu0 %v2760
  %2801 = vmatprep.subr.mxu0 0.0
  %2802 = vmatpush1.msra.mxu0 %v2761
  %2803 = vmatprep.subr.mxu0 0.0
  %2804 = vmatpush1.msra.mxu0 %v2762
  %2805 = vmatprep.subr.mxu0 0.0
  %2806 = vmatpush1.msra.mxu0 %v2763
  %2807 = vmatprep.subr.mxu0 0.0
  %2808 = vmatpush1.msra.mxu0 %v2764
  %2809 = vmatprep.subr.mxu0 0.0
  %2810 = vmatpush1.msra.mxu0 %v2765
  %2811 = vmatprep.subr.mxu0 0.0
  %2812 = vmatpush1.msra.mxu0 %v2766
  %2813 = vmatprep.subr.mxu0 0.0
  %2814 = vmatpush1.msra.mxu0 %v2767
  %2815 = vmatprep.subr.mxu0 0.0
  %2816 = vmatpush1.msra.mxu0 %v2768
  %2817 = vmatprep.subr.mxu0 0.0
  %2818 = vmatpush1.msra.mxu0 %v2769
  %2819 = vmatprep.subr.mxu0 0.0
  %2820 = vmatpush1.msra.mxu0 %v2770
  %2821 = vmatprep.subr.mxu0 0.0
  %2822 = vmatpush1.msra.mxu0 %v2771
  %2823 = vmatprep.subr.mxu0 0.0
  %2824 = vmatpush1.msra.mxu0 %v2772
  %2825 = vmatprep.subr.mxu0 0.0
  %2826 = vmatpush1.msra.mxu0 %v2773
  %2827 = vmatprep.subr.mxu0 0.0
  %2828 = vmatpush1.msra.mxu0 %v2774
  %2829 = vmatprep.subr.mxu0 0.0
  %2830 = vmatpush1.msra.mxu0 %v2775
  %2831 = vmatprep.subr.mxu0 0.0
  %2832 = vmatpush1.msra.mxu0 %v2776
  %2833 = vmatprep.subr.mxu0 0.0
  %2834 = vmatpush1.msra.mxu0 %v2777
  %2835 = vmatprep.subr.mxu0 0.0
  %2836 = vmatpush1.msra.mxu0 %v2778
  %2837 = vmatprep.subr.mxu0 0.0
  %2838 = vmatpush1.msra.mxu0 %v2779
  %2839 = vmatprep.subr.mxu0 0.0
  %2840 = vmatpush1.msra.mxu0 %v2780
  %2841 = vmatprep.subr.mxu0 0.0
  %2842 = vmatpush1.msra.mxu0 %v2781
  %2843 = vmatprep.subr.mxu0 0.0
  %2844 = vmatpush1.msra.mxu0 %v2782
  %2845 = vmatprep.subr.mxu0 0.0
  %2846 = vmatpush1.msra.mxu0 %v2783
  %2847 = vmatprep.subr.mxu0 0.0
  %2848 = vmatpush1.msra.mxu0 %v2784
  %2849 = vmatprep.subr.mxu0 0.0
  %2850 = vmatpush1.msra.mxu0 %v2785
  %2851 = vmatprep.subr.mxu0 0.0
  %2852 = vmatpush1.msra.mxu0 %v2786
  %2853 = vmatprep.subr.mxu0 0.0
  %2854 = vmatpush1.msra.mxu0 %v2787
  %2855 = vmatprep.subr.mxu0 0.0
  %2856 = vmatpush1.msra.mxu0 %v2788
  %2857 = vmatprep.subr.mxu0 0.0
  %2858 = vmatpush1.msra.mxu0 %v2789
  %2859 = vmatprep.subr.mxu0 0.0
  %2860 = vmatpush1.msra.mxu0 %v2790
  %2861 = vmatprep.subr.mxu0 0.0
  %2862 = vmatpush1.msra.mxu0 %v2791
  %2863 = vmatprep.mubr.f32.mxu0 %v2759
  %2864 = vmatmul.mubr.f32.gmra.mrb[0].mxu0 %v2756
  %v2865 = vpop.f32.mrb[0].mxu0
  %v2866 = vadd.f32 %v2797, %v2865
  %v2867 = vpop.f32.mrb[0].mxu0
  %2868 = vdwg.mxu0
  %v2869 = vmax.f32 %v2866, 0.0
  %v2870 = vld [vmem:[%s12] sm:$0xff]
  %v2871 = vld [vmem:[%s12 + $0x8] sm:$0xff]
  %v2872 = vld [vmem:[%s12 + $0x10] sm:$0xff]
  %v2873 = vld [vmem:[%s12 + $0x18] sm:$0xff]
  %v2874 = vld [vmem:[%s12 + $0x20] sm:$0xff]
  %v2875 = vld [vmem:[%s12 + $0x28] sm:$0xff]
  %v2876 = vld [vmem:[%s12 + $0x30] sm:$0xff]
  %v2877 = vld [vmem:[%s12 + $0x38] sm:$0xff]
  %v2878 = vld [vmem:[#allocation2] sm:$0x1]
  %v2880 = vlaneseq
  %v2881 = vshrl.u32 %v2880, 7
  %v2882 = vsub.s32 0, %v2881
  %v2883 = vrot.slane %v2878, %v2882
  %v2886 = vsel %vm2753, %v2869, 0
  %2888 = vmatprep.subr.mxu0 0.0
  %2889 = vmatpush1.msra.mxu0 %v2870
  %2890 = vmatprep.subr.mxu0 0.0
  %2891 = vmatpush1.msra.mxu0 %v2871
  %2892 = vmatprep.subr.mxu0 0.0
  %2893 = vmatpush1.msra.mxu0 %v2872
  %2894 = vmatprep.subr.mxu0 0.0
  %2895 = vmatpush1.msra.mxu0 %v2873
  %2896 = vmatprep.subr.mxu0 0.0
  %2897 = vmatpush1.msra.mxu0 %v2874
  %2898 = vmatprep.subr.mxu0 0.0
  %2899 = vmatpush1.msra.mxu0 %v2875
  %2900 = vmatprep.subr.mxu0 0.0
  %2901 = vmatpush1.msra.mxu0 %v2876
  %2902 = vmatprep.subr.mxu0 0.0
  %2903 = vmatpush1.msra.mxu0 %v2877
  %2904 = vmatprep.subr.mxu0 0.0
  %2905 = vmatpush1.msra.mxu0 0.0
  %2906 = vmatprep.subr.mxu0 0.0
  %2907 = vmatpush1.msra.mxu0 0.0
  %2908 = vmatprep.subr.mxu0 0.0
  %2909 = vmatpush1.msra.mxu0 0.0
  %2910 = vmatprep.subr.mxu0 0.0
  %2911 = vmatpush1.msra.mxu0 0.0
  %2912 = vmatprep.subr.mxu0 0.0
  %2913 = vmatpush1.msra.mxu0 0.0
  %2914 = vmatprep.subr.mxu0 0.0
  %2915 = vmatpush1.msra.mxu0 0.0
  %2916 = vmatprep.subr.mxu0 0.0
  %2917 = vmatpush1.msra.mxu0 0.0
  %2918 = vmatprep.subr.mxu0 0.0
  %2919 = vmatpush1.msra.mxu0 0.0
  %2920 = vmatprep.subr.mxu0 0.0
  %2921 = vmatpush1.msra.mxu0 0.0
  %2922 = vmatprep.subr.mxu0 0.0
  %2923 = vmatpush1.msra.mxu0 0.0
  %2924 = vmatprep.subr.mxu0 0.0
  %2925 = vmatpush1.msra.mxu0 0.0
  %2926 = vmatprep.subr.mxu0 0.0
  %2927 = vmatpush1.msra.mxu0 0.0
  %2928 = vmatprep.subr.mxu0 0.0
  %2929 = vmatpush1.msra.mxu0 0.0
  %2930 = vmatprep.subr.mxu0 0.0
  %2931 = vmatpush1.msra.mxu0 0.0
  %2932 = vmatprep.subr.mxu0 0.0
  %2933 = vmatpush1.msra.mxu0 0.0
  %2934 = vmatprep.subr.mxu0 0.0
  %2935 = vmatpush1.msra.mxu0 0.0
  %2936 = vmatprep.subr.mxu0 0.0
  %2937 = vmatpush1.msra.mxu0 0.0
  %2938 = vmatprep.subr.mxu0 0.0
  %2939 = vmatpush1.msra.mxu0 0.0
  %2940 = vmatprep.subr.mxu0 0.0
  %2941 = vmatpush1.msra.mxu0 0.0
  %2942 = vmatprep.subr.mxu0 0.0
  %2943 = vmatpush1.msra.mxu0 0.0
  %2944 = vmatprep.subr.mxu0 0.0
  %2945 = vmatpush1.msra.mxu0 0.0
  %2946 = vmatprep.subr.mxu0 0.0
  %2947 = vmatpush1.msra.mxu0 0.0
  %2948 = vmatprep.subr.mxu0 0.0
  %2949 = vmatpush1.msra.mxu0 0.0
  %2950 = vmatprep.subr.mxu0 0.0
  %2951 = vmatpush1.msra.mxu0 0.0
  %2952 = vmatprep.mubr.f32.mxu0 0.0
  %2953 = vmatmul.mubr.f32.gmra.mrb[0].mxu0 %v2886
  %v2954 = vpop.f32.mrb[0].mxu0
  %v2955 = vadd.f32 %v2883, %v2954
  %v2956 = vpop.f32.mrb[0].mxu0
  %2957 = vdwg.mxu0
  %v2958 = vxor.u32 %v2955, 2147483648
  %v2959 = vmul.f32 %v2958, 1.442695
  %v2960 = vpow.pop %v2959
  %v2961 = vadd.f32 %v2960, 1.0
  %v2962 = vrcp.pop %v2961
  %v2963 = vmul.f32 1.0, %v2962
  %vm2964 = vcmask 7168
  %2965 = vst.msk [vmem:[%s14] sm:$0xff] %vm2964, %v2963
  // Predicated region
  $region58: #{phrase_sim_forward.1} parent=0 // pred_check
    _
  $region59: #{phrase_sim_forward.1} parent=0 // pred_check_branch
    %2967 = sbr.rel (0) target = $region61
  $region60: #{phrase_sim_forward.1} parent=0 // pred_region
    _
  $region61: #{phrase_sim_forward.1} parent=0 // pred_fallthru
    _
  // Predicated region
  $region62: #{phrase_sim_forward.1} parent=0 // pred_check
    _
  $region63: #{phrase_sim_forward.1} parent=0 // pred_check_branch
    %2969 = sbr.rel (0) target = $region65
  $region64: #{phrase_sim_forward.1} parent=0 // pred_region
    _
  $region65: #{phrase_sim_forward.1} parent=0 // pred_fallthru
    _

</llo_original>
